<compile_context>
chip_gen: v5e
topology: v5e:2x2
jax: 0.10.0
libtpu: 0.0.40
codegen_flags: <defaults>
</compile_context>

<pallas_src>
import functools

import jax
import jax.numpy as jnp
import numpy as np
from jax.experimental import pallas as pl
from jax.experimental.pallas import tpu as pltpu

LN_EPS = 1e-12


def _vmem_limit_bytes():
    """Scoped-VMEM cap per generation: ~3/4 of physical VMEM, capped at 96 MiB.

    v5e/v6e (128 MiB physical) -> 96 MiB, v7x (64 MiB physical) -> 48 MiB.
    """
    try:
        cap = int(pltpu.get_tpu_info().vmem_capacity_bytes)
    except Exception:
        cap = 64 * 1024 * 1024
    if cap <= 0:
        cap = 64 * 1024 * 1024
    return int(min(cap * 3 // 4, 96 * 1024 * 1024))


# ----------------------------- shared math helpers -----------------------------


def _layernorm(x, gamma, beta):
    mean = jnp.mean(x, axis=-1, keepdims=True)
    var = jnp.mean(jnp.square(x - mean), axis=-1, keepdims=True)
    return (x - mean) * jax.lax.rsqrt(var + LN_EPS) * gamma + beta


def _gelu(x):
    # TODO(synk): HF BERT uses the exact erf-based GELU; tanh approximation used here.
    c = jnp.float32(0.7978845608028654)  # sqrt(2/pi)
    return 0.5 * x * (1.0 + jnp.tanh(c * (x + 0.044715 * x * x * x)))


# --------------------------------- fused layer kernel ---------------------------


def layer_kernel(
    xq_ref, xf_ref, mask_ref,
    wq_ref, bq_ref, wkv_ref, bkv_ref, wo_ref, bo_ref, ln1g_ref, ln1b_ref,
    w1_ref, b1_ref, w2_ref, b2_ref, ln2g_ref, ln2b_ref,
    o_ref, *, num_heads, head_dim,
):
    """One full transformer encoder layer for a (batch, query-tile) grid block.

    xq_ref: (1, tq, H) query/residual rows; xf_ref: (1, S, H) full sequence for K/V.
    wq is (H,H) bf16 with 1/sqrt(head_dim) folded in; wkv is (H,2H) bf16 = [Wk | Wv];
    wo is (H,H) bf16; w1/w2 are the full FFN weights (VMEM-resident).
    """
    _, S, H = xf_ref.shape
    xq = xq_ref[0]                                       # (tq, H) f32 residual stream
    xqb = xq.astype(jnp.bfloat16)
    xfb = xf_ref[0].astype(jnp.bfloat16)                 # (S, H) bf16 for K/V
    bias = (1.0 - mask_ref[0]) * jnp.float32(-1e9)       # (1, S) additive mask

    # Lane-full fused projections (softmax scale pre-folded into wq/bq).
    q = jnp.dot(xqb, wq_ref[...], preferred_element_type=jnp.float32) + bq_ref[...]
    kv = jnp.dot(xfb, wkv_ref[...], preferred_element_type=jnp.float32) + bkv_ref[...]
    qb = q.astype(jnp.bfloat16)                          # (tq, H)
    kb = kv[:, :H].astype(jnp.bfloat16)                  # (S, H)
    vb = kv[:, H:].astype(jnp.bfloat16)                  # (S, H)

    # Per-head attention: heads are static head_dim-wide column slices of the fused
    # projections (static Python unroll; no dynamic lane slicing).
    ctx_heads = []
    for h in range(num_heads):
        lo = h * head_dim
        hi = lo + head_dim
        s = jax.lax.dot_general(
            qb[:, lo:hi], kb[:, lo:hi], (((1,), (1,)), ((), ())),
            preferred_element_type=jnp.float32) + bias            # (tq, S)
        # Max-subtraction guarantees sum(exp) >= 1 even for fully-masked (all-pad)
        # rows, so the approximate reciprocal never sees a zero denominator.
        s = s - jnp.max(s, axis=-1, keepdims=True)
        p = jnp.exp(s)
        p = p * pl.reciprocal(jnp.sum(p, axis=-1, keepdims=True), approx=True)
        ctx_heads.append(jnp.dot(p.astype(jnp.bfloat16), vb[:, lo:hi],
                                 preferred_element_type=jnp.float32))  # (tq, hd)

    # Lane-dense (tq, H) context -> single output projection with K = H.
    ctx = jnp.concatenate(ctx_heads, axis=-1).astype(jnp.bfloat16)
    attn = jnp.dot(ctx, wo_ref[...], preferred_element_type=jnp.float32) + bo_ref[...]
    x1 = _layernorm(xq + attn, ln1g_ref[...], ln1b_ref[...])

    # FFN with fully VMEM-resident w1/w2 (no intermediate-dim streaming grid).
    h1 = jnp.dot(x1.astype(jnp.bfloat16), w1_ref[...],
                 preferred_element_type=jnp.float32) + b1_ref[...]
    h1 = _gelu(h1)
    ffn = jnp.dot(h1.astype(jnp.bfloat16), w2_ref[...],
                  preferred_element_type=jnp.float32) + b2_ref[...]
    o_ref[0] = _layernorm(x1 + ffn, ln2g_ref[...], ln2b_ref[...])


# ------------------------------ pallas wrapper ----------------------------------

LAYER_KEYS = ("wq", "bq", "wkv", "bkv", "wo", "bo", "ln1g", "ln1b",
              "w1", "b1", "w2", "b2", "ln2g", "ln2b")


def encoder_layer(x, mask3, lw, *, num_heads, head_dim, seq_tile, vmem_limit):
    B, S, H = x.shape
    tq = min(seq_tile, S)
    assert S % tq == 0
    weights = [lw[k] for k in LAYER_KEYS]
    in_specs = [
        pl.BlockSpec((1, tq, H), lambda b, qi: (b, qi, 0)),   # query / residual tile
        pl.BlockSpec((1, S, H), lambda b, qi: (b, 0, 0)),     # full sequence for K/V
        pl.BlockSpec((1, 1, S), lambda b, qi: (b, 0, 0)),     # attention mask
    ] + [
        # Constant index maps: each weight block is DMA'd once per pallas_call and
        # the same VMEM block is revisited on subsequent grid steps.
        pl.BlockSpec(w.shape, lambda b, qi, n=w.ndim: (0,) * n) for w in weights
    ]
    kern = functools.partial(layer_kernel, num_heads=num_heads, head_dim=head_dim)
    return pl.pallas_call(
        kern,
        out_shape=jax.ShapeDtypeStruct((B, S, H), jnp.float32),
        grid=(B, S // tq),
        in_specs=in_specs,
        out_specs=pl.BlockSpec((1, tq, H), lambda b, qi: (b, qi, 0)),
        compiler_params=pltpu.CompilerParams(
            dimension_semantics=("parallel", "parallel"),
            vmem_limit_bytes=vmem_limit),
    )(x, x, mask3, *weights)


def bert_encoder_forward(prep, input_ids, token_type_ids, attention_mask,
                         *, num_heads, head_dim, seq_tile=128):
    B, S = input_ids.shape
    # Embedding gathers + adds + LayerNorm are left to XLA (they fuse); a standalone
    # few-KB LN pallas_call would be launch-overhead dominated (review item).
    x = (
        prep["word_emb"][input_ids]
        + prep["pos_emb"][jnp.arange(S)][None, :, :]
        + prep["type_emb"][token_type_ids]
    ).astype(jnp.float32)
    x = _layernorm(x, prep["emb_ln_g"], prep["emb_ln_b"])

    mask3 = attention_mask.astype(jnp.float32).reshape(B, 1, S)
    vmem_limit = _vmem_limit_bytes()
    # TODO(synk): cross-pallas_call prefetch of layer l+1 weights during layer l (P10).
    for lw in prep["layers"]:
        x = encoder_layer(x, mask3, lw, num_heads=num_heads, head_dim=head_dim,
                          seq_tile=seq_tile, vmem_limit=vmem_limit)

    # bert_output[0][:, 0, :]  ->  CLS hidden state of the last layer
    return x[:, 0, :]


# --------------------------- pure-JAX reference ---------------------------------


def bert_reference(prep, input_ids, token_type_ids, attention_mask,
                   *, num_heads, head_dim):
    """Mirrors the kernel math (bf16 MXU operands, f32 accumulation, folded scale)."""
    B, S = input_ids.shape
    f32, bf16 = jnp.float32, jnp.bfloat16
    x = (
        prep["word_emb"][input_ids]
        + prep["pos_emb"][jnp.arange(S)][None, :, :]
        + prep["type_emb"][token_type_ids]
    ).astype(f32)
    x = _layernorm(x, prep["emb_ln_g"], prep["emb_ln_b"])
    bias = (1.0 - attention_mask.astype(f32))[:, None, None, :] * -1e9

    for lw in prep["layers"]:
        H = lw["wq"].shape[0]
        xb = x.astype(bf16)
        q = jnp.einsum("bsh,hd->bsd", xb, lw["wq"], preferred_element_type=f32) + lw["bq"]
        kv = jnp.einsum("bsh,hd->bsd", xb, lw["wkv"], preferred_element_type=f32) + lw["bkv"]
        k, v = kv[..., :H], kv[..., H:]

        def heads(t):  # (B,S,H) -> (B,nh,S,hd)
            return t.reshape(B, S, num_heads, head_dim).transpose(0, 2, 1, 3)

        qh, kh, vh = heads(q).astype(bf16), heads(k).astype(bf16), heads(v).astype(bf16)
        s = jnp.einsum("bnqd,bnkd->bnqk", qh, kh, preferred_element_type=f32) + bias
        s = s - jnp.max(s, axis=-1, keepdims=True)
        p = jnp.exp(s)
        p = p / jnp.sum(p, axis=-1, keepdims=True)
        ctx = jnp.einsum("bnqk,bnkd->bnqd", p.astype(bf16), vh, preferred_element_type=f32)
        ctx = ctx.transpose(0, 2, 1, 3).reshape(B, S, H).astype(bf16)
        attn = jnp.einsum("bsh,hd->bsd", ctx, lw["wo"], preferred_element_type=f32) + lw["bo"]
        x1 = _layernorm(x + attn, lw["ln1g"], lw["ln1b"])
        h1 = _gelu(jnp.einsum("bsh,hi->bsi", x1.astype(bf16), lw["w1"],
                              preferred_element_type=f32) + lw["b1"])
        ffn = jnp.einsum("bsi,ih->bsh", h1.astype(bf16), lw["w2"],
                         preferred_element_type=f32) + lw["b2"]
        x = _layernorm(x1 + ffn, lw["ln2g"], lw["ln2b"])
    return x[:, 0, :]


# ------------------------------- param init -------------------------------------


def init_params(key, *, vocab, max_pos, type_vocab, hidden, inter, num_layers):
    scale = jnp.float32(0.02)
    keys = jax.random.split(key, 3 + num_layers)
    params = {
        "word_emb": scale * jax.random.normal(keys[0], (vocab, hidden), jnp.float32),
        "pos_emb": scale * jax.random.normal(keys[1], (max_pos, hidden), jnp.float32),
        "type_emb": scale * jax.random.normal(keys[2], (type_vocab, hidden), jnp.float32),
        "emb_ln_g": jnp.ones((1, hidden), jnp.float32),
        "emb_ln_b": jnp.zeros((1, hidden), jnp.float32),
        "layers": [],
    }
    for l in range(num_layers):
        lk = jax.random.split(keys[3 + l], 6)
        params["layers"].append({
            "wq": scale * jax.random.normal(lk[0], (hidden, hidden), jnp.float32),
            "bq": jnp.zeros((1, hidden), jnp.float32),
            "wk": scale * jax.random.normal(lk[1], (hidden, hidden), jnp.float32),
            "bk": jnp.zeros((1, hidden), jnp.float32),
            "wv": scale * jax.random.normal(lk[2], (hidden, hidden), jnp.float32),
            "bv": jnp.zeros((1, hidden), jnp.float32),
            "wo": scale * jax.random.normal(lk[3], (hidden, hidden), jnp.float32),
            "bo": jnp.zeros((1, hidden), jnp.float32),
            "ln1g": jnp.ones((1, hidden), jnp.float32),
            "ln1b": jnp.zeros((1, hidden), jnp.float32),
            "w1": scale * jax.random.normal(lk[4], (hidden, inter), jnp.float32),
            "b1": jnp.zeros((1, inter), jnp.float32),
            "w2": scale * jax.random.normal(lk[5], (inter, hidden), jnp.float32),
            "b2": jnp.zeros((1, hidden), jnp.float32),
            "ln2g": jnp.ones((1, hidden), jnp.float32),
            "ln2b": jnp.zeros((1, hidden), jnp.float32),
        })
    return params


def prepare_params(params, *, num_heads, head_dim):
    """Kernel-ready weights: softmax scale folded into wq/bq, wk/wv packed into one
    (H, 2H) matrix, matmul weights cast to bf16 (biases / LN params stay f32)."""
    bf16 = jnp.bfloat16
    inv_scale = jnp.float32(1.0 / (head_dim ** 0.5))
    prep = {
        "word_emb": params["word_emb"],
        "pos_emb": params["pos_emb"],
        "type_emb": params["type_emb"],
        "emb_ln_g": params["emb_ln_g"],
        "emb_ln_b": params["emb_ln_b"],
        "layers": [],
    }
    for lw in params["layers"]:
        prep["layers"].append({
            "wq": (lw["wq"] * inv_scale).astype(bf16),
            "bq": lw["bq"] * inv_scale,
            "wkv": jnp.concatenate([lw["wk"], lw["wv"]], axis=1).astype(bf16),
            "bkv": jnp.concatenate([lw["bk"], lw["bv"]], axis=1),
            "wo": lw["wo"].astype(bf16),
            "bo": lw["bo"],
            "ln1g": lw["ln1g"], "ln1b": lw["ln1b"],
            "w1": lw["w1"].astype(bf16), "b1": lw["b1"],
            "w2": lw["w2"].astype(bf16), "b2": lw["b2"],
            "ln2g": lw["ln2g"], "ln2b": lw["ln2b"],
        })
    return prep


# ----------------------------------- main ----------------------------------------

if __name__ == "__main__":
    # (8,128)-friendly toy config: S multiple of 8, H/inter multiples of 128.
    B, S = 2, 128
    HIDDEN, NUM_HEADS = 128, 2
    HEAD_DIM = HIDDEN // NUM_HEADS
    INTER = 512
    VOCAB, MAX_POS, TYPE_VOCAB = 512, 128, 2
    NUM_LAYERS = 2

    root = jax.random.PRNGKey(0)
    pkey, ikey = jax.random.split(root)
    params = init_params(
        pkey, vocab=VOCAB, max_pos=MAX_POS, type_vocab=TYPE_VOCAB,
        hidden=HIDDEN, inter=INTER, num_layers=NUM_LAYERS,
    )
    prep = prepare_params(params, num_heads=NUM_HEADS, head_dim=HEAD_DIM)

    # Synthetic "tokenized batch": ids, token types, padding mask.
    input_ids = jax.random.randint(ikey, (B, S), 0, VOCAB, dtype=jnp.int32)
    input_ids = input_ids.at[:, 0].set(1)  # pretend [CLS] id
    token_type_ids = jnp.zeros((B, S), jnp.int32)
    attention_mask = jnp.ones((B, S), jnp.int32).at[1, 100:].set(0)  # pad tail of sample 1

    cls_hidden = bert_encoder_forward(
        prep, input_ids, token_type_ids, attention_mask,
        num_heads=NUM_HEADS, head_dim=HEAD_DIM, seq_tile=128,
    )
    cls_hidden = jax.block_until_ready(cls_hidden)

    ref = bert_reference(
        prep, input_ids, token_type_ids, attention_mask,
        num_heads=NUM_HEADS, head_dim=HEAD_DIM,
    )
    ref = jax.block_until_ready(ref)

    assert cls_hidden.shape == (B, HIDDEN)
    # Tolerance covers bf16 MXU operands and the EUP approx reciprocal in softmax.
    np.testing.assert_allclose(np.asarray(cls_hidden), np.asarray(ref), rtol=1e-2, atol=1e-2)
    print("KERNEL_OK")
</pallas_src>

<mosaic_0001>
module attributes {stable_mosaic.version = 11 : i64} {
  func.func @layer_kernel(%arg0: i32, %arg1: i32, %arg2: memref<1x128x128xf32, #tpu.memory_space<vmem>>, %arg3: memref<1x128x128xf32, #tpu.memory_space<vmem>>, %arg4: memref<1x1x128xf32, #tpu.memory_space<vmem>>, %arg5: memref<128x128xbf16, #tpu.memory_space<vmem>>, %arg6: memref<1x128xf32, #tpu.memory_space<vmem>>, %arg7: memref<128x256xbf16, #tpu.memory_space<vmem>>, %arg8: memref<1x256xf32, #tpu.memory_space<vmem>>, %arg9: memref<128x128xbf16, #tpu.memory_space<vmem>>, %arg10: memref<1x128xf32, #tpu.memory_space<vmem>>, %arg11: memref<1x128xf32, #tpu.memory_space<vmem>>, %arg12: memref<1x128xf32, #tpu.memory_space<vmem>>, %arg13: memref<128x512xbf16, #tpu.memory_space<vmem>>, %arg14: memref<1x512xf32, #tpu.memory_space<vmem>>, %arg15: memref<512x128xbf16, #tpu.memory_space<vmem>>, %arg16: memref<1x128xf32, #tpu.memory_space<vmem>>, %arg17: memref<1x128xf32, #tpu.memory_space<vmem>>, %arg18: memref<1x128xf32, #tpu.memory_space<vmem>>, %arg19: memref<1x128x128xf32, #tpu.memory_space<vmem>>) attributes {dimension_semantics = [#tpu.dimension_semantics<parallel>, #tpu.dimension_semantics<parallel>], iteration_bounds = array<i64: 2, 1>, scalar_prefetch = 0 : i64, scratch_operands = 0 : i64, tpu.core_type = #tpu.core_type<tc>, window_params = [{transform_indices = @transform_0, window_bounds = array<i64: 1, 128, 128>}, {transform_indices = @transform_1, window_bounds = array<i64: 1, 128, 128>}, {transform_indices = @transform_2, window_bounds = array<i64: 1, 1, 128>}, {pipeline_mode = #tpu.pipeline_mode<synchronous>, transform_indices = @transform_3, window_bounds = array<i64: 128, 128>}, {pipeline_mode = #tpu.pipeline_mode<synchronous>, transform_indices = @transform_4, window_bounds = array<i64: 1, 128>}, {pipeline_mode = #tpu.pipeline_mode<synchronous>, transform_indices = @transform_5, window_bounds = array<i64: 128, 256>}, {pipeline_mode = #tpu.pipeline_mode<synchronous>, transform_indices = @transform_6, window_bounds = array<i64: 1, 256>}, {pipeline_mode = #tpu.pipeline_mode<synchronous>, transform_indices = @transform_7, window_bounds = array<i64: 128, 128>}, {pipeline_mode = #tpu.pipeline_mode<synchronous>, transform_indices = @transform_8, window_bounds = array<i64: 1, 128>}, {pipeline_mode = #tpu.pipeline_mode<synchronous>, transform_indices = @transform_9, window_bounds = array<i64: 1, 128>}, {pipeline_mode = #tpu.pipeline_mode<synchronous>, transform_indices = @transform_10, window_bounds = array<i64: 1, 128>}, {pipeline_mode = #tpu.pipeline_mode<synchronous>, transform_indices = @transform_11, window_bounds = array<i64: 128, 512>}, {pipeline_mode = #tpu.pipeline_mode<synchronous>, transform_indices = @transform_12, window_bounds = array<i64: 1, 512>}, {pipeline_mode = #tpu.pipeline_mode<synchronous>, transform_indices = @transform_13, window_bounds = array<i64: 512, 128>}, {pipeline_mode = #tpu.pipeline_mode<synchronous>, transform_indices = @transform_14, window_bounds = array<i64: 1, 128>}, {pipeline_mode = #tpu.pipeline_mode<synchronous>, transform_indices = @transform_15, window_bounds = array<i64: 1, 128>}, {pipeline_mode = #tpu.pipeline_mode<synchronous>, transform_indices = @transform_16, window_bounds = array<i64: 1, 128>}, {transform_indices = @transform_17, window_bounds = array<i64: 1, 128, 128>}]} {
    %c0 = arith.constant 0 : index
    %c0_0 = arith.constant 0 : index
    %c0_1 = arith.constant 0 : index
    %0 = vector.load %arg2[%c0, %c0_0, %c0_1] : memref<1x128x128xf32, #tpu.memory_space<vmem>>, vector<1x128x128xf32>
    %1 = vector.shape_cast %0 : vector<1x128x128xf32> to vector<128x128xf32>
    %2 = arith.truncf %1 : vector<128x128xf32> to vector<128x128xbf16>
    %c0_2 = arith.constant 0 : index
    %c0_3 = arith.constant 0 : index
    %c0_4 = arith.constant 0 : index
    %3 = vector.load %arg3[%c0_2, %c0_3, %c0_4] : memref<1x128x128xf32, #tpu.memory_space<vmem>>, vector<1x128x128xf32>
    %4 = vector.shape_cast %3 : vector<1x128x128xf32> to vector<128x128xf32>
    %5 = arith.truncf %4 : vector<128x128xf32> to vector<128x128xbf16>
    %c0_5 = arith.constant 0 : index
    %c0_6 = arith.constant 0 : index
    %c0_7 = arith.constant 0 : index
    %6 = vector.load %arg4[%c0_5, %c0_6, %c0_7] : memref<1x1x128xf32, #tpu.memory_space<vmem>>, vector<1x1x128xf32>
    %7 = vector.shape_cast %6 : vector<1x1x128xf32> to vector<1x128xf32>
    %cst = arith.constant 1.000000e+00 : f32
    %8 = vector.broadcast %cst : f32 to vector<1x128xf32>
    %9 = arith.subf %8, %7 : vector<1x128xf32>
    %cst_8 = arith.constant -1.000000e+09 : f32
    %10 = vector.broadcast %cst_8 : f32 to vector<1x128xf32>
    %11 = arith.mulf %9, %10 : vector<1x128xf32>
    %c0_9 = arith.constant 0 : index
    %c0_10 = arith.constant 0 : index
    %12 = vector.load %arg5[%c0_9, %c0_10] : memref<128x128xbf16, #tpu.memory_space<vmem>>, vector<128x128xbf16>
    %cst_11 = arith.constant dense<0.000000e+00> : vector<128x128xf32>
    %13 = tpu.matmul %2, %12, %cst_11 {dimension_numbers = #tpu.dot_dimension_numbers<[1], [0], [0], [1], [0, 0, 1, 1], [], []>} : vector<128x128xbf16>, vector<128x128xbf16>, vector<128x128xf32> -> vector<128x128xf32>
    %c0_12 = arith.constant 0 : index
    %c0_13 = arith.constant 0 : index
    %14 = vector.load %arg6[%c0_12, %c0_13] : memref<1x128xf32, #tpu.memory_space<vmem>>, vector<1x128xf32>
    %15 = vector.broadcast %14 : vector<1x128xf32> to vector<128x128xf32>
    %16 = arith.addf %13, %15 : vector<128x128xf32>
    %c0_14 = arith.constant 0 : index
    %c0_15 = arith.constant 0 : index
    %17 = vector.load %arg7[%c0_14, %c0_15] : memref<128x256xbf16, #tpu.memory_space<vmem>>, vector<128x256xbf16>
    %cst_16 = arith.constant dense<0.000000e+00> : vector<128x256xf32>
    %18 = tpu.matmul %5, %17, %cst_16 {dimension_numbers = #tpu.dot_dimension_numbers<[1], [0], [0], [1], [0, 0, 1, 1], [], []>} : vector<128x128xbf16>, vector<128x256xbf16>, vector<128x256xf32> -> vector<128x256xf32>
    %c0_17 = arith.constant 0 : index
    %c0_18 = arith.constant 0 : index
    %19 = vector.load %arg8[%c0_17, %c0_18] : memref<1x256xf32, #tpu.memory_space<vmem>>, vector<1x256xf32>
    %20 = vector.broadcast %19 : vector<1x256xf32> to vector<128x256xf32>
    %21 = arith.addf %18, %20 : vector<128x256xf32>
    %22 = arith.truncf %16 : vector<128x128xf32> to vector<128x128xbf16>
    %23 = vector.extract_strided_slice %21 {offsets = [0, 0], sizes = [128, 128], strides = [1, 1]} : vector<128x256xf32> to vector<128x128xf32>
    %24 = arith.truncf %23 : vector<128x128xf32> to vector<128x128xbf16>
    %25 = vector.extract_strided_slice %21 {offsets = [0, 128], sizes = [128, 128], strides = [1, 1]} : vector<128x256xf32> to vector<128x128xf32>
    %26 = arith.truncf %25 : vector<128x128xf32> to vector<128x128xbf16>
    %27 = vector.extract_strided_slice %22 {offsets = [0, 0], sizes = [128, 64], strides = [1, 1]} : vector<128x128xbf16> to vector<128x64xbf16>
    %28 = vector.extract_strided_slice %24 {offsets = [0, 0], sizes = [128, 64], strides = [1, 1]} : vector<128x128xbf16> to vector<128x64xbf16>
    %cst_19 = arith.constant dense<0.000000e+00> : vector<128x128xf32>
    %29 = tpu.matmul %27, %28, %cst_19 {dimension_numbers = #tpu.dot_dimension_numbers<[1], [1], [0], [0], [0, 0, 1, 0], [], []>} : vector<128x64xbf16>, vector<128x64xbf16>, vector<128x128xf32> -> vector<128x128xf32>
    %30 = vector.broadcast %11 : vector<1x128xf32> to vector<128x128xf32>
    %31 = arith.addf %29, %30 : vector<128x128xf32>
    %cst_20 = arith.constant dense<0xFF800000> : vector<128xf32>
    %32 = vector.multi_reduction <maximumf>, %31, %cst_20 [1] : vector<128x128xf32> to vector<128xf32>
    %33 = vector.shape_cast %32 : vector<128xf32> to vector<128x1xf32>
    %34 = vector.broadcast %33 : vector<128x1xf32> to vector<128x128xf32>
    %35 = arith.subf %31, %34 : vector<128x128xf32>
    %36 = math.exp %35 : vector<128x128xf32>
    %cst_21 = arith.constant dense<0.000000e+00> : vector<128xf32>
    %37 = vector.multi_reduction <add>, %36, %cst_21 [1] : vector<128x128xf32> to vector<128xf32>
    %38 = vector.shape_cast %37 : vector<128xf32> to vector<128x1xf32>
    %39 = tpu.reciprocal %38 {approx = true} : vector<128x1xf32> -> vector<128x1xf32>
    %40 = vector.broadcast %39 : vector<128x1xf32> to vector<128x128xf32>
    %41 = arith.mulf %36, %40 : vector<128x128xf32>
    %42 = arith.truncf %41 : vector<128x128xf32> to vector<128x128xbf16>
    %43 = vector.extract_strided_slice %26 {offsets = [0, 0], sizes = [128, 64], strides = [1, 1]} : vector<128x128xbf16> to vector<128x64xbf16>
    %cst_22 = arith.constant dense<0.000000e+00> : vector<128x64xf32>
    %44 = tpu.matmul %42, %43, %cst_22 {dimension_numbers = #tpu.dot_dimension_numbers<[1], [0], [0], [1], [0, 0, 1, 1], [], []>} : vector<128x128xbf16>, vector<128x64xbf16>, vector<128x64xf32> -> vector<128x64xf32>
    %45 = vector.extract_strided_slice %22 {offsets = [0, 64], sizes = [128, 64], strides = [1, 1]} : vector<128x128xbf16> to vector<128x64xbf16>
    %46 = vector.extract_strided_slice %24 {offsets = [0, 64], sizes = [128, 64], strides = [1, 1]} : vector<128x128xbf16> to vector<128x64xbf16>
    %cst_23 = arith.constant dense<0.000000e+00> : vector<128x128xf32>
    %47 = tpu.matmul %45, %46, %cst_23 {dimension_numbers = #tpu.dot_dimension_numbers<[1], [1], [0], [0], [0, 0, 1, 0], [], []>} : vector<128x64xbf16>, vector<128x64xbf16>, vector<128x128xf32> -> vector<128x128xf32>
    %48 = vector.broadcast %11 : vector<1x128xf32> to vector<128x128xf32>
    %49 = arith.addf %47, %48 : vector<128x128xf32>
    %cst_24 = arith.constant dense<0xFF800000> : vector<128xf32>
    %50 = vector.multi_reduction <maximumf>, %49, %cst_24 [1] : vector<128x128xf32> to vector<128xf32>
    %51 = vector.shape_cast %50 : vector<128xf32> to vector<128x1xf32>
    %52 = vector.broadcast %51 : vector<128x1xf32> to vector<128x128xf32>
    %53 = arith.subf %49, %52 : vector<128x128xf32>
    %54 = math.exp %53 : vector<128x128xf32>
    %cst_25 = arith.constant dense<0.000000e+00> : vector<128xf32>
    %55 = vector.multi_reduction <add>, %54, %cst_25 [1] : vector<128x128xf32> to vector<128xf32>
    %56 = vector.shape_cast %55 : vector<128xf32> to vector<128x1xf32>
    %57 = tpu.reciprocal %56 {approx = true} : vector<128x1xf32> -> vector<128x1xf32>
    %58 = vector.broadcast %57 : vector<128x1xf32> to vector<128x128xf32>
    %59 = arith.mulf %54, %58 : vector<128x128xf32>
    %60 = arith.truncf %59 : vector<128x128xf32> to vector<128x128xbf16>
    %61 = vector.extract_strided_slice %26 {offsets = [0, 64], sizes = [128, 64], strides = [1, 1]} : vector<128x128xbf16> to vector<128x64xbf16>
    %cst_26 = arith.constant dense<0.000000e+00> : vector<128x64xf32>
    %62 = tpu.matmul %60, %61, %cst_26 {dimension_numbers = #tpu.dot_dimension_numbers<[1], [0], [0], [1], [0, 0, 1, 1], [], []>} : vector<128x128xbf16>, vector<128x64xbf16>, vector<128x64xf32> -> vector<128x64xf32>
    %63 = tpu.concatenate %44, %62 in 1 : vector<128x64xf32>, vector<128x64xf32> -> vector<128x128xf32>
    %64 = arith.truncf %63 : vector<128x128xf32> to vector<128x128xbf16>
    %c0_27 = arith.constant 0 : index
    %c0_28 = arith.constant 0 : index
    %65 = vector.load %arg9[%c0_27, %c0_28] : memref<128x128xbf16, #tpu.memory_space<vmem>>, vector<128x128xbf16>
    %cst_29 = arith.constant dense<0.000000e+00> : vector<128x128xf32>
    %66 = tpu.matmul %64, %65, %cst_29 {dimension_numbers = #tpu.dot_dimension_numbers<[1], [0], [0], [1], [0, 0, 1, 1], [], []>} : vector<128x128xbf16>, vector<128x128xbf16>, vector<128x128xf32> -> vector<128x128xf32>
    %c0_30 = arith.constant 0 : index
    %c0_31 = arith.constant 0 : index
    %67 = vector.load %arg10[%c0_30, %c0_31] : memref<1x128xf32, #tpu.memory_space<vmem>>, vector<1x128xf32>
    %68 = vector.broadcast %67 : vector<1x128xf32> to vector<128x128xf32>
    %69 = arith.addf %66, %68 : vector<128x128xf32>
    %70 = arith.addf %1, %69 : vector<128x128xf32>
    %c0_32 = arith.constant 0 : index
    %c0_33 = arith.constant 0 : index
    %71 = vector.load %arg11[%c0_32, %c0_33] : memref<1x128xf32, #tpu.memory_space<vmem>>, vector<1x128xf32>
    %c0_34 = arith.constant 0 : index
    %c0_35 = arith.constant 0 : index
    %72 = vector.load %arg12[%c0_34, %c0_35] : memref<1x128xf32, #tpu.memory_space<vmem>>, vector<1x128xf32>
    %cst_36 = arith.constant dense<0.000000e+00> : vector<128xf32>
    %73 = vector.multi_reduction <add>, %70, %cst_36 [1] : vector<128x128xf32> to vector<128xf32>
    %74 = vector.shape_cast %73 : vector<128xf32> to vector<128x1xf32>
    %cst_37 = arith.constant 1.280000e+02 : f32
    %75 = vector.broadcast %cst_37 : f32 to vector<128x1xf32>
    %76 = arith.divf %74, %75 : vector<128x1xf32>
    %77 = vector.broadcast %76 : vector<128x1xf32> to vector<128x128xf32>
    %78 = arith.subf %70, %77 : vector<128x128xf32>
    %79 = arith.mulf %78, %78 : vector<128x128xf32>
    %cst_38 = arith.constant dense<0.000000e+00> : vector<128xf32>
    %80 = vector.multi_reduction <add>, %79, %cst_38 [1] : vector<128x128xf32> to vector<128xf32>
    %81 = vector.shape_cast %80 : vector<128xf32> to vector<128x1xf32>
    %cst_39 = arith.constant 1.280000e+02 : f32
    %82 = vector.broadcast %cst_39 : f32 to vector<128x1xf32>
    %83 = arith.divf %81, %82 : vector<128x1xf32>
    %84 = vector.broadcast %76 : vector<128x1xf32> to vector<128x128xf32>
    %85 = arith.subf %70, %84 : vector<128x128xf32>
    %cst_40 = arith.constant 9.99999996E-13 : f32
    %86 = vector.broadcast %cst_40 : f32 to vector<128x1xf32>
    %87 = arith.addf %83, %86 : vector<128x1xf32>
    %88 = math.rsqrt %87 : vector<128x1xf32>
    %89 = vector.broadcast %88 : vector<128x1xf32> to vector<128x128xf32>
    %90 = arith.mulf %85, %89 : vector<128x128xf32>
    %91 = vector.broadcast %71 : vector<1x128xf32> to vector<128x128xf32>
    %92 = arith.mulf %90, %91 : vector<128x128xf32>
    %93 = vector.broadcast %72 : vector<1x128xf32> to vector<128x128xf32>
    %94 = arith.addf %92, %93 : vector<128x128xf32>
    %95 = arith.truncf %94 : vector<128x128xf32> to vector<128x128xbf16>
    %c0_41 = arith.constant 0 : index
    %c0_42 = arith.constant 0 : index
    %96 = vector.load %arg13[%c0_41, %c0_42] : memref<128x512xbf16, #tpu.memory_space<vmem>>, vector<128x512xbf16>
    %cst_43 = arith.constant dense<0.000000e+00> : vector<128x512xf32>
    %97 = tpu.matmul %95, %96, %cst_43 {dimension_numbers = #tpu.dot_dimension_numbers<[1], [0], [0], [1], [0, 0, 1, 1], [], []>} : vector<128x128xbf16>, vector<128x512xbf16>, vector<128x512xf32> -> vector<128x512xf32>
    %c0_44 = arith.constant 0 : index
    %c0_45 = arith.constant 0 : index
    %98 = vector.load %arg14[%c0_44, %c0_45] : memref<1x512xf32, #tpu.memory_space<vmem>>, vector<1x512xf32>
    %99 = vector.broadcast %98 : vector<1x512xf32> to vector<128x512xf32>
    %100 = arith.addf %97, %99 : vector<128x512xf32>
    %cst_46 = arith.constant 5.000000e-01 : f32
    %101 = vector.broadcast %cst_46 : f32 to vector<128x512xf32>
    %102 = arith.mulf %101, %100 : vector<128x512xf32>
    %cst_47 = arith.constant 4.471500e-02 : f32
    %103 = vector.broadcast %cst_47 : f32 to vector<128x512xf32>
    %104 = arith.mulf %103, %100 : vector<128x512xf32>
    %105 = arith.mulf %104, %100 : vector<128x512xf32>
    %106 = arith.mulf %105, %100 : vector<128x512xf32>
    %107 = arith.addf %100, %106 : vector<128x512xf32>
    %cst_48 = arith.constant 0.797884583 : f32
    %108 = vector.broadcast %cst_48 : f32 to vector<128x512xf32>
    %109 = arith.mulf %108, %107 : vector<128x512xf32>
    %110 = math.tanh %109 : vector<128x512xf32>
    %cst_49 = arith.constant 1.000000e+00 : f32
    %111 = vector.broadcast %cst_49 : f32 to vector<128x512xf32>
    %112 = arith.addf %111, %110 : vector<128x512xf32>
    %113 = arith.mulf %102, %112 : vector<128x512xf32>
    %114 = arith.truncf %113 : vector<128x512xf32> to vector<128x512xbf16>
    %c0_50 = arith.constant 0 : index
    %c0_51 = arith.constant 0 : index
    %115 = vector.load %arg15[%c0_50, %c0_51] : memref<512x128xbf16, #tpu.memory_space<vmem>>, vector<512x128xbf16>
    %cst_52 = arith.constant dense<0.000000e+00> : vector<128x128xf32>
    %116 = tpu.matmul %114, %115, %cst_52 {dimension_numbers = #tpu.dot_dimension_numbers<[1], [0], [0], [1], [0, 0, 1, 1], [], []>} : vector<128x512xbf16>, vector<512x128xbf16>, vector<128x128xf32> -> vector<128x128xf32>
    %c0_53 = arith.constant 0 : index
    %c0_54 = arith.constant 0 : index
    %117 = vector.load %arg16[%c0_53, %c0_54] : memref<1x128xf32, #tpu.memory_space<vmem>>, vector<1x128xf32>
    %118 = vector.broadcast %117 : vector<1x128xf32> to vector<128x128xf32>
    %119 = arith.addf %116, %118 : vector<128x128xf32>
    %120 = arith.addf %94, %119 : vector<128x128xf32>
    %c0_55 = arith.constant 0 : index
    %c0_56 = arith.constant 0 : index
    %121 = vector.load %arg17[%c0_55, %c0_56] : memref<1x128xf32, #tpu.memory_space<vmem>>, vector<1x128xf32>
    %c0_57 = arith.constant 0 : index
    %c0_58 = arith.constant 0 : index
    %122 = vector.load %arg18[%c0_57, %c0_58] : memref<1x128xf32, #tpu.memory_space<vmem>>, vector<1x128xf32>
    %cst_59 = arith.constant dense<0.000000e+00> : vector<128xf32>
    %123 = vector.multi_reduction <add>, %120, %cst_59 [1] : vector<128x128xf32> to vector<128xf32>
    %124 = vector.shape_cast %123 : vector<128xf32> to vector<128x1xf32>
    %cst_60 = arith.constant 1.280000e+02 : f32
    %125 = vector.broadcast %cst_60 : f32 to vector<128x1xf32>
    %126 = arith.divf %124, %125 : vector<128x1xf32>
    %127 = vector.broadcast %126 : vector<128x1xf32> to vector<128x128xf32>
    %128 = arith.subf %120, %127 : vector<128x128xf32>
    %129 = arith.mulf %128, %128 : vector<128x128xf32>
    %cst_61 = arith.constant dense<0.000000e+00> : vector<128xf32>
    %130 = vector.multi_reduction <add>, %129, %cst_61 [1] : vector<128x128xf32> to vector<128xf32>
    %131 = vector.shape_cast %130 : vector<128xf32> to vector<128x1xf32>
    %cst_62 = arith.constant 1.280000e+02 : f32
    %132 = vector.broadcast %cst_62 : f32 to vector<128x1xf32>
    %133 = arith.divf %131, %132 : vector<128x1xf32>
    %134 = vector.broadcast %126 : vector<128x1xf32> to vector<128x128xf32>
    %135 = arith.subf %120, %134 : vector<128x128xf32>
    %cst_63 = arith.constant 9.99999996E-13 : f32
    %136 = vector.broadcast %cst_63 : f32 to vector<128x1xf32>
    %137 = arith.addf %133, %136 : vector<128x1xf32>
    %138 = math.rsqrt %137 : vector<128x1xf32>
    %139 = vector.broadcast %138 : vector<128x1xf32> to vector<128x128xf32>
    %140 = arith.mulf %135, %139 : vector<128x128xf32>
    %141 = vector.broadcast %121 : vector<1x128xf32> to vector<128x128xf32>
    %142 = arith.mulf %140, %141 : vector<128x128xf32>
    %143 = vector.broadcast %122 : vector<1x128xf32> to vector<128x128xf32>
    %144 = arith.addf %142, %143 : vector<128x128xf32>
    %c0_64 = arith.constant 0 : index
    %c0_65 = arith.constant 0 : index
    %c0_66 = arith.constant 0 : index
    %145 = vector.load %arg19[%c0_64, %c0_65, %c0_66] : memref<1x128x128xf32, #tpu.memory_space<vmem>>, vector<1x128x128xf32>
    %146 = vector.shape_cast %145 : vector<1x128x128xf32> to vector<128x128xf32>
    %147 = vector.shape_cast %144 : vector<128x128xf32> to vector<1x128x128xf32>
    tpu.vector_store %arg19[%c0_64, %c0_65, %c0_66], %147 {strides = array<i32>} : memref<1x128x128xf32, #tpu.memory_space<vmem>>, vector<1x128x128xf32>,
    return
  }
  func.func @transform_0(%arg0: i32, %arg1: i32) -> (i32, i32, i32) {
    %c0_i32 = arith.constant 0 : i32
    %c0_i32_0 = arith.constant 0 : i32
    return %arg0, %arg1, %c0_i32 : i32, i32, i32
  }
  func.func @transform_1(%arg0: i32, %arg1: i32) -> (i32, i32, i32) {
    %c0_i32 = arith.constant 0 : i32
    %c0_i32_0 = arith.constant 0 : i32
    %c0_i32_1 = arith.constant 0 : i32
    return %arg0, %c0_i32, %c0_i32_0 : i32, i32, i32
  }
  func.func @transform_2(%arg0: i32, %arg1: i32) -> (i32, i32, i32) {
    %c0_i32 = arith.constant 0 : i32
    %c0_i32_0 = arith.constant 0 : i32
    %c0_i32_1 = arith.constant 0 : i32
    return %arg0, %c0_i32, %c0_i32_0 : i32, i32, i32
  }
  func.func @transform_3(%arg0: i32, %arg1: i32) -> (i32, i32) {
    %c0_i32 = arith.constant 0 : i32
    %c0_i32_0 = arith.constant 0 : i32
    %c0_i32_1 = arith.constant 0 : i32
    return %c0_i32, %c0_i32_0 : i32, i32
  }
  func.func @transform_4(%arg0: i32, %arg1: i32) -> (i32, i32) {
    %c0_i32 = arith.constant 0 : i32
    %c0_i32_0 = arith.constant 0 : i32
    %c0_i32_1 = arith.constant 0 : i32
    return %c0_i32, %c0_i32_0 : i32, i32
  }
  func.func @transform_5(%arg0: i32, %arg1: i32) -> (i32, i32) {
    %c0_i32 = arith.constant 0 : i32
    %c0_i32_0 = arith.constant 0 : i32
    %c0_i32_1 = arith.constant 0 : i32
    return %c0_i32, %c0_i32_0 : i32, i32
  }
  func.func @transform_6(%arg0: i32, %arg1: i32) -> (i32, i32) {
    %c0_i32 = arith.constant 0 : i32
    %c0_i32_0 = arith.constant 0 : i32
    %c0_i32_1 = arith.constant 0 : i32
    return %c0_i32, %c0_i32_0 : i32, i32
  }
  func.func @transform_7(%arg0: i32, %arg1: i32) -> (i32, i32) {
    %c0_i32 = arith.constant 0 : i32
    %c0_i32_0 = arith.constant 0 : i32
    %c0_i32_1 = arith.constant 0 : i32
    return %c0_i32, %c0_i32_0 : i32, i32
  }
  func.func @transform_8(%arg0: i32, %arg1: i32) -> (i32, i32) {
    %c0_i32 = arith.constant 0 : i32
    %c0_i32_0 = arith.constant 0 : i32
    %c0_i32_1 = arith.constant 0 : i32
    return %c0_i32, %c0_i32_0 : i32, i32
  }
  func.func @transform_9(%arg0: i32, %arg1: i32) -> (i32, i32) {
    %c0_i32 = arith.constant 0 : i32
    %c0_i32_0 = arith.constant 0 : i32
    %c0_i32_1 = arith.constant 0 : i32
    return %c0_i32, %c0_i32_0 : i32, i32
  }
  func.func @transform_10(%arg0: i32, %arg1: i32) -> (i32, i32) {
    %c0_i32 = arith.constant 0 : i32
    %c0_i32_0 = arith.constant 0 : i32
    %c0_i32_1 = arith.constant 0 : i32
    return %c0_i32, %c0_i32_0 : i32, i32
  }
  func.func @transform_11(%arg0: i32, %arg1: i32) -> (i32, i32) {
    %c0_i32 = arith.constant 0 : i32
    %c0_i32_0 = arith.constant 0 : i32
    %c0_i32_1 = arith.constant 0 : i32
    return %c0_i32, %c0_i32_0 : i32, i32
  }
  func.func @transform_12(%arg0: i32, %arg1: i32) -> (i32, i32) {
    %c0_i32 = arith.constant 0 : i32
    %c0_i32_0 = arith.constant 0 : i32
    %c0_i32_1 = arith.constant 0 : i32
    return %c0_i32, %c0_i32_0 : i32, i32
  }
  func.func @transform_13(%arg0: i32, %arg1: i32) -> (i32, i32) {
    %c0_i32 = arith.constant 0 : i32
    %c0_i32_0 = arith.constant 0 : i32
    %c0_i32_1 = arith.constant 0 : i32
    return %c0_i32, %c0_i32_0 : i32, i32
  }
  func.func @transform_14(%arg0: i32, %arg1: i32) -> (i32, i32) {
    %c0_i32 = arith.constant 0 : i32
    %c0_i32_0 = arith.constant 0 : i32
    %c0_i32_1 = arith.constant 0 : i32
    return %c0_i32, %c0_i32_0 : i32, i32
  }
  func.func @transform_15(%arg0: i32, %arg1: i32) -> (i32, i32) {
    %c0_i32 = arith.constant 0 : i32
    %c0_i32_0 = arith.constant 0 : i32
    %c0_i32_1 = arith.constant 0 : i32
    return %c0_i32, %c0_i32_0 : i32, i32
  }
  func.func @transform_16(%arg0: i32, %arg1: i32) -> (i32, i32) {
    %c0_i32 = arith.constant 0 : i32
    %c0_i32_0 = arith.constant 0 : i32
    %c0_i32_1 = arith.constant 0 : i32
    return %c0_i32, %c0_i32_0 : i32, i32
  }
  func.func @transform_17(%arg0: i32, %arg1: i32) -> (i32, i32, i32) {
    %c0_i32 = arith.constant 0 : i32
    %c0_i32_0 = arith.constant 0 : i32
    return %arg0, %arg1, %c0_i32 : i32, i32, i32
  }
}

</mosaic_0001>

<llo_original>
// kernel: tpu_custom_call.1
$region0: #{tpu_custom_call.1}
  #allocation0 [shape = 'u32[]', space=smem, size = 0x4, offset = 0x4, fixed_abs, tag = 'smem constant byte address 0x4 - core index']
  #allocation1 [shape = 'u32[72,128]{1,0:T(1,128)}', space=vmem, size = 0x9000, scoped, tag = 'internal scratch']
  %s0 = inlined_call_operand.hbm [shape: f32[2,128,128], index: 0, kind: input, shape index: {}]
  %s1 = inlined_call_operand.hbm [shape: f32[2,128,128], index: 1, kind: input, shape index: {}]
  %s2 = inlined_call_operand.hbm [shape: f32[2,1,128], index: 2, kind: input, shape index: {}]
  %s3 = inlined_call_operand.hbm [shape: bf16[128,128], index: 3, kind: input, shape index: {}]
  %s4 = inlined_call_operand.vmem [shape: f32[1,128], index: 4, kind: input, shape index: {}]
  %s5 = inlined_call_operand.hbm [shape: bf16[128,256], index: 5, kind: input, shape index: {}]
  %s6 = inlined_call_operand.vmem [shape: f32[1,256], index: 6, kind: input, shape index: {}]
  %s7 = inlined_call_operand.hbm [shape: bf16[128,128], index: 7, kind: input, shape index: {}]
  %s8 = inlined_call_operand.hbm [shape: f32[1,128], index: 8, kind: input, shape index: {}]
  %s9 = inlined_call_operand.vmem [shape: f32[1,128], index: 9, kind: input, shape index: {}]
  %s10 = inlined_call_operand.vmem [shape: f32[1,128], index: 10, kind: input, shape index: {}]
  %s11 = inlined_call_operand.hbm [shape: bf16[128,512], index: 11, kind: input, shape index: {}]
  %s12 = inlined_call_operand.vmem [shape: f32[1,512], index: 12, kind: input, shape index: {}]
  %s13 = inlined_call_operand.hbm [shape: bf16[512,128], index: 13, kind: input, shape index: {}]
  %s14 = inlined_call_operand.vmem [shape: f32[1,128], index: 14, kind: input, shape index: {}]
  %s15 = inlined_call_operand.vmem [shape: f32[1,128], index: 15, kind: input, shape index: {}]
  %s16 = inlined_call_operand.vmem [shape: f32[1,128], index: 16, kind: input, shape index: {}]
  %s17 = inlined_call_operand.hbm [shape: f32[2,128,128], index: 17, kind: output, shape index: {}]
  %s18 = sld [smem:[#allocation0]]
  $region137: #{tpu_custom_call.1} parent=0
    _
  %s20 = ssub.s32 1, %s18
  %s21 = scalar_select 0, %s20, %s18
  $region1: #{tpu_custom_call.1} parent=0
    #allocation2 [shape = 'u8[131072]{0}', space=vmem, size = 0x20000, scoped, tag = 'input window, operand 0']
    #allocation3 [shape = 's32[2]{0}', space=sflag, size = 0x8, scoped, tag = 'scoped memory for tpu_custom_call.1']
    #allocation4 [shape = 's32[2]{0}', space=sflag, size = 0x8, scoped, tag = 'scoped memory for tpu_custom_call.1']
    #allocation5 [shape = 'u8[131072]{0}', space=vmem, size = 0x20000, scoped, tag = 'input window, operand 1']
    #allocation6 [shape = 's32[2]{0}', space=sflag, size = 0x8, scoped, tag = 'scoped memory for tpu_custom_call.1']
    #allocation7 [shape = 'u8[1024]{0}', space=vmem, size = 0x400, scoped, tag = 'input window, operand 2']
    #allocation8 [shape = 'u8[32768]{0}', space=vmem, size = 0x8000, scoped, tag = 'input window, operand 3, single buffered']
    #allocation9 [shape = 's32[1]{0}', space=sflag, size = 0x4, scoped, tag = 'scoped memory for tpu_custom_call.1']
    #allocation10 [shape = 'u8[65536]{0}', space=vmem, size = 0x10000, scoped, tag = 'input window, operand 5, single buffered']
    #allocation11 [shape = 'u8[32768]{0}', space=vmem, size = 0x8000, scoped, tag = 'input window, operand 7, single buffered']
    #allocation12 [shape = 's32[1]{0}', space=sflag, size = 0x4, scoped, tag = 'scoped memory for tpu_custom_call.1']
    #allocation13 [shape = 'u8[512]{0}', space=vmem, size = 0x400, scoped, tag = 'input window, operand 8, single buffered']
    #allocation14 [shape = 'u8[131072]{0}', space=vmem, size = 0x20000, scoped, tag = 'input window, operand 11, single buffered']
    #allocation15 [shape = 's32[1]{0}', space=sflag, size = 0x4, scoped, tag = 'scoped memory for tpu_custom_call.1']
    #allocation16 [shape = 'u8[131072]{0}', space=vmem, size = 0x20000, scoped, tag = 'input window, operand 13, single buffered']
    #allocation17 [shape = 'u8[131072]{0}', space=vmem, size = 0x20000, scoped, tag = 'output window, operand 0']
    %22 = vsyncpa [#allocation3], 0
    %s23 = scalar_lea.sflag [#allocation3], 1
    %24 = vsyncpa %s23, 0
    %25 = vsyncpa [#allocation6], 0
    %s26 = scalar_lea.sflag [#allocation6], 1
    %27 = vsyncpa %s26, 0
    %28 = vsyncpa [#allocation9], 0
    %29 = vsyncpa [#allocation12], 0
    %30 = vsyncpa [#allocation15], 0
    %31 = vsyncpa [#allocation4], 0
    %s32 = scalar_lea.sflag [#allocation4], 1
    %33 = vsyncpa %s32, 0
    loop: start=0, step=1, limit=4
    $region2: #{tpu_custom_call.1} parent=1 // loop_pre_header
      _
    $region3: #{tpu_custom_call.1} parent=1 // loop_header
      %s35 = sphi 0, %s39
      %p36 = scmp.ge.s32.totalorder %s35, 4
      %s42 = sphi 0, %s54
      %s43 = sphi 0, %s50
      %s44 = sphi 0, %s42
      %s45 = sphi 0, %s43
      %s46 = sphi 0, %s44
      %s47 = sphi 0, %s45
      %s59 = sphi 0, %s61
      %s62 = sphi 0, %s59
      %s63 = sphi 0, %s62
      %s79 = sphi 0, %s63
      %s85 = sphi 0, %s87
      %s88 = sphi 0, %s85
      %s89 = sphi 0, %s88
      %s105 = sphi 0, %s89
      %s111 = sphi 0, %s113
      %s114 = sphi 0, %s111
      %s115 = sphi 0, %s114
      %s131 = sphi 0, %s115
      %s135 = sphi 0, %s135
      %s137 = sphi 0, %s135
      %s138 = sphi 0, %s137
      %s152 = sphi 0, %s138
      %s156 = sphi 0, %s156
      %s158 = sphi 0, %s156
      %s159 = sphi 0, %s158
      %s173 = sphi 0, %s159
      %s177 = sphi 0, %s177
      %s179 = sphi 0, %s177
      %s180 = sphi 0, %s179
      %s194 = sphi 0, %s180
      %s198 = sphi 0, %s198
      %s200 = sphi 0, %s198
      %s201 = sphi 0, %s200
      %s215 = sphi 0, %s201
      %s219 = sphi 0, %s219
      %s221 = sphi 0, %s219
      %s222 = sphi 0, %s221
      %s236 = sphi 0, %s222
      %s240 = sphi 0, %s240
      %s242 = sphi 0, %s240
      %s243 = sphi 0, %s242
      %s257 = sphi 0, %s243
      %s261 = sphi 0, %s261
      %s263 = sphi 0, %s261
      %s264 = sphi 0, %s263
      %s278 = sphi 0, %s264
      %s282 = sphi 0, %s282
      %s284 = sphi 0, %s282
      %s285 = sphi 0, %s284
      %s299 = sphi 0, %s285
      %s303 = sphi 0, %s303
      %s305 = sphi 0, %s303
      %s306 = sphi 0, %s305
      %s320 = sphi 0, %s306
      %s324 = sphi 0, %s324
      %s326 = sphi 0, %s324
      %s327 = sphi 0, %s326
      %s341 = sphi 0, %s327
      %s345 = sphi 0, %s345
      %s347 = sphi 0, %s345
      %s348 = sphi 0, %s347
      %s362 = sphi 0, %s348
      %s366 = sphi 0, %s366
      %s368 = sphi 0, %s366
      %s369 = sphi 0, %s368
      %s383 = sphi 0, %s369
      %s387 = sphi 0, %s387
      %s389 = sphi 0, %s387
      %s390 = sphi 0, %s389
      %s404 = sphi 0, %s390
      %s408 = sphi 0, %s408
      %s410 = sphi 0, %s408
      %s411 = sphi 0, %s410
      %s425 = sphi 0, %s411
      %s433 = sphi 0, %s435
      %s436 = sphi 0, %s433
      %s437 = sphi 0, %s436
      %s453 = sphi 0, %s437
    $region4: #{tpu_custom_call.1} parent=1 // loop_header_branch
      %38 = sbr.rel (%p36) target = $region8
    $region5: #{tpu_custom_call.1} parent=1 // loop_body
      %s40 = ssub.s32 %s35, 1
      %s41 = ssub.s32 %s35, 2
      %s48 = sadd.s32 1, %s43
      %p49 = scmp.ge.s32.totalorder %s48, 1
      %s50 = scalar_select %p49, 0, %s48
      %s51 = sadd.s32 1, %s42
      %s52 = scalar_select %p49, %s51, %s42
      %p53 = scmp.ge.s32.totalorder %s52, 2
      %s54 = scalar_select %p53, 0, %s52
      %s55 = ssub.s32 %s42, %s54
      %s56 = ssub.s32 %s43, %s50
      %s57 = sor.u32 %s55, %s56
      %p58 = scmp.eq.s32.totalorder %s57, 0
      %s60 = sadd.s32 %s59, 1
      %s61 = scalar_select %p58, %s59, %s60
      %p64 = pneg %p58
      %p65 = scmp.eq.s32.totalorder %s35, 1
      %p66 = por %p64, %p65
      %p67 = scmp.ne.s32.totalorder %s59, %s62
      %p68 = scmp.eq.s32.totalorder %s35, 0
      %p69 = por %p67, %p68
      %p70 = scmp.ne.s32.totalorder %s59, %s62
      %p71 = scmp.eq.s32.totalorder %s40, 1
      %p72 = por %p70, %p71
      %p73 = scmp.ne.s32.totalorder %s62, %s63
      %p74 = scmp.eq.s32.totalorder %s40, 0
      %p75 = por %p73, %p74
      %p76 = scmp.ne.s32.totalorder %s62, %s63
      %p77 = scmp.eq.s32.totalorder %s41, 1
      %p78 = por %p76, %p77
      %p80 = scmp.ne.s32.totalorder %s63, %s79
      %p81 = scmp.eq.s32.totalorder %s41, 0
      %p82 = por %p80, %p81
      %s83 = ssub.s32 %s42, %s54
      %p84 = scmp.eq.s32.totalorder %s83, 0
      %s86 = sadd.s32 %s85, 1
      %s87 = scalar_select %p84, %s85, %s86
      %p90 = pneg %p84
      %p91 = scmp.eq.s32.totalorder %s35, 1
      %p92 = por %p90, %p91
      %p93 = scmp.ne.s32.totalorder %s85, %s88
      %p94 = scmp.eq.s32.totalorder %s35, 0
      %p95 = por %p93, %p94
      %p96 = scmp.ne.s32.totalorder %s85, %s88
      %p97 = scmp.eq.s32.totalorder %s40, 1
      %p98 = por %p96, %p97
      %p99 = scmp.ne.s32.totalorder %s88, %s89
      %p100 = scmp.eq.s32.totalorder %s40, 0
      %p101 = por %p99, %p100
      %p102 = scmp.ne.s32.totalorder %s88, %s89
      %p103 = scmp.eq.s32.totalorder %s41, 1
      %p104 = por %p102, %p103
      %p106 = scmp.ne.s32.totalorder %s89, %s105
      %p107 = scmp.eq.s32.totalorder %s41, 0
      %p108 = por %p106, %p107
      %s109 = ssub.s32 %s42, %s54
      %p110 = scmp.eq.s32.totalorder %s109, 0
      %s112 = sadd.s32 %s111, 1
      %s113 = scalar_select %p110, %s111, %s112
      %p116 = pneg %p110
      %p117 = scmp.eq.s32.totalorder %s35, 1
      %p118 = por %p116, %p117
      %p119 = scmp.ne.s32.totalorder %s111, %s114
      %p120 = scmp.eq.s32.totalorder %s35, 0
      %p121 = por %p119, %p120
      %p122 = scmp.ne.s32.totalorder %s111, %s114
      %p123 = scmp.eq.s32.totalorder %s40, 1
      %p124 = por %p122, %p123
      %p125 = scmp.ne.s32.totalorder %s114, %s115
      %p126 = scmp.eq.s32.totalorder %s40, 0
      %p127 = por %p125, %p126
      %p128 = scmp.ne.s32.totalorder %s114, %s115
      %p129 = scmp.eq.s32.totalorder %s41, 1
      %p130 = por %p128, %p129
      %p132 = scmp.ne.s32.totalorder %s115, %s131
      %p133 = scmp.eq.s32.totalorder %s41, 0
      %p134 = por %p132, %p133
      %s136 = sadd.s32 %s135, 1
      %p139 = scmp.eq.s32.totalorder %s35, 1
      %p140 = scmp.ne.s32.totalorder %s135, %s137
      %p141 = scmp.eq.s32.totalorder %s35, 0
      %p142 = por %p140, %p141
      %p143 = scmp.ne.s32.totalorder %s135, %s137
      %p144 = scmp.eq.s32.totalorder %s40, 1
      %p145 = por %p143, %p144
      %p146 = scmp.ne.s32.totalorder %s137, %s138
      %p147 = scmp.eq.s32.totalorder %s40, 0
      %p148 = por %p146, %p147
      %p149 = scmp.ne.s32.totalorder %s137, %s138
      %p150 = scmp.eq.s32.totalorder %s41, 1
      %p151 = por %p149, %p150
      %p153 = scmp.ne.s32.totalorder %s138, %s152
      %p154 = scmp.eq.s32.totalorder %s41, 0
      %p155 = por %p153, %p154
      %s157 = sadd.s32 %s156, 1
      %p160 = scmp.eq.s32.totalorder %s35, 1
      %p161 = scmp.ne.s32.totalorder %s156, %s158
      %p162 = scmp.eq.s32.totalorder %s35, 0
      %p163 = por %p161, %p162
      %p164 = scmp.ne.s32.totalorder %s156, %s158
      %p165 = scmp.eq.s32.totalorder %s40, 1
      %p166 = por %p164, %p165
      %p167 = scmp.ne.s32.totalorder %s158, %s159
      %p168 = scmp.eq.s32.totalorder %s40, 0
      %p169 = por %p167, %p168
      %p170 = scmp.ne.s32.totalorder %s158, %s159
      %p171 = scmp.eq.s32.totalorder %s41, 1
      %p172 = por %p170, %p171
      %p174 = scmp.ne.s32.totalorder %s159, %s173
      %p175 = scmp.eq.s32.totalorder %s41, 0
      %p176 = por %p174, %p175
      %s178 = sadd.s32 %s177, 1
      %p181 = scmp.eq.s32.totalorder %s35, 1
      %p182 = scmp.ne.s32.totalorder %s177, %s179
      %p183 = scmp.eq.s32.totalorder %s35, 0
      %p184 = por %p182, %p183
      %p185 = scmp.ne.s32.totalorder %s177, %s179
      %p186 = scmp.eq.s32.totalorder %s40, 1
      %p187 = por %p185, %p186
      %p188 = scmp.ne.s32.totalorder %s179, %s180
      %p189 = scmp.eq.s32.totalorder %s40, 0
      %p190 = por %p188, %p189
      %p191 = scmp.ne.s32.totalorder %s179, %s180
      %p192 = scmp.eq.s32.totalorder %s41, 1
      %p193 = por %p191, %p192
      %p195 = scmp.ne.s32.totalorder %s180, %s194
      %p196 = scmp.eq.s32.totalorder %s41, 0
      %p197 = por %p195, %p196
      %s199 = sadd.s32 %s198, 1
      %p202 = scmp.eq.s32.totalorder %s35, 1
      %p203 = scmp.ne.s32.totalorder %s198, %s200
      %p204 = scmp.eq.s32.totalorder %s35, 0
      %p205 = por %p203, %p204
      %p206 = scmp.ne.s32.totalorder %s198, %s200
      %p207 = scmp.eq.s32.totalorder %s40, 1
      %p208 = por %p206, %p207
      %p209 = scmp.ne.s32.totalorder %s200, %s201
      %p210 = scmp.eq.s32.totalorder %s40, 0
      %p211 = por %p209, %p210
      %p212 = scmp.ne.s32.totalorder %s200, %s201
      %p213 = scmp.eq.s32.totalorder %s41, 1
      %p214 = por %p212, %p213
      %p216 = scmp.ne.s32.totalorder %s201, %s215
      %p217 = scmp.eq.s32.totalorder %s41, 0
      %p218 = por %p216, %p217
      %s220 = sadd.s32 %s219, 1
      %p223 = scmp.eq.s32.totalorder %s35, 1
      %p224 = scmp.ne.s32.totalorder %s219, %s221
      %p225 = scmp.eq.s32.totalorder %s35, 0
      %p226 = por %p224, %p225
      %p227 = scmp.ne.s32.totalorder %s219, %s221
      %p228 = scmp.eq.s32.totalorder %s40, 1
      %p229 = por %p227, %p228
      %p230 = scmp.ne.s32.totalorder %s221, %s222
      %p231 = scmp.eq.s32.totalorder %s40, 0
      %p232 = por %p230, %p231
      %p233 = scmp.ne.s32.totalorder %s221, %s222
      %p234 = scmp.eq.s32.totalorder %s41, 1
      %p235 = por %p233, %p234
      %p237 = scmp.ne.s32.totalorder %s222, %s236
      %p238 = scmp.eq.s32.totalorder %s41, 0
      %p239 = por %p237, %p238
      %s241 = sadd.s32 %s240, 1
      %p244 = scmp.eq.s32.totalorder %s35, 1
      %p245 = scmp.ne.s32.totalorder %s240, %s242
      %p246 = scmp.eq.s32.totalorder %s35, 0
      %p247 = por %p245, %p246
      %p248 = scmp.ne.s32.totalorder %s240, %s242
      %p249 = scmp.eq.s32.totalorder %s40, 1
      %p250 = por %p248, %p249
      %p251 = scmp.ne.s32.totalorder %s242, %s243
      %p252 = scmp.eq.s32.totalorder %s40, 0
      %p253 = por %p251, %p252
      %p254 = scmp.ne.s32.totalorder %s242, %s243
      %p255 = scmp.eq.s32.totalorder %s41, 1
      %p256 = por %p254, %p255
      %p258 = scmp.ne.s32.totalorder %s243, %s257
      %p259 = scmp.eq.s32.totalorder %s41, 0
      %p260 = por %p258, %p259
      %s262 = sadd.s32 %s261, 1
      %p265 = scmp.eq.s32.totalorder %s35, 1
      %p266 = scmp.ne.s32.totalorder %s261, %s263
      %p267 = scmp.eq.s32.totalorder %s35, 0
      %p268 = por %p266, %p267
      %p269 = scmp.ne.s32.totalorder %s261, %s263
      %p270 = scmp.eq.s32.totalorder %s40, 1
      %p271 = por %p269, %p270
      %p272 = scmp.ne.s32.totalorder %s263, %s264
      %p273 = scmp.eq.s32.totalorder %s40, 0
      %p274 = por %p272, %p273
      %p275 = scmp.ne.s32.totalorder %s263, %s264
      %p276 = scmp.eq.s32.totalorder %s41, 1
      %p277 = por %p275, %p276
      %p279 = scmp.ne.s32.totalorder %s264, %s278
      %p280 = scmp.eq.s32.totalorder %s41, 0
      %p281 = por %p279, %p280
      %s283 = sadd.s32 %s282, 1
      %p286 = scmp.eq.s32.totalorder %s35, 1
      %p287 = scmp.ne.s32.totalorder %s282, %s284
      %p288 = scmp.eq.s32.totalorder %s35, 0
      %p289 = por %p287, %p288
      %p290 = scmp.ne.s32.totalorder %s282, %s284
      %p291 = scmp.eq.s32.totalorder %s40, 1
      %p292 = por %p290, %p291
      %p293 = scmp.ne.s32.totalorder %s284, %s285
      %p294 = scmp.eq.s32.totalorder %s40, 0
      %p295 = por %p293, %p294
      %p296 = scmp.ne.s32.totalorder %s284, %s285
      %p297 = scmp.eq.s32.totalorder %s41, 1
      %p298 = por %p296, %p297
      %p300 = scmp.ne.s32.totalorder %s285, %s299
      %p301 = scmp.eq.s32.totalorder %s41, 0
      %p302 = por %p300, %p301
      %s304 = sadd.s32 %s303, 1
      %p307 = scmp.eq.s32.totalorder %s35, 1
      %p308 = scmp.ne.s32.totalorder %s303, %s305
      %p309 = scmp.eq.s32.totalorder %s35, 0
      %p310 = por %p308, %p309
      %p311 = scmp.ne.s32.totalorder %s303, %s305
      %p312 = scmp.eq.s32.totalorder %s40, 1
      %p313 = por %p311, %p312
      %p314 = scmp.ne.s32.totalorder %s305, %s306
      %p315 = scmp.eq.s32.totalorder %s40, 0
      %p316 = por %p314, %p315
      %p317 = scmp.ne.s32.totalorder %s305, %s306
      %p318 = scmp.eq.s32.totalorder %s41, 1
      %p319 = por %p317, %p318
      %p321 = scmp.ne.s32.totalorder %s306, %s320
      %p322 = scmp.eq.s32.totalorder %s41, 0
      %p323 = por %p321, %p322
      %s325 = sadd.s32 %s324, 1
      %p328 = scmp.eq.s32.totalorder %s35, 1
      %p329 = scmp.ne.s32.totalorder %s324, %s326
      %p330 = scmp.eq.s32.totalorder %s35, 0
      %p331 = por %p329, %p330
      %p332 = scmp.ne.s32.totalorder %s324, %s326
      %p333 = scmp.eq.s32.totalorder %s40, 1
      %p334 = por %p332, %p333
      %p335 = scmp.ne.s32.totalorder %s326, %s327
      %p336 = scmp.eq.s32.totalorder %s40, 0
      %p337 = por %p335, %p336
      %p338 = scmp.ne.s32.totalorder %s326, %s327
      %p339 = scmp.eq.s32.totalorder %s41, 1
      %p340 = por %p338, %p339
      %p342 = scmp.ne.s32.totalorder %s327, %s341
      %p343 = scmp.eq.s32.totalorder %s41, 0
      %p344 = por %p342, %p343
      %s346 = sadd.s32 %s345, 1
      %p349 = scmp.eq.s32.totalorder %s35, 1
      %p350 = scmp.ne.s32.totalorder %s345, %s347
      %p351 = scmp.eq.s32.totalorder %s35, 0
      %p352 = por %p350, %p351
      %p353 = scmp.ne.s32.totalorder %s345, %s347
      %p354 = scmp.eq.s32.totalorder %s40, 1
      %p355 = por %p353, %p354
      %p356 = scmp.ne.s32.totalorder %s347, %s348
      %p357 = scmp.eq.s32.totalorder %s40, 0
      %p358 = por %p356, %p357
      %p359 = scmp.ne.s32.totalorder %s347, %s348
      %p360 = scmp.eq.s32.totalorder %s41, 1
      %p361 = por %p359, %p360
      %p363 = scmp.ne.s32.totalorder %s348, %s362
      %p364 = scmp.eq.s32.totalorder %s41, 0
      %p365 = por %p363, %p364
      %s367 = sadd.s32 %s366, 1
      %p370 = scmp.eq.s32.totalorder %s35, 1
      %p371 = scmp.ne.s32.totalorder %s366, %s368
      %p372 = scmp.eq.s32.totalorder %s35, 0
      %p373 = por %p371, %p372
      %p374 = scmp.ne.s32.totalorder %s366, %s368
      %p375 = scmp.eq.s32.totalorder %s40, 1
      %p376 = por %p374, %p375
      %p377 = scmp.ne.s32.totalorder %s368, %s369
      %p378 = scmp.eq.s32.totalorder %s40, 0
      %p379 = por %p377, %p378
      %p380 = scmp.ne.s32.totalorder %s368, %s369
      %p381 = scmp.eq.s32.totalorder %s41, 1
      %p382 = por %p380, %p381
      %p384 = scmp.ne.s32.totalorder %s369, %s383
      %p385 = scmp.eq.s32.totalorder %s41, 0
      %p386 = por %p384, %p385
      %s388 = sadd.s32 %s387, 1
      %p391 = scmp.eq.s32.totalorder %s35, 1
      %p392 = scmp.ne.s32.totalorder %s387, %s389
      %p393 = scmp.eq.s32.totalorder %s35, 0
      %p394 = por %p392, %p393
      %p395 = scmp.ne.s32.totalorder %s387, %s389
      %p396 = scmp.eq.s32.totalorder %s40, 1
      %p397 = por %p395, %p396
      %p398 = scmp.ne.s32.totalorder %s389, %s390
      %p399 = scmp.eq.s32.totalorder %s40, 0
      %p400 = por %p398, %p399
      %p401 = scmp.ne.s32.totalorder %s389, %s390
      %p402 = scmp.eq.s32.totalorder %s41, 1
      %p403 = por %p401, %p402
      %p405 = scmp.ne.s32.totalorder %s390, %s404
      %p406 = scmp.eq.s32.totalorder %s41, 0
      %p407 = por %p405, %p406
      %s409 = sadd.s32 %s408, 1
      %p412 = scmp.eq.s32.totalorder %s35, 1
      %p413 = scmp.ne.s32.totalorder %s408, %s410
      %p414 = scmp.eq.s32.totalorder %s35, 0
      %p415 = por %p413, %p414
      %p416 = scmp.ne.s32.totalorder %s408, %s410
      %p417 = scmp.eq.s32.totalorder %s40, 1
      %p418 = por %p416, %p417
      %p419 = scmp.ne.s32.totalorder %s410, %s411
      %p420 = scmp.eq.s32.totalorder %s40, 0
      %p421 = por %p419, %p420
      %p422 = scmp.ne.s32.totalorder %s410, %s411
      %p423 = scmp.eq.s32.totalorder %s41, 1
      %p424 = por %p422, %p423
      %p426 = scmp.ne.s32.totalorder %s411, %s425
      %p427 = scmp.eq.s32.totalorder %s41, 0
      %p428 = por %p426, %p427
      %s429 = ssub.s32 %s42, %s54
      %s430 = ssub.s32 %s43, %s50
      %s431 = sor.u32 %s429, %s430
      %p432 = scmp.eq.s32.totalorder %s431, 0
      %s434 = sadd.s32 %s433, 1
      %s435 = scalar_select %p432, %s433, %s434
      %p438 = pneg %p432
      %p439 = scmp.eq.s32.totalorder %s35, 1
      %p440 = por %p438, %p439
      %p441 = scmp.ne.s32.totalorder %s433, %s436
      %p442 = scmp.eq.s32.totalorder %s35, 0
      %p443 = por %p441, %p442
      %p444 = scmp.ne.s32.totalorder %s433, %s436
      %p445 = scmp.eq.s32.totalorder %s40, 1
      %p446 = por %p444, %p445
      %p447 = scmp.ne.s32.totalorder %s436, %s437
      %p448 = scmp.eq.s32.totalorder %s40, 0
      %p449 = por %p447, %p448
      %p450 = scmp.ne.s32.totalorder %s436, %s437
      %p451 = scmp.eq.s32.totalorder %s41, 1
      %p452 = por %p450, %p451
      %p454 = scmp.ne.s32.totalorder %s437, %s453
      %p455 = scmp.eq.s32.totalorder %s41, 0
      %p456 = por %p454, %p455
      %p457 = scmp.le.s32.totalorder 1, %s35
      %p458 = scmp.lt.s32.totalorder %s35, 3
      %p459 = pnand %p457, %p458
      %p460 = pneg %p459
      // Predicated region
      $region9: #{tpu_custom_call.1} parent=5 // pred_check
        _
      $region10: #{tpu_custom_call.1} parent=5 // pred_check_branch
        %462 = sbr.rel (%p459) target = $region12
      $region11: #{tpu_custom_call.1} parent=5 // pred_region
        %s463 = ssub.s32 %s35, 1
        // Predicated region
        $region13: #{tpu_custom_call.1} parent=11 // pred_check
          %p464 = pneg %p148
        $region14: #{tpu_custom_call.1} parent=11 // pred_check_branch
          %466 = sbr.rel (%p464) target = $region16
        $region15: #{tpu_custom_call.1} parent=11 // pred_region
          %468 = vsyncadd [#allocation9], 0
          %s469 = sshll.u32 %s3, 4
          %s470 = int_to_ptr.hbm [resolvable:$true] %s469
          %s471 = sshll.u32 [#allocation8], 4
          %s472 = int_to_ptr.vmem [resolvable:$true] %s471
          %477 = dma.hbm_to_vmem [thread:$0]  %s470, 1024, %s472, [#allocation9], 64, 64, 4
        $region16: #{tpu_custom_call.1} parent=11 // pred_fallthru
          _
        // Predicated region
        $region17: #{tpu_custom_call.1} parent=11 // pred_check
          %p478 = pneg %p169
        $region18: #{tpu_custom_call.1} parent=11 // pred_check_branch
          %480 = sbr.rel (%p478) target = $region20
        $region19: #{tpu_custom_call.1} parent=11 // pred_region
          _
        $region20: #{tpu_custom_call.1} parent=11 // pred_fallthru
          _
        // Predicated region
        $region21: #{tpu_custom_call.1} parent=11 // pred_check
          %p481 = pneg %p190
        $region22: #{tpu_custom_call.1} parent=11 // pred_check_branch
          %483 = sbr.rel (%p481) target = $region24
        $region23: #{tpu_custom_call.1} parent=11 // pred_region
          %485 = vsyncadd [#allocation9], 0
          %s486 = sshll.u32 %s5, 4
          %s487 = int_to_ptr.hbm [resolvable:$true] %s486
          %s488 = sshll.u32 [#allocation10], 4
          %s489 = int_to_ptr.vmem [resolvable:$true] %s488
          %494 = dma.hbm_to_vmem [thread:$0]  %s487, 2048, %s489, [#allocation9], 128, 128, 8
        $region24: #{tpu_custom_call.1} parent=11 // pred_fallthru
          _
        // Predicated region
        $region25: #{tpu_custom_call.1} parent=11 // pred_check
          %p495 = pneg %p211
        $region26: #{tpu_custom_call.1} parent=11 // pred_check_branch
          %497 = sbr.rel (%p495) target = $region28
        $region27: #{tpu_custom_call.1} parent=11 // pred_region
          _
        $region28: #{tpu_custom_call.1} parent=11 // pred_fallthru
          _
        // Predicated region
        $region29: #{tpu_custom_call.1} parent=11 // pred_check
          %p498 = pneg %p232
        $region30: #{tpu_custom_call.1} parent=11 // pred_check_branch
          %500 = sbr.rel (%p498) target = $region32
        $region31: #{tpu_custom_call.1} parent=11 // pred_region
          %502 = vsyncadd [#allocation12], 0
          %s503 = sshll.u32 %s7, 4
          %s504 = int_to_ptr.hbm [resolvable:$true] %s503
          %s505 = sshll.u32 [#allocation11], 4
          %s506 = int_to_ptr.vmem [resolvable:$true] %s505
          %511 = dma.hbm_to_vmem [thread:$0]  %s504, 1024, %s506, [#allocation12], 64, 64, 4
        $region32: #{tpu_custom_call.1} parent=11 // pred_fallthru
          _
        // Predicated region
        $region33: #{tpu_custom_call.1} parent=11 // pred_check
          %p512 = pneg %p253
        $region34: #{tpu_custom_call.1} parent=11 // pred_check_branch
          %514 = sbr.rel (%p512) target = $region36
        $region35: #{tpu_custom_call.1} parent=11 // pred_region
          %516 = vsyncadd [#allocation12], 0
          %s518 = sshll.u32 %s8, 4
          %s519 = int_to_ptr.hbm [resolvable:$true] %s518
          %s520 = sshll.u32 [#allocation13], 4
          %s521 = int_to_ptr.vmem [resolvable:$true] %s520
          %523 = dma.hbm_to_vmem [thread:$0]  %s519, 16, %s521, [#allocation12]
        $region36: #{tpu_custom_call.1} parent=11 // pred_fallthru
          _
        // Predicated region
        $region37: #{tpu_custom_call.1} parent=11 // pred_check
          %p524 = pneg %p274
        $region38: #{tpu_custom_call.1} parent=11 // pred_check_branch
          %526 = sbr.rel (%p524) target = $region40
        $region39: #{tpu_custom_call.1} parent=11 // pred_region
          _
        $region40: #{tpu_custom_call.1} parent=11 // pred_fallthru
          _
        // Predicated region
        $region41: #{tpu_custom_call.1} parent=11 // pred_check
          %p527 = pneg %p295
        $region42: #{tpu_custom_call.1} parent=11 // pred_check_branch
          %529 = sbr.rel (%p527) target = $region44
        $region43: #{tpu_custom_call.1} parent=11 // pred_region
          _
        $region44: #{tpu_custom_call.1} parent=11 // pred_fallthru
          _
        // Predicated region
        $region45: #{tpu_custom_call.1} parent=11 // pred_check
          %p530 = pneg %p316
        $region46: #{tpu_custom_call.1} parent=11 // pred_check_branch
          %532 = sbr.rel (%p530) target = $region48
        $region47: #{tpu_custom_call.1} parent=11 // pred_region
          %534 = vsyncadd [#allocation15], 0
          %s535 = sshll.u32 %s11, 4
          %s536 = int_to_ptr.hbm [resolvable:$true] %s535
          %s537 = sshll.u32 [#allocation14], 4
          %s538 = int_to_ptr.vmem [resolvable:$true] %s537
          %543 = dma.hbm_to_vmem [thread:$0]  %s536, 4096, %s538, [#allocation15], 256, 256, 16
        $region48: #{tpu_custom_call.1} parent=11 // pred_fallthru
          _
        // Predicated region
        $region49: #{tpu_custom_call.1} parent=11 // pred_check
          %p544 = pneg %p337
        $region50: #{tpu_custom_call.1} parent=11 // pred_check_branch
          %546 = sbr.rel (%p544) target = $region52
        $region51: #{tpu_custom_call.1} parent=11 // pred_region
          _
        $region52: #{tpu_custom_call.1} parent=11 // pred_fallthru
          _
        // Predicated region
        $region53: #{tpu_custom_call.1} parent=11 // pred_check
          %p547 = pneg %p358
        $region54: #{tpu_custom_call.1} parent=11 // pred_check_branch
          %549 = sbr.rel (%p547) target = $region56
        $region55: #{tpu_custom_call.1} parent=11 // pred_region
          %551 = vsyncadd [#allocation15], 0
          %s552 = sshll.u32 %s13, 4
          %s553 = int_to_ptr.hbm [resolvable:$true] %s552
          %s554 = sshll.u32 [#allocation16], 4
          %s555 = int_to_ptr.vmem [resolvable:$true] %s554
          %560 = dma.hbm_to_vmem [thread:$0]  %s553, 4096, %s555, [#allocation15], 64, 64, 4
        $region56: #{tpu_custom_call.1} parent=11 // pred_fallthru
          _
        // Predicated region
        $region57: #{tpu_custom_call.1} parent=11 // pred_check
          %p561 = pneg %p379
        $region58: #{tpu_custom_call.1} parent=11 // pred_check_branch
          %563 = sbr.rel (%p561) target = $region60
        $region59: #{tpu_custom_call.1} parent=11 // pred_region
          _
        $region60: #{tpu_custom_call.1} parent=11 // pred_fallthru
          _
        // Predicated region
        $region61: #{tpu_custom_call.1} parent=11 // pred_check
          %p564 = pneg %p400
        $region62: #{tpu_custom_call.1} parent=11 // pred_check_branch
          %566 = sbr.rel (%p564) target = $region64
        $region63: #{tpu_custom_call.1} parent=11 // pred_region
          _
        $region64: #{tpu_custom_call.1} parent=11 // pred_fallthru
          _
        // Predicated region
        $region65: #{tpu_custom_call.1} parent=11 // pred_check
          %p567 = pneg %p421
        $region66: #{tpu_custom_call.1} parent=11 // pred_check_branch
          %569 = sbr.rel (%p567) target = $region68
        $region67: #{tpu_custom_call.1} parent=11 // pred_region
          _
        $region68: #{tpu_custom_call.1} parent=11 // pred_fallthru
          _
      $region12: #{tpu_custom_call.1} parent=5 // pred_fallthru
        _
      %p570 = scmp.lt.s32.totalorder %s35, 2
      // Predicated region
      $region69: #{tpu_custom_call.1} parent=5 // pred_check
        %p571 = pneg %p570
      $region70: #{tpu_custom_call.1} parent=5 // pred_check_branch
        %573 = sbr.rel (%p571) target = $region72
      $region71: #{tpu_custom_call.1} parent=5 // pred_region
        // Predicated region
        $region73: #{tpu_custom_call.1} parent=71 // pred_check
          %p574 = pneg %p69
        $region74: #{tpu_custom_call.1} parent=71 // pred_check_branch
          %576 = sbr.rel (%p574) target = $region76
        $region75: #{tpu_custom_call.1} parent=71 // pred_region
          %s577 = sand.u32 %s59, 1
          %s578 = scalar_lea.sflag [#allocation3], %s577
          %s579 = sand.u32 %s59, 1
          %s580 = smul.addr %s579, 128
          %s581 = scalar_lea.vmem [#allocation2], %s580
          %s582 = smul.u32 16, %s43
          %584 = vsyncadd %s578, 0
          %s585 = smul.addr %s42, 16
          %s586 = sadd.s32 %s582, %s585
          %s587 = smul.addr %s586, 8
          %s588 = scalar_lea.hbm %s0, %s587
          %s589 = sshll.u32 %s588, 4
          %s590 = int_to_ptr.hbm [resolvable:$true] %s589
          %s591 = sshll.u32 %s581, 4
          %s592 = int_to_ptr.vmem [resolvable:$true] %s591
          %597 = dma.hbm_to_vmem [thread:$0]  %s590, 2048, %s592, %s578, 128, 128, 8
        $region76: #{tpu_custom_call.1} parent=71 // pred_fallthru
          _
        // Predicated region
        $region77: #{tpu_custom_call.1} parent=71 // pred_check
          %p598 = pneg %p95
        $region78: #{tpu_custom_call.1} parent=71 // pred_check_branch
          %600 = sbr.rel (%p598) target = $region80
        $region79: #{tpu_custom_call.1} parent=71 // pred_region
          %s601 = sand.u32 %s35, 1
          %s602 = scalar_lea.sflag [#allocation6], %s601
          %s603 = sand.u32 %s85, 1
          %s604 = smul.addr %s603, 128
          %s605 = scalar_lea.vmem [#allocation5], %s604
          %607 = vsyncadd %s602, 0
          %s608 = smul.addr %s42, 16
          %s609 = smul.addr %s608, 8
          %s610 = scalar_lea.hbm %s1, %s609
          %s611 = sshll.u32 %s610, 4
          %s612 = int_to_ptr.hbm [resolvable:$true] %s611
          %s613 = sshll.u32 %s605, 4
          %s614 = int_to_ptr.vmem [resolvable:$true] %s613
          %619 = dma.hbm_to_vmem [thread:$0]  %s612, 2048, %s614, %s602, 128, 128, 8
        $region80: #{tpu_custom_call.1} parent=71 // pred_fallthru
          _
        // Predicated region
        $region81: #{tpu_custom_call.1} parent=71 // pred_check
          %p620 = pneg %p121
        $region82: #{tpu_custom_call.1} parent=71 // pred_check_branch
          %622 = sbr.rel (%p620) target = $region84
        $region83: #{tpu_custom_call.1} parent=71 // pred_region
          %s623 = sand.u32 %s35, 1
          %s624 = scalar_lea.sflag [#allocation6], %s623
          %s625 = sand.u32 %s111, 1
          %s626 = scalar_lea.vmem [#allocation7], %s625
          %628 = vsyncadd %s624, 0
          %s629 = scalar_lea.hbm %s2, %s42
          %s631 = sshll.u32 %s629, 4
          %s632 = int_to_ptr.hbm [resolvable:$true] %s631
          %s633 = sshll.u32 %s626, 4
          %s634 = int_to_ptr.vmem [resolvable:$true] %s633
          %636 = dma.hbm_to_vmem [thread:$0]  %s632, 16, %s634, %s624
        $region84: #{tpu_custom_call.1} parent=71 // pred_fallthru
          _
      $region72: #{tpu_custom_call.1} parent=5 // pred_fallthru
        _
      %p637 = scmp.le.s32.totalorder 1, %s35
      %p638 = scmp.lt.s32.totalorder %s35, 3
      %p639 = pnand %p637, %p638
      %p640 = pneg %p639
      // Predicated region
      $region85: #{tpu_custom_call.1} parent=5 // pred_check
        _
      $region86: #{tpu_custom_call.1} parent=5 // pred_check_branch
        %642 = sbr.rel (%p639) target = $region88
      $region87: #{tpu_custom_call.1} parent=5 // pred_region
        %s643 = ssub.s32 %s35, 1
        %s644 = sand.u32 %s62, 1
        %s645 = scalar_lea.sflag [#allocation3], %s644
        %s646 = sand.u32 %s62, 1
        %s647 = smul.addr %s646, 128
        %s648 = scalar_lea.vmem [#allocation2], %s647
        // Predicated region
        $region89: #{tpu_custom_call.1} parent=87 // pred_check
          %p649 = pneg %p75
        $region90: #{tpu_custom_call.1} parent=87 // pred_check_branch
          %651 = sbr.rel (%p649) target = $region92
        $region91: #{tpu_custom_call.1} parent=87 // pred_region
          %653 = dma.done %s645, 2048
        $region92: #{tpu_custom_call.1} parent=87 // pred_fallthru
          _
        %s654 = sand.u32 %s40, 1
        %s655 = scalar_lea.sflag [#allocation6], %s654
        %s656 = sand.u32 %s88, 1
        %s657 = smul.addr %s656, 128
        %s658 = scalar_lea.vmem [#allocation5], %s657
        // Predicated region
        $region93: #{tpu_custom_call.1} parent=87 // pred_check
          %p659 = pneg %p101
        $region94: #{tpu_custom_call.1} parent=87 // pred_check_branch
          %661 = sbr.rel (%p659) target = $region96
        $region95: #{tpu_custom_call.1} parent=87 // pred_region
          %663 = dma.done %s655, 2048
        $region96: #{tpu_custom_call.1} parent=87 // pred_fallthru
          _
        %s664 = sand.u32 %s40, 1
        %s665 = scalar_lea.sflag [#allocation6], %s664
        %s666 = sand.u32 %s114, 1
        %s667 = scalar_lea.vmem [#allocation7], %s666
        // Predicated region
        $region97: #{tpu_custom_call.1} parent=87 // pred_check
          %p668 = pneg %p127
        $region98: #{tpu_custom_call.1} parent=87 // pred_check_branch
          %670 = sbr.rel (%p668) target = $region100
        $region99: #{tpu_custom_call.1} parent=87 // pred_region
          %672 = dma.done %s665, 16
        $region100: #{tpu_custom_call.1} parent=87 // pred_fallthru
          _
        // Predicated region
        $region101: #{tpu_custom_call.1} parent=87 // pred_check
          %p673 = pneg %p148
        $region102: #{tpu_custom_call.1} parent=87 // pred_check_branch
          %675 = sbr.rel (%p673) target = $region104
        $region103: #{tpu_custom_call.1} parent=87 // pred_region
          %677 = dma.done [#allocation9], 1024
        $region104: #{tpu_custom_call.1} parent=87 // pred_fallthru
          _
        // Predicated region
        $region105: #{tpu_custom_call.1} parent=87 // pred_check
          %p678 = pneg %p190
        $region106: #{tpu_custom_call.1} parent=87 // pred_check_branch
          %680 = sbr.rel (%p678) target = $region108
        $region107: #{tpu_custom_call.1} parent=87 // pred_region
          %682 = dma.done [#allocation9], 2048
        $region108: #{tpu_custom_call.1} parent=87 // pred_fallthru
          _
        // Predicated region
        $region109: #{tpu_custom_call.1} parent=87 // pred_check
          %p683 = pneg %p232
        $region110: #{tpu_custom_call.1} parent=87 // pred_check_branch
          %685 = sbr.rel (%p683) target = $region112
        $region111: #{tpu_custom_call.1} parent=87 // pred_region
          %687 = dma.done [#allocation12], 1024
        $region112: #{tpu_custom_call.1} parent=87 // pred_fallthru
          _
        // Predicated region
        $region113: #{tpu_custom_call.1} parent=87 // pred_check
          %p688 = pneg %p253
        $region114: #{tpu_custom_call.1} parent=87 // pred_check_branch
          %690 = sbr.rel (%p688) target = $region116
        $region115: #{tpu_custom_call.1} parent=87 // pred_region
          %692 = dma.done [#allocation12], 16
        $region116: #{tpu_custom_call.1} parent=87 // pred_fallthru
          _
        // Predicated region
        $region117: #{tpu_custom_call.1} parent=87 // pred_check
          %p693 = pneg %p316
        $region118: #{tpu_custom_call.1} parent=87 // pred_check_branch
          %695 = sbr.rel (%p693) target = $region120
        $region119: #{tpu_custom_call.1} parent=87 // pred_region
          %697 = dma.done [#allocation15], 4096
        $region120: #{tpu_custom_call.1} parent=87 // pred_fallthru
          _
        // Predicated region
        $region121: #{tpu_custom_call.1} parent=87 // pred_check
          %p698 = pneg %p358
        $region122: #{tpu_custom_call.1} parent=87 // pred_check_branch
          %700 = sbr.rel (%p698) target = $region124
        $region123: #{tpu_custom_call.1} parent=87 // pred_region
          %702 = dma.done [#allocation15], 4096
        $region124: #{tpu_custom_call.1} parent=87 // pred_fallthru
          _
        %s703 = sand.u32 %s62, 1
        %s704 = scalar_lea.sflag [#allocation3], %s703
        %s705 = sand.u32 %s62, 1
        %s706 = smul.addr %s705, 128
        %s707 = scalar_lea.vmem [#allocation2], %s706
        %p708 = pneg %p75
        %p709 = pneg %p72
        %s710 = sand.u32 %s40, 1
        %s711 = scalar_lea.sflag [#allocation6], %s710
        %s712 = sand.u32 %s88, 1
        %s713 = smul.addr %s712, 128
        %s714 = scalar_lea.vmem [#allocation5], %s713
        %p715 = pneg %p101
        %p716 = pneg %p98
        %s717 = sand.u32 %s40, 1
        %s718 = scalar_lea.sflag [#allocation6], %s717
        %s719 = sand.u32 %s114, 1
        %s720 = scalar_lea.vmem [#allocation7], %s719
        %p721 = pneg %p127
        %p722 = pneg %p124
        %p723 = pneg %p148
        %p724 = pneg %p145
        %p725 = pneg %p169
        %p726 = pneg %p166
        %p727 = pneg %p190
        %p728 = pneg %p187
        %p729 = pneg %p211
        %p730 = pneg %p208
        %p731 = pneg %p232
        %p732 = pneg %p229
        %p733 = pneg %p253
        %p734 = pneg %p250
        %p735 = pneg %p274
        %p736 = pneg %p271
        %p737 = pneg %p295
        %p738 = pneg %p292
        %p739 = pneg %p316
        %p740 = pneg %p313
        %p741 = pneg %p337
        %p742 = pneg %p334
        %p743 = pneg %p358
        %p744 = pneg %p355
        %p745 = pneg %p379
        %p746 = pneg %p376
        %p747 = pneg %p400
        %p748 = pneg %p397
        %p749 = pneg %p421
        %p750 = pneg %p418
        %p751 = pneg %p449
        %p752 = pneg %p446
        %s753 = sand.u32 %s436, 1
        %s754 = scalar_lea.sflag [#allocation4], %s753
        %s755 = sand.u32 %s436, 1
        %s756 = smul.addr %s755, 128
        %s757 = scalar_lea.vmem [#allocation17], %s756
        %s758 = smul.u32 16, %s45
        %s759 = smul.u32 16, %s45
        %v760 = vld [vmem:[%s648] sm:$0xff]
        %v761 = vld [vmem:[%s648 + $0x8] sm:$0xff]
        %v762 = vld [vmem:[%s648 + $0x10] sm:$0xff]
        %v763 = vld [vmem:[%s648 + $0x18] sm:$0xff]
        %v764 = vld [vmem:[%s648 + $0x20] sm:$0xff]
        %v765 = vld [vmem:[%s648 + $0x28] sm:$0xff]
        %v766 = vld [vmem:[%s648 + $0x30] sm:$0xff]
        %v767 = vld [vmem:[%s648 + $0x38] sm:$0xff]
        %v768 = vld [vmem:[%s648 + $0x40] sm:$0xff]
        %v769 = vld [vmem:[%s648 + $0x48] sm:$0xff]
        %v770 = vld [vmem:[%s648 + $0x50] sm:$0xff]
        %v771 = vld [vmem:[%s648 + $0x58] sm:$0xff]
        %v772 = vld [vmem:[%s648 + $0x60] sm:$0xff]
        %v773 = vld [vmem:[%s648 + $0x68] sm:$0xff]
        %v774 = vld [vmem:[%s648 + $0x70] sm:$0xff]
        %v775 = vld [vmem:[%s648 + $0x78] sm:$0xff]
        %v776 = vpack.c.bf16 %v761, %v760
        %v777 = vpack.c.bf16 %v763, %v762
        %v778 = vpack.c.bf16 %v765, %v764
        %v779 = vpack.c.bf16 %v767, %v766
        %v780 = vpack.c.bf16 %v769, %v768
        %v781 = vpack.c.bf16 %v771, %v770
        %v782 = vpack.c.bf16 %v773, %v772
        %v783 = vpack.c.bf16 %v775, %v774
        %v784 = vld [vmem:[%s658] sm:$0xff]
        %v785 = vld [vmem:[%s658 + $0x8] sm:$0xff]
        %v786 = vld [vmem:[%s658 + $0x10] sm:$0xff]
        %v787 = vld [vmem:[%s658 + $0x18] sm:$0xff]
        %v788 = vld [vmem:[%s658 + $0x20] sm:$0xff]
        %v789 = vld [vmem:[%s658 + $0x28] sm:$0xff]
        %v790 = vld [vmem:[%s658 + $0x30] sm:$0xff]
        %v791 = vld [vmem:[%s658 + $0x38] sm:$0xff]
        %v792 = vld [vmem:[%s658 + $0x40] sm:$0xff]
        %v793 = vld [vmem:[%s658 + $0x48] sm:$0xff]
        %v794 = vld [vmem:[%s658 + $0x50] sm:$0xff]
        %v795 = vld [vmem:[%s658 + $0x58] sm:$0xff]
        %v796 = vld [vmem:[%s658 + $0x60] sm:$0xff]
        %v797 = vld [vmem:[%s658 + $0x68] sm:$0xff]
        %v798 = vld [vmem:[%s658 + $0x70] sm:$0xff]
        %v799 = vld [vmem:[%s658 + $0x78] sm:$0xff]
        %v800 = vpack.c.bf16 %v785, %v784
        %v801 = vpack.c.bf16 %v787, %v786
        %v802 = vpack.c.bf16 %v789, %v788
        %v803 = vpack.c.bf16 %v791, %v790
        %v804 = vpack.c.bf16 %v793, %v792
        %v805 = vpack.c.bf16 %v795, %v794
        %v806 = vpack.c.bf16 %v797, %v796
        %v807 = vpack.c.bf16 %v799, %v798
        %v808 = vld [vmem:[%s667] sm:$0x1]
        %v809 = vsub.f32 1.0, %v808
        %v810 = vmul.f32 %v809, -1e+09
        %v811 = vld [vmem:[#allocation8] sm:$0xf]
        %v812 = vld [vmem:[#allocation8 + $0x4] sm:$0xf]
        %v813 = vld [vmem:[#allocation8 + $0x8] sm:$0xf]
        %v814 = vld [vmem:[#allocation8 + $0xc] sm:$0xf]
        %v815 = vld [vmem:[#allocation8 + $0x10] sm:$0xf]
        %v816 = vld [vmem:[#allocation8 + $0x14] sm:$0xf]
        %v817 = vld [vmem:[#allocation8 + $0x18] sm:$0xf]
        %v818 = vld [vmem:[#allocation8 + $0x1c] sm:$0xf]
        %v819 = vld [vmem:[#allocation8 + $0x20] sm:$0xf]
        %v820 = vld [vmem:[#allocation8 + $0x24] sm:$0xf]
        %v821 = vld [vmem:[#allocation8 + $0x28] sm:$0xf]
        %v822 = vld [vmem:[#allocation8 + $0x2c] sm:$0xf]
        %v823 = vld [vmem:[#allocation8 + $0x30] sm:$0xf]
        %v824 = vld [vmem:[#allocation8 + $0x34] sm:$0xf]
        %v825 = vld [vmem:[#allocation8 + $0x38] sm:$0xf]
        %v826 = vld [vmem:[#allocation8 + $0x3c] sm:$0xf]
        %v827 = vld [vmem:[%s4] sm:$0x1]
        %v829 = vperm.slane %v827, 0
        %v847 = vunpack.c.l.b16 %v811
        %v848 = vunpack.c.l.b16 %v812
        %v849 = vunpack.c.l.b16 %v813
        %v850 = vunpack.c.l.b16 %v814
        %v851 = vunpack.c.l.b16 %v815
        %v852 = vunpack.c.l.b16 %v816
        %v853 = vunpack.c.l.b16 %v817
        %v854 = vunpack.c.l.b16 %v818
        %v855 = vunpack.c.l.b16 %v819
        %v856 = vunpack.c.l.b16 %v820
        %v857 = vunpack.c.l.b16 %v821
        %v858 = vunpack.c.l.b16 %v822
        %v859 = vunpack.c.l.b16 %v823
        %v860 = vunpack.c.l.b16 %v824
        %v861 = vunpack.c.l.b16 %v825
        %v862 = vunpack.c.l.b16 %v826
        %v863 = vpack.c.b16 %v848, %v847
        %v864 = vpack.c.b16 %v850, %v849
        %v865 = vpack.c.b16 %v852, %v851
        %v866 = vpack.c.b16 %v854, %v853
        %v867 = vpack.c.b16 %v856, %v855
        %v868 = vpack.c.b16 %v858, %v857
        %v869 = vpack.c.b16 %v860, %v859
        %v870 = vpack.c.b16 %v862, %v861
        %879 = vmatpush.bf16.msra.mxu0 %v870
        %880 = vmatpush.bf16.msra.mxu0 %v869
        %881 = vmatpush.bf16.msra.mxu0 %v868
        %882 = vmatpush.bf16.msra.mxu0 %v867
        %883 = vmatpush.bf16.msra.mxu0 %v866
        %884 = vmatpush.bf16.msra.mxu0 %v865
        %885 = vmatpush.bf16.msra.mxu0 %v864
        %886 = vmatpush.bf16.msra.mxu0 %v863
        %887 = vmatmul.bf16.gmra.mxu0 %v776
        %v888 = vpop.f32.mrf.mxu0
        %v889 = vadd.f32 %v829, %v888
        %v890 = vpop.f32.mrf.mxu0
        %v891 = vadd.f32 %v829, %v890
        %892 = vmatmul.bf16.gmra.mxu0 %v777
        %v893 = vpop.f32.mrf.mxu0
        %v894 = vadd.f32 %v829, %v893
        %v895 = vpop.f32.mrf.mxu0
        %v896 = vadd.f32 %v829, %v895
        %897 = vmatmul.bf16.gmra.mxu0 %v778
        %v898 = vpop.f32.mrf.mxu0
        %v899 = vadd.f32 %v829, %v898
        %v900 = vpop.f32.mrf.mxu0
        %v901 = vadd.f32 %v829, %v900
        %902 = vmatmul.bf16.gmra.mxu0 %v779
        %v903 = vpop.f32.mrf.mxu0
        %v904 = vadd.f32 %v829, %v903
        %v905 = vpop.f32.mrf.mxu0
        %v906 = vadd.f32 %v829, %v905
        %907 = vmatmul.bf16.gmra.mxu0 %v780
        %v908 = vpop.f32.mrf.mxu0
        %v909 = vadd.f32 %v829, %v908
        %v910 = vpop.f32.mrf.mxu0
        %v911 = vadd.f32 %v829, %v910
        %912 = vmatmul.bf16.gmra.mxu0 %v781
        %v913 = vpop.f32.mrf.mxu0
        %v914 = vadd.f32 %v829, %v913
        %v915 = vpop.f32.mrf.mxu0
        %v916 = vadd.f32 %v829, %v915
        %917 = vmatmul.bf16.gmra.mxu0 %v782
        %v918 = vpop.f32.mrf.mxu0
        %v919 = vadd.f32 %v829, %v918
        %v920 = vpop.f32.mrf.mxu0
        %v921 = vadd.f32 %v829, %v920
        %922 = vmatmul.bf16.gmra.mxu0 %v783
        %v923 = vpop.f32.mrf.mxu0
        %v924 = vadd.f32 %v829, %v923
        %v925 = vpop.f32.mrf.mxu0
        %v926 = vadd.f32 %v829, %v925
        %927 = vdwg.mxu0
        %v928 = vld [vmem:[#allocation10] sm:$0xff]
        %v929 = vld [vmem:[#allocation10 + $0x8] sm:$0xff]
        %v930 = vld [vmem:[#allocation10 + $0x10] sm:$0xff]
        %v931 = vld [vmem:[#allocation10 + $0x18] sm:$0xff]
        %v932 = vld [vmem:[#allocation10 + $0x20] sm:$0xff]
        %v933 = vld [vmem:[#allocation10 + $0x28] sm:$0xff]
        %v934 = vld [vmem:[#allocation10 + $0x30] sm:$0xff]
        %v935 = vld [vmem:[#allocation10 + $0x38] sm:$0xff]
        %v936 = vld [vmem:[#allocation10 + $0x40] sm:$0xff]
        %v937 = vld [vmem:[#allocation10 + $0x48] sm:$0xff]
        %v938 = vld [vmem:[#allocation10 + $0x50] sm:$0xff]
        %v939 = vld [vmem:[#allocation10 + $0x58] sm:$0xff]
        %v940 = vld [vmem:[#allocation10 + $0x60] sm:$0xff]
        %v941 = vld [vmem:[#allocation10 + $0x68] sm:$0xff]
        %v942 = vld [vmem:[#allocation10 + $0x70] sm:$0xff]
        %v943 = vld [vmem:[#allocation10 + $0x78] sm:$0xff]
        %v944 = vld [vmem:[%s6] sm:$0x3]
        %v946 = vperm.slane %v944, 0
        %v947 = vperm.slane %v944, 1
        %v966 = vunpack.c.l.b16 %v928
        %v967 = vunpack.c.h.b16 %v928
        %v968 = vunpack.c.l.b16 %v929
        %v969 = vunpack.c.h.b16 %v929
        %v970 = vunpack.c.l.b16 %v930
        %v971 = vunpack.c.h.b16 %v930
        %v972 = vunpack.c.l.b16 %v931
        %v973 = vunpack.c.h.b16 %v931
        %v974 = vunpack.c.l.b16 %v932
        %v975 = vunpack.c.h.b16 %v932
        %v976 = vunpack.c.l.b16 %v933
        %v977 = vunpack.c.h.b16 %v933
        %v978 = vunpack.c.l.b16 %v934
        %v979 = vunpack.c.h.b16 %v934
        %v980 = vunpack.c.l.b16 %v935
        %v981 = vunpack.c.h.b16 %v935
        %v982 = vunpack.c.l.b16 %v936
        %v983 = vunpack.c.h.b16 %v936
        %v984 = vunpack.c.l.b16 %v937
        %v985 = vunpack.c.h.b16 %v937
        %v986 = vunpack.c.l.b16 %v938
        %v987 = vunpack.c.h.b16 %v938
        %v988 = vunpack.c.l.b16 %v939
        %v989 = vunpack.c.h.b16 %v939
        %v990 = vunpack.c.l.b16 %v940
        %v991 = vunpack.c.h.b16 %v940
        %v992 = vunpack.c.l.b16 %v941
        %v993 = vunpack.c.h.b16 %v941
        %v994 = vunpack.c.l.b16 %v942
        %v995 = vunpack.c.h.b16 %v942
        %v996 = vunpack.c.l.b16 %v943
        %v997 = vunpack.c.h.b16 %v943
        %v998 = vpack.c.b16 %v968, %v966
        %v999 = vpack.c.b16 %v969, %v967
        %v1000 = vpack.c.b16 %v972, %v970
        %v1001 = vpack.c.b16 %v973, %v971
        %v1002 = vpack.c.b16 %v976, %v974
        %v1003 = vpack.c.b16 %v977, %v975
        %v1004 = vpack.c.b16 %v980, %v978
        %v1005 = vpack.c.b16 %v981, %v979
        %v1006 = vpack.c.b16 %v984, %v982
        %v1007 = vpack.c.b16 %v985, %v983
        %v1008 = vpack.c.b16 %v988, %v986
        %v1009 = vpack.c.b16 %v989, %v987
        %v1010 = vpack.c.b16 %v992, %v990
        %v1011 = vpack.c.b16 %v993, %v991
        %v1012 = vpack.c.b16 %v996, %v994
        %v1013 = vpack.c.b16 %v997, %v995
        %1030 = vmatpush.bf16.msra.mxu0 %v1012
        %1031 = vmatpush.bf16.msra.mxu0 %v1010
        %1032 = vmatpush.bf16.msra.mxu0 %v1008
        %1033 = vmatpush.bf16.msra.mxu0 %v1006
        %1034 = vmatpush.bf16.msra.mxu0 %v1004
        %1035 = vmatpush.bf16.msra.mxu0 %v1002
        %1036 = vmatpush.bf16.msra.mxu0 %v1000
        %1037 = vmatpush.bf16.msra.mxu0 %v998
        %1038 = vmatmul.bf16.gmra.mxu0 %v800
        %v1039 = vpop.f32.mrf.mxu0
        %v1040 = vadd.f32 %v946, %v1039
        %v1041 = vpop.f32.mrf.mxu0
        %v1042 = vadd.f32 %v946, %v1041
        %1043 = vmatmul.bf16.gmra.mxu0 %v801
        %v1044 = vpop.f32.mrf.mxu0
        %v1045 = vadd.f32 %v946, %v1044
        %v1046 = vpop.f32.mrf.mxu0
        %v1047 = vadd.f32 %v946, %v1046
        %1048 = vmatmul.bf16.gmra.mxu0 %v802
        %v1049 = vpop.f32.mrf.mxu0
        %v1050 = vadd.f32 %v946, %v1049
        %v1051 = vpop.f32.mrf.mxu0
        %v1052 = vadd.f32 %v946, %v1051
        %1053 = vmatmul.bf16.gmra.mxu0 %v803
        %v1054 = vpop.f32.mrf.mxu0
        %v1055 = vadd.f32 %v946, %v1054
        %v1056 = vpop.f32.mrf.mxu0
        %v1057 = vadd.f32 %v946, %v1056
        %1058 = vmatmul.bf16.gmra.mxu0 %v804
        %v1059 = vpop.f32.mrf.mxu0
        %v1060 = vadd.f32 %v946, %v1059
        %v1061 = vpop.f32.mrf.mxu0
        %v1062 = vadd.f32 %v946, %v1061
        %1063 = vmatmul.bf16.gmra.mxu0 %v805
        %v1064 = vpop.f32.mrf.mxu0
        %v1065 = vadd.f32 %v946, %v1064
        %v1066 = vpop.f32.mrf.mxu0
        %v1067 = vadd.f32 %v946, %v1066
        %1068 = vmatmul.bf16.gmra.mxu0 %v806
        %v1069 = vpop.f32.mrf.mxu0
        %v1070 = vadd.f32 %v946, %v1069
        %v1071 = vpop.f32.mrf.mxu0
        %v1072 = vadd.f32 %v946, %v1071
        %1073 = vmatmul.bf16.gmra.mxu0 %v807
        %v1074 = vpop.f32.mrf.mxu0
        %v1075 = vadd.f32 %v946, %v1074
        %v1076 = vpop.f32.mrf.mxu0
        %v1077 = vadd.f32 %v946, %v1076
        %1078 = vdwg.mxu0
        %1079 = vmatpush.bf16.msra.mxu0 %v1013
        %1080 = vmatpush.bf16.msra.mxu0 %v1011
        %1081 = vmatpush.bf16.msra.mxu0 %v1009
        %1082 = vmatpush.bf16.msra.mxu0 %v1007
        %1083 = vmatpush.bf16.msra.mxu0 %v1005
        %1084 = vmatpush.bf16.msra.mxu0 %v1003
        %1085 = vmatpush.bf16.msra.mxu0 %v1001
        %1086 = vmatpush.bf16.msra.mxu0 %v999
        %1087 = vmatmul.bf16.gmra.mxu0 %v800
        %v1088 = vpop.f32.mrf.mxu0
        %v1089 = vadd.f32 %v947, %v1088
        %v1090 = vpop.f32.mrf.mxu0
        %v1091 = vadd.f32 %v947, %v1090
        %1092 = vmatmul.bf16.gmra.mxu0 %v801
        %v1093 = vpop.f32.mrf.mxu0
        %v1094 = vadd.f32 %v947, %v1093
        %v1095 = vpop.f32.mrf.mxu0
        %v1096 = vadd.f32 %v947, %v1095
        %1097 = vmatmul.bf16.gmra.mxu0 %v802
        %v1098 = vpop.f32.mrf.mxu0
        %v1099 = vadd.f32 %v947, %v1098
        %v1100 = vpop.f32.mrf.mxu0
        %v1101 = vadd.f32 %v947, %v1100
        %1102 = vmatmul.bf16.gmra.mxu0 %v803
        %v1103 = vpop.f32.mrf.mxu0
        %v1104 = vadd.f32 %v947, %v1103
        %v1105 = vpop.f32.mrf.mxu0
        %v1106 = vadd.f32 %v947, %v1105
        %1107 = vmatmul.bf16.gmra.mxu0 %v804
        %v1108 = vpop.f32.mrf.mxu0
        %v1109 = vadd.f32 %v947, %v1108
        %v1110 = vpop.f32.mrf.mxu0
        %v1111 = vadd.f32 %v947, %v1110
        %1112 = vmatmul.bf16.gmra.mxu0 %v805
        %v1113 = vpop.f32.mrf.mxu0
        %v1114 = vadd.f32 %v947, %v1113
        %v1115 = vpop.f32.mrf.mxu0
        %v1116 = vadd.f32 %v947, %v1115
        %1117 = vmatmul.bf16.gmra.mxu0 %v806
        %v1118 = vpop.f32.mrf.mxu0
        %v1119 = vadd.f32 %v947, %v1118
        %v1120 = vpop.f32.mrf.mxu0
        %v1121 = vadd.f32 %v947, %v1120
        %1122 = vmatmul.bf16.gmra.mxu0 %v807
        %v1123 = vpop.f32.mrf.mxu0
        %v1124 = vadd.f32 %v947, %v1123
        %v1125 = vpop.f32.mrf.mxu0
        %v1126 = vadd.f32 %v947, %v1125
        %1127 = vdwg.mxu0
        %v1128 = vpack.c.bf16 %v889, %v889
        %v1129 = vpack.c.bf16 %v891, %v891
        %v1130 = vpack.c.bf16 %v894, %v894
        %v1131 = vpack.c.bf16 %v896, %v896
        %v1132 = vpack.c.bf16 %v899, %v899
        %v1133 = vpack.c.bf16 %v901, %v901
        %v1134 = vpack.c.bf16 %v904, %v904
        %v1135 = vpack.c.bf16 %v906, %v906
        %v1136 = vpack.c.bf16 %v909, %v909
        %v1137 = vpack.c.bf16 %v911, %v911
        %v1138 = vpack.c.bf16 %v914, %v914
        %v1139 = vpack.c.bf16 %v916, %v916
        %v1140 = vpack.c.bf16 %v919, %v919
        %v1141 = vpack.c.bf16 %v921, %v921
        %v1142 = vpack.c.bf16 %v924, %v924
        %v1143 = vpack.c.bf16 %v926, %v926
        %v1144 = vpack.c.bf16 %v1040, %v1040
        %v1145 = vpack.c.bf16 %v1042, %v1042
        %v1146 = vpack.c.bf16 %v1045, %v1045
        %v1147 = vpack.c.bf16 %v1047, %v1047
        %v1148 = vpack.c.bf16 %v1050, %v1050
        %v1149 = vpack.c.bf16 %v1052, %v1052
        %v1150 = vpack.c.bf16 %v1055, %v1055
        %v1151 = vpack.c.bf16 %v1057, %v1057
        %v1152 = vpack.c.bf16 %v1060, %v1060
        %v1153 = vpack.c.bf16 %v1062, %v1062
        %v1154 = vpack.c.bf16 %v1065, %v1065
        %v1155 = vpack.c.bf16 %v1067, %v1067
        %v1156 = vpack.c.bf16 %v1070, %v1070
        %v1157 = vpack.c.bf16 %v1072, %v1072
        %v1158 = vpack.c.bf16 %v1075, %v1075
        %v1159 = vpack.c.bf16 %v1077, %v1077
        %v1160 = vpack.c.bf16 %v1089, %v1089
        %v1161 = vpack.c.bf16 %v1091, %v1091
        %v1162 = vpack.c.bf16 %v1094, %v1094
        %v1163 = vpack.c.bf16 %v1096, %v1096
        %v1164 = vpack.c.bf16 %v1099, %v1099
        %v1165 = vpack.c.bf16 %v1101, %v1101
        %v1166 = vpack.c.bf16 %v1104, %v1104
        %v1167 = vpack.c.bf16 %v1106, %v1106
        %v1168 = vpack.c.bf16 %v1109, %v1109
        %v1169 = vpack.c.bf16 %v1111, %v1111
        %v1170 = vpack.c.bf16 %v1114, %v1114
        %v1171 = vpack.c.bf16 %v1116, %v1116
        %v1172 = vpack.c.bf16 %v1119, %v1119
        %v1173 = vpack.c.bf16 %v1121, %v1121
        %v1174 = vpack.c.bf16 %v1124, %v1124
        %v1175 = vpack.c.bf16 %v1126, %v1126
        %v1177 = vperm.slane %v810, 0
        %v1195 = vunpack.c.l.b16 %v1128
        %v1196 = vunpack.c.l.b16 %v1129
        %v1197 = vunpack.c.l.b16 %v1130
        %v1198 = vunpack.c.l.b16 %v1131
        %v1199 = vunpack.c.l.b16 %v1132
        %v1200 = vunpack.c.l.b16 %v1133
        %v1201 = vunpack.c.l.b16 %v1134
        %v1202 = vunpack.c.l.b16 %v1135
        %v1203 = vunpack.c.l.b16 %v1136
        %v1204 = vunpack.c.l.b16 %v1137
        %v1205 = vunpack.c.l.b16 %v1138
        %v1206 = vunpack.c.l.b16 %v1139
        %v1207 = vunpack.c.l.b16 %v1140
        %v1208 = vunpack.c.l.b16 %v1141
        %v1209 = vunpack.c.l.b16 %v1142
        %v1210 = vunpack.c.l.b16 %v1143
        %v1211 = vpack.c.b16 %v1196, %v1195
        %v1212 = vpack.c.b16 %v1198, %v1197
        %v1213 = vpack.c.b16 %v1200, %v1199
        %v1214 = vpack.c.b16 %v1202, %v1201
        %v1215 = vpack.c.b16 %v1204, %v1203
        %v1216 = vpack.c.b16 %v1206, %v1205
        %v1217 = vpack.c.b16 %v1208, %v1207
        %v1218 = vpack.c.b16 %v1210, %v1209
        %v1235 = vunpack.c.l.b16 %v1144
        %v1236 = vunpack.c.l.b16 %v1145
        %v1237 = vunpack.c.l.b16 %v1146
        %v1238 = vunpack.c.l.b16 %v1147
        %v1239 = vunpack.c.l.b16 %v1148
        %v1240 = vunpack.c.l.b16 %v1149
        %v1241 = vunpack.c.l.b16 %v1150
        %v1242 = vunpack.c.l.b16 %v1151
        %v1243 = vunpack.c.l.b16 %v1152
        %v1244 = vunpack.c.l.b16 %v1153
        %v1245 = vunpack.c.l.b16 %v1154
        %v1246 = vunpack.c.l.b16 %v1155
        %v1247 = vunpack.c.l.b16 %v1156
        %v1248 = vunpack.c.l.b16 %v1157
        %v1249 = vunpack.c.l.b16 %v1158
        %v1250 = vunpack.c.l.b16 %v1159
        %v1251 = vpack.c.b16 %v1236, %v1235
        %v1252 = vpack.c.b16 %v1238, %v1237
        %v1253 = vpack.c.b16 %v1240, %v1239
        %v1254 = vpack.c.b16 %v1242, %v1241
        %v1255 = vpack.c.b16 %v1244, %v1243
        %v1256 = vpack.c.b16 %v1246, %v1245
        %v1257 = vpack.c.b16 %v1248, %v1247
        %v1258 = vpack.c.b16 %v1250, %v1249
        %vm1259 = vcmask 523264
        %v1261 = vsel %vm1259, %v1211, 0
        %v1264 = vsel %vm1259, %v1212, 0
        %v1267 = vsel %vm1259, %v1213, 0
        %v1270 = vsel %vm1259, %v1214, 0
        %v1273 = vsel %vm1259, %v1215, 0
        %v1276 = vsel %vm1259, %v1216, 0
        %v1279 = vsel %vm1259, %v1217, 0
        %v1282 = vsel %vm1259, %v1218, 0
        %v1285 = vsel %vm1259, %v1251, 0
        %v1288 = vsel %vm1259, %v1252, 0
        %v1291 = vsel %vm1259, %v1253, 0
        %v1294 = vsel %vm1259, %v1254, 0
        %v1297 = vsel %vm1259, %v1255, 0
        %v1300 = vsel %vm1259, %v1256, 0
        %v1303 = vsel %vm1259, %v1257, 0
        %v1306 = vsel %vm1259, %v1258, 0
        %1308 = vmatpush.bf16.xpose.msra.mxu0 %v1306
        %1309 = vmatpush.bf16.xpose.msra.mxu0 %v1303
        %1310 = vmatpush.bf16.xpose.msra.mxu0 %v1300
        %1311 = vmatpush.bf16.xpose.msra.mxu0 %v1297
        %1312 = vmatpush.bf16.xpose.msra.mxu0 %v1294
        %1313 = vmatpush.bf16.xpose.msra.mxu0 %v1291
        %1314 = vmatpush.bf16.xpose.msra.mxu0 %v1288
        %1315 = vmatpush.bf16.xpose.msra.mxu0 %v1285
        %1316 = vmatmul.bf16.gmra.mxu0 %v1261
        %v1317 = vpop.f32.mrf.mxu0
        %v1318 = vadd.f32 %v1177, %v1317
        %v1319 = vpop.f32.mrf.mxu0
        %v1320 = vadd.f32 %v1177, %v1319
        %1321 = vmatmul.bf16.gmra.mxu0 %v1264
        %v1322 = vpop.f32.mrf.mxu0
        %v1323 = vadd.f32 %v1177, %v1322
        %v1324 = vpop.f32.mrf.mxu0
        %v1325 = vadd.f32 %v1177, %v1324
        %1326 = vmatmul.bf16.gmra.mxu0 %v1267
        %v1327 = vpop.f32.mrf.mxu0
        %v1328 = vadd.f32 %v1177, %v1327
        %v1329 = vpop.f32.mrf.mxu0
        %v1330 = vadd.f32 %v1177, %v1329
        %1331 = vmatmul.bf16.gmra.mxu0 %v1270
        %v1332 = vpop.f32.mrf.mxu0
        %v1333 = vadd.f32 %v1177, %v1332
        %v1334 = vpop.f32.mrf.mxu0
        %v1335 = vadd.f32 %v1177, %v1334
        %1336 = vmatmul.bf16.gmra.mxu0 %v1273
        %v1337 = vpop.f32.mrf.mxu0
        %v1338 = vadd.f32 %v1177, %v1337
        %v1339 = vpop.f32.mrf.mxu0
        %v1340 = vadd.f32 %v1177, %v1339
        %1341 = vmatmul.bf16.gmra.mxu0 %v1276
        %v1342 = vpop.f32.mrf.mxu0
        %v1343 = vadd.f32 %v1177, %v1342
        %v1344 = vpop.f32.mrf.mxu0
        %v1345 = vadd.f32 %v1177, %v1344
        %1346 = vmatmul.bf16.gmra.mxu0 %v1279
        %v1347 = vpop.f32.mrf.mxu0
        %v1348 = vadd.f32 %v1177, %v1347
        %v1349 = vpop.f32.mrf.mxu0
        %v1350 = vadd.f32 %v1177, %v1349
        %1351 = vmatmul.bf16.gmra.mxu0 %v1282
        %v1352 = vpop.f32.mrf.mxu0
        %v1353 = vadd.f32 %v1177, %v1352
        %v1354 = vpop.f32.mrf.mxu0
        %v1355 = vadd.f32 %v1177, %v1354
        %1356 = vdwg.mxu0
        %1357 = vmax.xlane.f32.xlu0 %v1318
        %v1358 = vpop.xlane.xlu0 %1357
        %1359 = vmax.xlane.f32.xlu0 %v1320
        %v1360 = vpop.xlane.xlu0 %1359
        %1361 = vmax.xlane.f32.xlu0 %v1323
        %v1362 = vpop.xlane.xlu0 %1361
        %1363 = vmax.xlane.f32.xlu0 %v1325
        %v1364 = vpop.xlane.xlu0 %1363
        %1365 = vmax.xlane.f32.xlu0 %v1328
        %v1366 = vpop.xlane.xlu0 %1365
        %1367 = vmax.xlane.f32.xlu0 %v1330
        %v1368 = vpop.xlane.xlu0 %1367
        %1369 = vmax.xlane.f32.xlu0 %v1333
        %v1370 = vpop.xlane.xlu0 %1369
        %1371 = vmax.xlane.f32.xlu0 %v1335
        %v1372 = vpop.xlane.xlu0 %1371
        %1373 = vmax.xlane.f32.xlu0 %v1338
        %v1374 = vpop.xlane.xlu0 %1373
        %1375 = vmax.xlane.f32.xlu0 %v1340
        %v1376 = vpop.xlane.xlu0 %1375
        %1377 = vmax.xlane.f32.xlu0 %v1343
        %v1378 = vpop.xlane.xlu0 %1377
        %1379 = vmax.xlane.f32.xlu0 %v1345
        %v1380 = vpop.xlane.xlu0 %1379
        %1381 = vmax.xlane.f32.xlu0 %v1348
        %v1382 = vpop.xlane.xlu0 %1381
        %1383 = vmax.xlane.f32.xlu0 %v1350
        %v1384 = vpop.xlane.xlu0 %1383
        %1385 = vmax.xlane.f32.xlu0 %v1353
        %v1386 = vpop.xlane.xlu0 %1385
        %1387 = vmax.xlane.f32.xlu0 %v1355
        %v1388 = vpop.xlane.xlu0 %1387
        %v1389 = vsub.f32 %v1318, %v1358
        %v1390 = vsub.f32 %v1320, %v1360
        %v1391 = vsub.f32 %v1323, %v1362
        %v1392 = vsub.f32 %v1325, %v1364
        %v1393 = vsub.f32 %v1328, %v1366
        %v1394 = vsub.f32 %v1330, %v1368
        %v1395 = vsub.f32 %v1333, %v1370
        %v1396 = vsub.f32 %v1335, %v1372
        %v1397 = vsub.f32 %v1338, %v1374
        %v1398 = vsub.f32 %v1340, %v1376
        %v1399 = vsub.f32 %v1343, %v1378
        %v1400 = vsub.f32 %v1345, %v1380
        %v1401 = vsub.f32 %v1348, %v1382
        %v1402 = vsub.f32 %v1350, %v1384
        %v1403 = vsub.f32 %v1353, %v1386
        %v1404 = vsub.f32 %v1355, %v1388
        %v1405 = vmul.f32 %v1389, 1.442695
        %v1406 = vpow.pop %v1405
        %v1407 = vmul.f32 %v1390, 1.442695
        %v1408 = vpow.pop %v1407
        %v1409 = vmul.f32 %v1391, 1.442695
        %v1410 = vpow.pop %v1409
        %v1411 = vmul.f32 %v1392, 1.442695
        %v1412 = vpow.pop %v1411
        %v1413 = vmul.f32 %v1393, 1.442695
        %v1414 = vpow.pop %v1413
        %v1415 = vmul.f32 %v1394, 1.442695
        %v1416 = vpow.pop %v1415
        %v1417 = vmul.f32 %v1395, 1.442695
        %v1418 = vpow.pop %v1417
        %v1419 = vmul.f32 %v1396, 1.442695
        %v1420 = vpow.pop %v1419
        %v1421 = vmul.f32 %v1397, 1.442695
        %v1422 = vpow.pop %v1421
        %v1423 = vmul.f32 %v1398, 1.442695
        %v1424 = vpow.pop %v1423
        %v1425 = vmul.f32 %v1399, 1.442695
        %v1426 = vpow.pop %v1425
        %v1427 = vmul.f32 %v1400, 1.442695
        %v1428 = vpow.pop %v1427
        %v1429 = vmul.f32 %v1401, 1.442695
        %v1430 = vpow.pop %v1429
        %v1431 = vmul.f32 %v1402, 1.442695
        %v1432 = vpow.pop %v1431
        %v1433 = vmul.f32 %v1403, 1.442695
        %v1434 = vpow.pop %v1433
        %v1435 = vmul.f32 %v1404, 1.442695
        %v1436 = vpow.pop %v1435
        %1437 = vadd.xlane.f32.xlu0 %v1406
        %v1438 = vpop.xlane.xlu0 %1437
        %1439 = vadd.xlane.f32.xlu0 %v1408
        %v1440 = vpop.xlane.xlu0 %1439
        %1441 = vadd.xlane.f32.xlu0 %v1410
        %v1442 = vpop.xlane.xlu0 %1441
        %1443 = vadd.xlane.f32.xlu0 %v1412
        %v1444 = vpop.xlane.xlu0 %1443
        %1445 = vadd.xlane.f32.xlu0 %v1414
        %v1446 = vpop.xlane.xlu0 %1445
        %1447 = vadd.xlane.f32.xlu0 %v1416
        %v1448 = vpop.xlane.xlu0 %1447
        %1449 = vadd.xlane.f32.xlu0 %v1418
        %v1450 = vpop.xlane.xlu0 %1449
        %1451 = vadd.xlane.f32.xlu0 %v1420
        %v1452 = vpop.xlane.xlu0 %1451
        %1453 = vadd.xlane.f32.xlu0 %v1422
        %v1454 = vpop.xlane.xlu0 %1453
        %1455 = vadd.xlane.f32.xlu0 %v1424
        %v1456 = vpop.xlane.xlu0 %1455
        %1457 = vadd.xlane.f32.xlu0 %v1426
        %v1458 = vpop.xlane.xlu0 %1457
        %1459 = vadd.xlane.f32.xlu0 %v1428
        %v1460 = vpop.xlane.xlu0 %1459
        %1461 = vadd.xlane.f32.xlu0 %v1430
        %v1462 = vpop.xlane.xlu0 %1461
        %1463 = vadd.xlane.f32.xlu0 %v1432
        %v1464 = vpop.xlane.xlu0 %1463
        %1465 = vadd.xlane.f32.xlu0 %v1434
        %v1466 = vpop.xlane.xlu0 %1465
        %1467 = vadd.xlane.f32.xlu0 %v1436
        %v1468 = vpop.xlane.xlu0 %1467
        %v1469 = vrcp.pop %v1438
        %v1470 = vrcp.pop %v1440
        %v1471 = vrcp.pop %v1442
        %v1472 = vrcp.pop %v1444
        %v1473 = vrcp.pop %v1446
        %v1474 = vrcp.pop %v1448
        %v1475 = vrcp.pop %v1450
        %v1476 = vrcp.pop %v1452
        %v1477 = vrcp.pop %v1454
        %v1478 = vrcp.pop %v1456
        %v1479 = vrcp.pop %v1458
        %v1480 = vrcp.pop %v1460
        %v1481 = vrcp.pop %v1462
        %v1482 = vrcp.pop %v1464
        %v1483 = vrcp.pop %v1466
        %v1484 = vrcp.pop %v1468
        %v1485 = vmul.f32 %v1406, %v1469
        %v1486 = vmul.f32 %v1408, %v1470
        %v1487 = vmul.f32 %v1410, %v1471
        %v1488 = vmul.f32 %v1412, %v1472
        %v1489 = vmul.f32 %v1414, %v1473
        %v1490 = vmul.f32 %v1416, %v1474
        %v1491 = vmul.f32 %v1418, %v1475
        %v1492 = vmul.f32 %v1420, %v1476
        %v1493 = vmul.f32 %v1422, %v1477
        %v1494 = vmul.f32 %v1424, %v1478
        %v1495 = vmul.f32 %v1426, %v1479
        %v1496 = vmul.f32 %v1428, %v1480
        %v1497 = vmul.f32 %v1430, %v1481
        %v1498 = vmul.f32 %v1432, %v1482
        %v1499 = vmul.f32 %v1434, %v1483
        %v1500 = vmul.f32 %v1436, %v1484
        %v1501 = vpack.c.bf16 %v1486, %v1485
        %v1502 = vpack.c.bf16 %v1488, %v1487
        %v1503 = vpack.c.bf16 %v1490, %v1489
        %v1504 = vpack.c.bf16 %v1492, %v1491
        %v1505 = vpack.c.bf16 %v1494, %v1493
        %v1506 = vpack.c.bf16 %v1496, %v1495
        %v1507 = vpack.c.bf16 %v1498, %v1497
        %v1508 = vpack.c.bf16 %v1500, %v1499
        %v1525 = vunpack.c.l.b16 %v1160
        %v1526 = vunpack.c.l.b16 %v1161
        %v1527 = vunpack.c.l.b16 %v1162
        %v1528 = vunpack.c.l.b16 %v1163
        %v1529 = vunpack.c.l.b16 %v1164
        %v1530 = vunpack.c.l.b16 %v1165
        %v1531 = vunpack.c.l.b16 %v1166
        %v1532 = vunpack.c.l.b16 %v1167
        %v1533 = vunpack.c.l.b16 %v1168
        %v1534 = vunpack.c.l.b16 %v1169
        %v1535 = vunpack.c.l.b16 %v1170
        %v1536 = vunpack.c.l.b16 %v1171
        %v1537 = vunpack.c.l.b16 %v1172
        %v1538 = vunpack.c.l.b16 %v1173
        %v1539 = vunpack.c.l.b16 %v1174
        %v1540 = vunpack.c.l.b16 %v1175
        %v1541 = vpack.c.b16 %v1526, %v1525
        %v1542 = vpack.c.b16 %v1528, %v1527
        %v1543 = vpack.c.b16 %v1530, %v1529
        %v1544 = vpack.c.b16 %v1532, %v1531
        %v1545 = vpack.c.b16 %v1534, %v1533
        %v1546 = vpack.c.b16 %v1536, %v1535
        %v1547 = vpack.c.b16 %v1538, %v1537
        %v1548 = vpack.c.b16 %v1540, %v1539
        %1557 = vmatpush.bf16.msra.mxu0 %v1548
        %1558 = vmatpush.bf16.msra.mxu0 %v1547
        %1559 = vmatpush.bf16.msra.mxu0 %v1546
        %1560 = vmatpush.bf16.msra.mxu0 %v1545
        %1561 = vmatpush.bf16.msra.mxu0 %v1544
        %1562 = vmatpush.bf16.msra.mxu0 %v1543
        %1563 = vmatpush.bf16.msra.mxu0 %v1542
        %1564 = vmatpush.bf16.msra.mxu0 %v1541
        %1565 = vmatmul.bf16.gmra.mxu0 %v1501
        %v1566 = vpop.f32.mrf.mxu0
        %v1567 = vadd.f32 0.0, %v1566
        %v1568 = vpop.f32.mrf.mxu0
        %v1569 = vadd.f32 0.0, %v1568
        %1570 = vmatmul.bf16.gmra.mxu0 %v1502
        %v1571 = vpop.f32.mrf.mxu0
        %v1572 = vadd.f32 0.0, %v1571
        %v1573 = vpop.f32.mrf.mxu0
        %v1574 = vadd.f32 0.0, %v1573
        %1575 = vmatmul.bf16.gmra.mxu0 %v1503
        %v1576 = vpop.f32.mrf.mxu0
        %v1577 = vadd.f32 0.0, %v1576
        %v1578 = vpop.f32.mrf.mxu0
        %v1579 = vadd.f32 0.0, %v1578
        %1580 = vmatmul.bf16.gmra.mxu0 %v1504
        %v1581 = vpop.f32.mrf.mxu0
        %v1582 = vadd.f32 0.0, %v1581
        %v1583 = vpop.f32.mrf.mxu0
        %v1584 = vadd.f32 0.0, %v1583
        %1585 = vmatmul.bf16.gmra.mxu0 %v1505
        %v1586 = vpop.f32.mrf.mxu0
        %v1587 = vadd.f32 0.0, %v1586
        %v1588 = vpop.f32.mrf.mxu0
        %v1589 = vadd.f32 0.0, %v1588
        %1590 = vmatmul.bf16.gmra.mxu0 %v1506
        %v1591 = vpop.f32.mrf.mxu0
        %v1592 = vadd.f32 0.0, %v1591
        %v1593 = vpop.f32.mrf.mxu0
        %v1594 = vadd.f32 0.0, %v1593
        %1595 = vmatmul.bf16.gmra.mxu0 %v1507
        %v1596 = vpop.f32.mrf.mxu0
        %v1597 = vadd.f32 0.0, %v1596
        %v1598 = vpop.f32.mrf.mxu0
        %v1599 = vadd.f32 0.0, %v1598
        %1600 = vmatmul.bf16.gmra.mxu0 %v1508
        %v1601 = vpop.f32.mrf.mxu0
        %v1602 = vadd.f32 0.0, %v1601
        %v1603 = vpop.f32.mrf.mxu0
        %v1604 = vadd.f32 0.0, %v1603
        %1605 = vdwg.mxu0
        %1606 = vrot.lane.b32.xlu0 %v1211, 64
        %v1607 = vpop.permute.xlu0 %1606
        %1608 = vrot.lane.b32.xlu0 %v1212, 64
        %v1609 = vpop.permute.xlu0 %1608
        %1610 = vrot.lane.b32.xlu0 %v1213, 64
        %v1611 = vpop.permute.xlu0 %1610
        %1612 = vrot.lane.b32.xlu0 %v1214, 64
        %v1613 = vpop.permute.xlu0 %1612
        %1614 = vrot.lane.b32.xlu0 %v1215, 64
        %v1615 = vpop.permute.xlu0 %1614
        %1616 = vrot.lane.b32.xlu0 %v1216, 64
        %v1617 = vpop.permute.xlu0 %1616
        %1618 = vrot.lane.b32.xlu0 %v1217, 64
        %v1619 = vpop.permute.xlu0 %1618
        %1620 = vrot.lane.b32.xlu0 %v1218, 64
        %v1621 = vpop.permute.xlu0 %1620
        %1622 = vrot.lane.b32.xlu0 %v1251, 64
        %v1623 = vpop.permute.xlu0 %1622
        %1624 = vrot.lane.b32.xlu0 %v1252, 64
        %v1625 = vpop.permute.xlu0 %1624
        %1626 = vrot.lane.b32.xlu0 %v1253, 64
        %v1627 = vpop.permute.xlu0 %1626
        %1628 = vrot.lane.b32.xlu0 %v1254, 64
        %v1629 = vpop.permute.xlu0 %1628
        %1630 = vrot.lane.b32.xlu0 %v1255, 64
        %v1631 = vpop.permute.xlu0 %1630
        %1632 = vrot.lane.b32.xlu0 %v1256, 64
        %v1633 = vpop.permute.xlu0 %1632
        %1634 = vrot.lane.b32.xlu0 %v1257, 64
        %v1635 = vpop.permute.xlu0 %1634
        %1636 = vrot.lane.b32.xlu0 %v1258, 64
        %v1637 = vpop.permute.xlu0 %1636
        %v1639 = vsel %vm1259, %v1607, 0
        %v1642 = vsel %vm1259, %v1609, 0
        %v1645 = vsel %vm1259, %v1611, 0
        %v1648 = vsel %vm1259, %v1613, 0
        %v1651 = vsel %vm1259, %v1615, 0
        %v1654 = vsel %vm1259, %v1617, 0
        %v1657 = vsel %vm1259, %v1619, 0
        %v1660 = vsel %vm1259, %v1621, 0
        %v1663 = vsel %vm1259, %v1623, 0
        %v1666 = vsel %vm1259, %v1625, 0
        %v1669 = vsel %vm1259, %v1627, 0
        %v1672 = vsel %vm1259, %v1629, 0
        %v1675 = vsel %vm1259, %v1631, 0
        %v1678 = vsel %vm1259, %v1633, 0
        %v1681 = vsel %vm1259, %v1635, 0
        %v1684 = vsel %vm1259, %v1637, 0
        %1686 = vmatpush.bf16.xpose.msra.mxu0 %v1684
        %1687 = vmatpush.bf16.xpose.msra.mxu0 %v1681
        %1688 = vmatpush.bf16.xpose.msra.mxu0 %v1678
        %1689 = vmatpush.bf16.xpose.msra.mxu0 %v1675
        %1690 = vmatpush.bf16.xpose.msra.mxu0 %v1672
        %1691 = vmatpush.bf16.xpose.msra.mxu0 %v1669
        %1692 = vmatpush.bf16.xpose.msra.mxu0 %v1666
        %1693 = vmatpush.bf16.xpose.msra.mxu0 %v1663
        %1694 = vmatmul.bf16.gmra.mxu0 %v1639
        %v1695 = vpop.f32.mrf.mxu0
        %v1696 = vadd.f32 %v1177, %v1695
        %v1697 = vpop.f32.mrf.mxu0
        %v1698 = vadd.f32 %v1177, %v1697
        %1699 = vmatmul.bf16.gmra.mxu0 %v1642
        %v1700 = vpop.f32.mrf.mxu0
        %v1701 = vadd.f32 %v1177, %v1700
        %v1702 = vpop.f32.mrf.mxu0
        %v1703 = vadd.f32 %v1177, %v1702
        %1704 = vmatmul.bf16.gmra.mxu0 %v1645
        %v1705 = vpop.f32.mrf.mxu0
        %v1706 = vadd.f32 %v1177, %v1705
        %v1707 = vpop.f32.mrf.mxu0
        %v1708 = vadd.f32 %v1177, %v1707
        %1709 = vmatmul.bf16.gmra.mxu0 %v1648
        %v1710 = vpop.f32.mrf.mxu0
        %v1711 = vadd.f32 %v1177, %v1710
        %v1712 = vpop.f32.mrf.mxu0
        %v1713 = vadd.f32 %v1177, %v1712
        %1714 = vmatmul.bf16.gmra.mxu0 %v1651
        %v1715 = vpop.f32.mrf.mxu0
        %v1716 = vadd.f32 %v1177, %v1715
        %v1717 = vpop.f32.mrf.mxu0
        %v1718 = vadd.f32 %v1177, %v1717
        %1719 = vmatmul.bf16.gmra.mxu0 %v1654
        %v1720 = vpop.f32.mrf.mxu0
        %v1721 = vadd.f32 %v1177, %v1720
        %v1722 = vpop.f32.mrf.mxu0
        %v1723 = vadd.f32 %v1177, %v1722
        %1724 = vmatmul.bf16.gmra.mxu0 %v1657
        %v1725 = vpop.f32.mrf.mxu0
        %v1726 = vadd.f32 %v1177, %v1725
        %v1727 = vpop.f32.mrf.mxu0
        %v1728 = vadd.f32 %v1177, %v1727
        %1729 = vmatmul.bf16.gmra.mxu0 %v1660
        %v1730 = vpop.f32.mrf.mxu0
        %v1731 = vadd.f32 %v1177, %v1730
        %v1732 = vpop.f32.mrf.mxu0
        %v1733 = vadd.f32 %v1177, %v1732
        %1734 = vdwg.mxu0
        %1735 = vmax.xlane.f32.xlu0 %v1696
        %v1736 = vpop.xlane.xlu0 %1735
        %1737 = vmax.xlane.f32.xlu0 %v1698
        %v1738 = vpop.xlane.xlu0 %1737
        %1739 = vmax.xlane.f32.xlu0 %v1701
        %v1740 = vpop.xlane.xlu0 %1739
        %1741 = vmax.xlane.f32.xlu0 %v1703
        %v1742 = vpop.xlane.xlu0 %1741
        %1743 = vmax.xlane.f32.xlu0 %v1706
        %v1744 = vpop.xlane.xlu0 %1743
        %1745 = vmax.xlane.f32.xlu0 %v1708
        %v1746 = vpop.xlane.xlu0 %1745
        %1747 = vmax.xlane.f32.xlu0 %v1711
        %v1748 = vpop.xlane.xlu0 %1747
        %1749 = vmax.xlane.f32.xlu0 %v1713
        %v1750 = vpop.xlane.xlu0 %1749
        %1751 = vmax.xlane.f32.xlu0 %v1716
        %v1752 = vpop.xlane.xlu0 %1751
        %1753 = vmax.xlane.f32.xlu0 %v1718
        %v1754 = vpop.xlane.xlu0 %1753
        %1755 = vmax.xlane.f32.xlu0 %v1721
        %v1756 = vpop.xlane.xlu0 %1755
        %1757 = vmax.xlane.f32.xlu0 %v1723
        %v1758 = vpop.xlane.xlu0 %1757
        %1759 = vmax.xlane.f32.xlu0 %v1726
        %v1760 = vpop.xlane.xlu0 %1759
        %1761 = vmax.xlane.f32.xlu0 %v1728
        %v1762 = vpop.xlane.xlu0 %1761
        %1763 = vmax.xlane.f32.xlu0 %v1731
        %v1764 = vpop.xlane.xlu0 %1763
        %1765 = vmax.xlane.f32.xlu0 %v1733
        %v1766 = vpop.xlane.xlu0 %1765
        %v1767 = vsub.f32 %v1696, %v1736
        %v1768 = vsub.f32 %v1698, %v1738
        %v1769 = vsub.f32 %v1701, %v1740
        %v1770 = vsub.f32 %v1703, %v1742
        %v1771 = vsub.f32 %v1706, %v1744
        %v1772 = vsub.f32 %v1708, %v1746
        %v1773 = vsub.f32 %v1711, %v1748
        %v1774 = vsub.f32 %v1713, %v1750
        %v1775 = vsub.f32 %v1716, %v1752
        %v1776 = vsub.f32 %v1718, %v1754
        %v1777 = vsub.f32 %v1721, %v1756
        %v1778 = vsub.f32 %v1723, %v1758
        %v1779 = vsub.f32 %v1726, %v1760
        %v1780 = vsub.f32 %v1728, %v1762
        %v1781 = vsub.f32 %v1731, %v1764
        %v1782 = vsub.f32 %v1733, %v1766
        %v1783 = vmul.f32 %v1767, 1.442695
        %v1784 = vpow.pop %v1783
        %v1785 = vmul.f32 %v1768, 1.442695
        %v1786 = vpow.pop %v1785
        %v1787 = vmul.f32 %v1769, 1.442695
        %v1788 = vpow.pop %v1787
        %v1789 = vmul.f32 %v1770, 1.442695
        %v1790 = vpow.pop %v1789
        %v1791 = vmul.f32 %v1771, 1.442695
        %v1792 = vpow.pop %v1791
        %v1793 = vmul.f32 %v1772, 1.442695
        %v1794 = vpow.pop %v1793
        %v1795 = vmul.f32 %v1773, 1.442695
        %v1796 = vpow.pop %v1795
        %v1797 = vmul.f32 %v1774, 1.442695
        %v1798 = vpow.pop %v1797
        %v1799 = vmul.f32 %v1775, 1.442695
        %v1800 = vpow.pop %v1799
        %v1801 = vmul.f32 %v1776, 1.442695
        %v1802 = vpow.pop %v1801
        %v1803 = vmul.f32 %v1777, 1.442695
        %v1804 = vpow.pop %v1803
        %v1805 = vmul.f32 %v1778, 1.442695
        %v1806 = vpow.pop %v1805
        %v1807 = vmul.f32 %v1779, 1.442695
        %v1808 = vpow.pop %v1807
        %v1809 = vmul.f32 %v1780, 1.442695
        %v1810 = vpow.pop %v1809
        %v1811 = vmul.f32 %v1781, 1.442695
        %v1812 = vpow.pop %v1811
        %v1813 = vmul.f32 %v1782, 1.442695
        %v1814 = vpow.pop %v1813
        %1815 = vadd.xlane.f32.xlu0 %v1784
        %v1816 = vpop.xlane.xlu0 %1815
        %1817 = vadd.xlane.f32.xlu0 %v1786
        %v1818 = vpop.xlane.xlu0 %1817
        %1819 = vadd.xlane.f32.xlu0 %v1788
        %v1820 = vpop.xlane.xlu0 %1819
        %1821 = vadd.xlane.f32.xlu0 %v1790
        %v1822 = vpop.xlane.xlu0 %1821
        %1823 = vadd.xlane.f32.xlu0 %v1792
        %v1824 = vpop.xlane.xlu0 %1823
        %1825 = vadd.xlane.f32.xlu0 %v1794
        %v1826 = vpop.xlane.xlu0 %1825
        %1827 = vadd.xlane.f32.xlu0 %v1796
        %v1828 = vpop.xlane.xlu0 %1827
        %1829 = vadd.xlane.f32.xlu0 %v1798
        %v1830 = vpop.xlane.xlu0 %1829
        %1831 = vadd.xlane.f32.xlu0 %v1800
        %v1832 = vpop.xlane.xlu0 %1831
        %1833 = vadd.xlane.f32.xlu0 %v1802
        %v1834 = vpop.xlane.xlu0 %1833
        %1835 = vadd.xlane.f32.xlu0 %v1804
        %v1836 = vpop.xlane.xlu0 %1835
        %1837 = vadd.xlane.f32.xlu0 %v1806
        %v1838 = vpop.xlane.xlu0 %1837
        %1839 = vadd.xlane.f32.xlu0 %v1808
        %v1840 = vpop.xlane.xlu0 %1839
        %1841 = vadd.xlane.f32.xlu0 %v1810
        %v1842 = vpop.xlane.xlu0 %1841
        %1843 = vadd.xlane.f32.xlu0 %v1812
        %v1844 = vpop.xlane.xlu0 %1843
        %1845 = vadd.xlane.f32.xlu0 %v1814
        %v1846 = vpop.xlane.xlu0 %1845
        %v1847 = vrcp.pop %v1816
        %v1848 = vrcp.pop %v1818
        %v1849 = vrcp.pop %v1820
        %v1850 = vrcp.pop %v1822
        %v1851 = vrcp.pop %v1824
        %v1852 = vrcp.pop %v1826
        %v1853 = vrcp.pop %v1828
        %v1854 = vrcp.pop %v1830
        %v1855 = vrcp.pop %v1832
        %v1856 = vrcp.pop %v1834
        %v1857 = vrcp.pop %v1836
        %v1858 = vrcp.pop %v1838
        %v1859 = vrcp.pop %v1840
        %v1860 = vrcp.pop %v1842
        %v1861 = vrcp.pop %v1844
        %v1862 = vrcp.pop %v1846
        %v1863 = vmul.f32 %v1784, %v1847
        %v1864 = vmul.f32 %v1786, %v1848
        %v1865 = vmul.f32 %v1788, %v1849
        %v1866 = vmul.f32 %v1790, %v1850
        %v1867 = vmul.f32 %v1792, %v1851
        %v1868 = vmul.f32 %v1794, %v1852
        %v1869 = vmul.f32 %v1796, %v1853
        %v1870 = vmul.f32 %v1798, %v1854
        %v1871 = vmul.f32 %v1800, %v1855
        %v1872 = vmul.f32 %v1802, %v1856
        %v1873 = vmul.f32 %v1804, %v1857
        %v1874 = vmul.f32 %v1806, %v1858
        %v1875 = vmul.f32 %v1808, %v1859
        %v1876 = vmul.f32 %v1810, %v1860
        %v1877 = vmul.f32 %v1812, %v1861
        %v1878 = vmul.f32 %v1814, %v1862
        %v1879 = vpack.c.bf16 %v1864, %v1863
        %v1880 = vpack.c.bf16 %v1866, %v1865
        %v1881 = vpack.c.bf16 %v1868, %v1867
        %v1882 = vpack.c.bf16 %v1870, %v1869
        %v1883 = vpack.c.bf16 %v1872, %v1871
        %v1884 = vpack.c.bf16 %v1874, %v1873
        %v1885 = vpack.c.bf16 %v1876, %v1875
        %v1886 = vpack.c.bf16 %v1878, %v1877
        %1887 = vrot.lane.b32.xlu0 %v1541, 64
        %v1888 = vpop.permute.xlu0 %1887
        %1889 = vrot.lane.b32.xlu0 %v1542, 64
        %v1890 = vpop.permute.xlu0 %1889
        %1891 = vrot.lane.b32.xlu0 %v1543, 64
        %v1892 = vpop.permute.xlu0 %1891
        %1893 = vrot.lane.b32.xlu0 %v1544, 64
        %v1894 = vpop.permute.xlu0 %1893
        %1895 = vrot.lane.b32.xlu0 %v1545, 64
        %v1896 = vpop.permute.xlu0 %1895
        %1897 = vrot.lane.b32.xlu0 %v1546, 64
        %v1898 = vpop.permute.xlu0 %1897
        %1899 = vrot.lane.b32.xlu0 %v1547, 64
        %v1900 = vpop.permute.xlu0 %1899
        %1901 = vrot.lane.b32.xlu0 %v1548, 64
        %v1902 = vpop.permute.xlu0 %1901
        %1911 = vmatpush.bf16.msra.mxu0 %v1902
        %1912 = vmatpush.bf16.msra.mxu0 %v1900
        %1913 = vmatpush.bf16.msra.mxu0 %v1898
        %1914 = vmatpush.bf16.msra.mxu0 %v1896
        %1915 = vmatpush.bf16.msra.mxu0 %v1894
        %1916 = vmatpush.bf16.msra.mxu0 %v1892
        %1917 = vmatpush.bf16.msra.mxu0 %v1890
        %1918 = vmatpush.bf16.msra.mxu0 %v1888
        %1919 = vmatmul.bf16.gmra.mxu0 %v1879
        %v1920 = vpop.f32.mrf.mxu0
        %v1921 = vadd.f32 0.0, %v1920
        %v1922 = vpop.f32.mrf.mxu0
        %v1923 = vadd.f32 0.0, %v1922
        %1924 = vmatmul.bf16.gmra.mxu0 %v1880
        %v1925 = vpop.f32.mrf.mxu0
        %v1926 = vadd.f32 0.0, %v1925
        %v1927 = vpop.f32.mrf.mxu0
        %v1928 = vadd.f32 0.0, %v1927
        %1929 = vmatmul.bf16.gmra.mxu0 %v1881
        %v1930 = vpop.f32.mrf.mxu0
        %v1931 = vadd.f32 0.0, %v1930
        %v1932 = vpop.f32.mrf.mxu0
        %v1933 = vadd.f32 0.0, %v1932
        %1934 = vmatmul.bf16.gmra.mxu0 %v1882
        %v1935 = vpop.f32.mrf.mxu0
        %v1936 = vadd.f32 0.0, %v1935
        %v1937 = vpop.f32.mrf.mxu0
        %v1938 = vadd.f32 0.0, %v1937
        %1939 = vmatmul.bf16.gmra.mxu0 %v1883
        %v1940 = vpop.f32.mrf.mxu0
        %v1941 = vadd.f32 0.0, %v1940
        %v1942 = vpop.f32.mrf.mxu0
        %v1943 = vadd.f32 0.0, %v1942
        %1944 = vmatmul.bf16.gmra.mxu0 %v1884
        %v1945 = vpop.f32.mrf.mxu0
        %v1946 = vadd.f32 0.0, %v1945
        %v1947 = vpop.f32.mrf.mxu0
        %v1948 = vadd.f32 0.0, %v1947
        %1949 = vmatmul.bf16.gmra.mxu0 %v1885
        %v1950 = vpop.f32.mrf.mxu0
        %v1951 = vadd.f32 0.0, %v1950
        %v1952 = vpop.f32.mrf.mxu0
        %v1953 = vadd.f32 0.0, %v1952
        %1954 = vmatmul.bf16.gmra.mxu0 %v1886
        %v1955 = vpop.f32.mrf.mxu0
        %v1956 = vadd.f32 0.0, %v1955
        %v1957 = vpop.f32.mrf.mxu0
        %v1958 = vadd.f32 0.0, %v1957
        %1959 = vdwg.mxu0
        %1976 = vrot.lane.b32.xlu0 %v1921, 64
        %v1977 = vpop.permute.xlu0 %1976
        %1978 = vrot.lane.b32.xlu0 %v1923, 64
        %v1979 = vpop.permute.xlu0 %1978
        %1980 = vrot.lane.b32.xlu0 %v1926, 64
        %v1981 = vpop.permute.xlu0 %1980
        %1982 = vrot.lane.b32.xlu0 %v1928, 64
        %v1983 = vpop.permute.xlu0 %1982
        %1984 = vrot.lane.b32.xlu0 %v1931, 64
        %v1985 = vpop.permute.xlu0 %1984
        %1986 = vrot.lane.b32.xlu0 %v1933, 64
        %v1987 = vpop.permute.xlu0 %1986
        %1988 = vrot.lane.b32.xlu0 %v1936, 64
        %v1989 = vpop.permute.xlu0 %1988
        %1990 = vrot.lane.b32.xlu0 %v1938, 64
        %v1991 = vpop.permute.xlu0 %1990
        %1992 = vrot.lane.b32.xlu0 %v1941, 64
        %v1993 = vpop.permute.xlu0 %1992
        %1994 = vrot.lane.b32.xlu0 %v1943, 64
        %v1995 = vpop.permute.xlu0 %1994
        %1996 = vrot.lane.b32.xlu0 %v1946, 64
        %v1997 = vpop.permute.xlu0 %1996
        %1998 = vrot.lane.b32.xlu0 %v1948, 64
        %v1999 = vpop.permute.xlu0 %1998
        %2000 = vrot.lane.b32.xlu0 %v1951, 64
        %v2001 = vpop.permute.xlu0 %2000
        %2002 = vrot.lane.b32.xlu0 %v1953, 64
        %v2003 = vpop.permute.xlu0 %2002
        %2004 = vrot.lane.b32.xlu0 %v1956, 64
        %v2005 = vpop.permute.xlu0 %2004
        %2006 = vrot.lane.b32.xlu0 %v1958, 64
        %v2007 = vpop.permute.xlu0 %2006
        %v2024 = vsel %vm1259, %v1567, %v1977
        %v2025 = vsel %vm1259, %v1569, %v1979
        %v2026 = vsel %vm1259, %v1572, %v1981
        %v2027 = vsel %vm1259, %v1574, %v1983
        %v2028 = vsel %vm1259, %v1577, %v1985
        %v2029 = vsel %vm1259, %v1579, %v1987
        %v2030 = vsel %vm1259, %v1582, %v1989
        %v2031 = vsel %vm1259, %v1584, %v1991
        %v2032 = vsel %vm1259, %v1587, %v1993
        %v2033 = vsel %vm1259, %v1589, %v1995
        %v2034 = vsel %vm1259, %v1592, %v1997
        %v2035 = vsel %vm1259, %v1594, %v1999
        %v2036 = vsel %vm1259, %v1597, %v2001
        %v2037 = vsel %vm1259, %v1599, %v2003
        %v2038 = vsel %vm1259, %v1602, %v2005
        %v2039 = vsel %vm1259, %v1604, %v2007
        %v2040 = vpack.c.bf16 %v2025, %v2024
        %v2041 = vpack.c.bf16 %v2027, %v2026
        %v2042 = vpack.c.bf16 %v2029, %v2028
        %v2043 = vpack.c.bf16 %v2031, %v2030
        %v2044 = vpack.c.bf16 %v2033, %v2032
        %v2045 = vpack.c.bf16 %v2035, %v2034
        %v2046 = vpack.c.bf16 %v2037, %v2036
        %v2047 = vpack.c.bf16 %v2039, %v2038
        %v2048 = vld [vmem:[#allocation11] sm:$0xf]
        %v2049 = vld [vmem:[#allocation11 + $0x4] sm:$0xf]
        %v2050 = vld [vmem:[#allocation11 + $0x8] sm:$0xf]
        %v2051 = vld [vmem:[#allocation11 + $0xc] sm:$0xf]
        %v2052 = vld [vmem:[#allocation11 + $0x10] sm:$0xf]
        %v2053 = vld [vmem:[#allocation11 + $0x14] sm:$0xf]
        %v2054 = vld [vmem:[#allocation11 + $0x18] sm:$0xf]
        %v2055 = vld [vmem:[#allocation11 + $0x1c] sm:$0xf]
        %v2056 = vld [vmem:[#allocation11 + $0x20] sm:$0xf]
        %v2057 = vld [vmem:[#allocation11 + $0x24] sm:$0xf]
        %v2058 = vld [vmem:[#allocation11 + $0x28] sm:$0xf]
        %v2059 = vld [vmem:[#allocation11 + $0x2c] sm:$0xf]
        %v2060 = vld [vmem:[#allocation11 + $0x30] sm:$0xf]
        %v2061 = vld [vmem:[#allocation11 + $0x34] sm:$0xf]
        %v2062 = vld [vmem:[#allocation11 + $0x38] sm:$0xf]
        %v2063 = vld [vmem:[#allocation11 + $0x3c] sm:$0xf]
        %v2064 = vld [vmem:[#allocation13] sm:$0x1]
        %v2066 = vperm.slane %v2064, 0
        %v2084 = vunpack.c.l.b16 %v2048
        %v2085 = vunpack.c.l.b16 %v2049
        %v2086 = vunpack.c.l.b16 %v2050
        %v2087 = vunpack.c.l.b16 %v2051
        %v2088 = vunpack.c.l.b16 %v2052
        %v2089 = vunpack.c.l.b16 %v2053
        %v2090 = vunpack.c.l.b16 %v2054
        %v2091 = vunpack.c.l.b16 %v2055
        %v2092 = vunpack.c.l.b16 %v2056
        %v2093 = vunpack.c.l.b16 %v2057
        %v2094 = vunpack.c.l.b16 %v2058
        %v2095 = vunpack.c.l.b16 %v2059
        %v2096 = vunpack.c.l.b16 %v2060
        %v2097 = vunpack.c.l.b16 %v2061
        %v2098 = vunpack.c.l.b16 %v2062
        %v2099 = vunpack.c.l.b16 %v2063
        %v2100 = vpack.c.b16 %v2085, %v2084
        %v2101 = vpack.c.b16 %v2087, %v2086
        %v2102 = vpack.c.b16 %v2089, %v2088
        %v2103 = vpack.c.b16 %v2091, %v2090
        %v2104 = vpack.c.b16 %v2093, %v2092
        %v2105 = vpack.c.b16 %v2095, %v2094
        %v2106 = vpack.c.b16 %v2097, %v2096
        %v2107 = vpack.c.b16 %v2099, %v2098
        %2116 = vmatpush.bf16.msra.mxu0 %v2107
        %2117 = vmatpush.bf16.msra.mxu0 %v2106
        %2118 = vmatpush.bf16.msra.mxu0 %v2105
        %2119 = vmatpush.bf16.msra.mxu0 %v2104
        %2120 = vmatpush.bf16.msra.mxu0 %v2103
        %2121 = vmatpush.bf16.msra.mxu0 %v2102
        %2122 = vmatpush.bf16.msra.mxu0 %v2101
        %2123 = vmatpush.bf16.msra.mxu0 %v2100
        %2124 = vmatmul.bf16.gmra.mxu0 %v2040
        %v2125 = vpop.f32.mrf.mxu0
        %v2126 = vadd.f32 %v2066, %v2125
        %v2127 = vpop.f32.mrf.mxu0
        %v2128 = vadd.f32 %v2066, %v2127
        %2129 = vmatmul.bf16.gmra.mxu0 %v2041
        %v2130 = vpop.f32.mrf.mxu0
        %v2131 = vadd.f32 %v2066, %v2130
        %v2132 = vpop.f32.mrf.mxu0
        %v2133 = vadd.f32 %v2066, %v2132
        %2134 = vmatmul.bf16.gmra.mxu0 %v2042
        %v2135 = vpop.f32.mrf.mxu0
        %v2136 = vadd.f32 %v2066, %v2135
        %v2137 = vpop.f32.mrf.mxu0
        %v2138 = vadd.f32 %v2066, %v2137
        %2139 = vmatmul.bf16.gmra.mxu0 %v2043
        %v2140 = vpop.f32.mrf.mxu0
        %v2141 = vadd.f32 %v2066, %v2140
        %v2142 = vpop.f32.mrf.mxu0
        %v2143 = vadd.f32 %v2066, %v2142
        %2144 = vmatmul.bf16.gmra.mxu0 %v2044
        %v2145 = vpop.f32.mrf.mxu0
        %v2146 = vadd.f32 %v2066, %v2145
        %v2147 = vpop.f32.mrf.mxu0
        %v2148 = vadd.f32 %v2066, %v2147
        %2149 = vmatmul.bf16.gmra.mxu0 %v2045
        %v2150 = vpop.f32.mrf.mxu0
        %v2151 = vadd.f32 %v2066, %v2150
        %v2152 = vpop.f32.mrf.mxu0
        %v2153 = vadd.f32 %v2066, %v2152
        %2154 = vmatmul.bf16.gmra.mxu0 %v2046
        %v2155 = vpop.f32.mrf.mxu0
        %v2156 = vadd.f32 %v2066, %v2155
        %v2157 = vpop.f32.mrf.mxu0
        %v2158 = vadd.f32 %v2066, %v2157
        %2159 = vmatmul.bf16.gmra.mxu0 %v2047
        %v2160 = vpop.f32.mrf.mxu0
        %v2161 = vadd.f32 %v2066, %v2160
        %v2162 = vpop.f32.mrf.mxu0
        %v2163 = vadd.f32 %v2066, %v2162
        %2164 = vdwg.mxu0
        %v2165 = vadd.f32 %v760, %v2126
        %v2166 = vadd.f32 %v761, %v2128
        %v2167 = vadd.f32 %v762, %v2131
        %v2168 = vadd.f32 %v763, %v2133
        %v2169 = vadd.f32 %v764, %v2136
        %v2170 = vadd.f32 %v765, %v2138
        %v2171 = vadd.f32 %v766, %v2141
        %v2172 = vadd.f32 %v767, %v2143
        %v2173 = vadd.f32 %v768, %v2146
        %v2174 = vadd.f32 %v769, %v2148
        %v2175 = vadd.f32 %v770, %v2151
        %v2176 = vadd.f32 %v771, %v2153
        %v2177 = vadd.f32 %v772, %v2156
        %v2178 = vadd.f32 %v773, %v2158
        %v2179 = vadd.f32 %v774, %v2161
        %v2180 = vadd.f32 %v775, %v2163
        %v2181 = vld [vmem:[%s9] sm:$0x1]
        %v2182 = vld [vmem:[%s10] sm:$0x1]
        %2183 = vadd.xlane.f32.xlu0 %v2165
        %v2184 = vpop.xlane.xlu0 %2183
        %2185 = vadd.xlane.f32.xlu0 %v2166
        %v2186 = vpop.xlane.xlu0 %2185
        %2187 = vadd.xlane.f32.xlu0 %v2167
        %v2188 = vpop.xlane.xlu0 %2187
        %2189 = vadd.xlane.f32.xlu0 %v2168
        %v2190 = vpop.xlane.xlu0 %2189
        %2191 = vadd.xlane.f32.xlu0 %v2169
        %v2192 = vpop.xlane.xlu0 %2191
        %2193 = vadd.xlane.f32.xlu0 %v2170
        %v2194 = vpop.xlane.xlu0 %2193
        %2195 = vadd.xlane.f32.xlu0 %v2171
        %v2196 = vpop.xlane.xlu0 %2195
        %2197 = vadd.xlane.f32.xlu0 %v2172
        %v2198 = vpop.xlane.xlu0 %2197
        %2199 = vadd.xlane.f32.xlu0 %v2173
        %v2200 = vpop.xlane.xlu0 %2199
        %2201 = vadd.xlane.f32.xlu0 %v2174
        %v2202 = vpop.xlane.xlu0 %2201
        %2203 = vadd.xlane.f32.xlu0 %v2175
        %v2204 = vpop.xlane.xlu0 %2203
        %2205 = vadd.xlane.f32.xlu0 %v2176
        %v2206 = vpop.xlane.xlu0 %2205
        %2207 = vadd.xlane.f32.xlu0 %v2177
        %v2208 = vpop.xlane.xlu0 %2207
        %2209 = vadd.xlane.f32.xlu0 %v2178
        %v2210 = vpop.xlane.xlu0 %2209
        %2211 = vadd.xlane.f32.xlu0 %v2179
        %v2212 = vpop.xlane.xlu0 %2211
        %2213 = vadd.xlane.f32.xlu0 %v2180
        %v2214 = vpop.xlane.xlu0 %2213
        %v2215 = vrcp.pop 128.0
        %v2216 = vmul.f32 128.0, %v2215
        %v2217 = vsub.f32 1.0, %v2216
        %v2218 = vmul.f32 %v2215, %v2217
        %v2219 = vadd.f32 %v2215, %v2218
        %vm2220 = vweird.f32 %v2215
        %v2221 = vsel %vm2220, %v2215, %v2219
        %v2222 = vmul.f32 %v2184, %v2221
        %v2223 = vmul.f32 %v2186, %v2221
        %v2224 = vmul.f32 %v2188, %v2221
        %v2225 = vmul.f32 %v2190, %v2221
        %v2226 = vmul.f32 %v2192, %v2221
        %v2227 = vmul.f32 %v2194, %v2221
        %v2228 = vmul.f32 %v2196, %v2221
        %v2229 = vmul.f32 %v2198, %v2221
        %v2230 = vmul.f32 %v2200, %v2221
        %v2231 = vmul.f32 %v2202, %v2221
        %v2232 = vmul.f32 %v2204, %v2221
        %v2233 = vmul.f32 %v2206, %v2221
        %v2234 = vmul.f32 %v2208, %v2221
        %v2235 = vmul.f32 %v2210, %v2221
        %v2236 = vmul.f32 %v2212, %v2221
        %v2237 = vmul.f32 %v2214, %v2221
        %v2238 = vsub.f32 %v2165, %v2222
        %v2239 = vsub.f32 %v2166, %v2223
        %v2240 = vsub.f32 %v2167, %v2224
        %v2241 = vsub.f32 %v2168, %v2225
        %v2242 = vsub.f32 %v2169, %v2226
        %v2243 = vsub.f32 %v2170, %v2227
        %v2244 = vsub.f32 %v2171, %v2228
        %v2245 = vsub.f32 %v2172, %v2229
        %v2246 = vsub.f32 %v2173, %v2230
        %v2247 = vsub.f32 %v2174, %v2231
        %v2248 = vsub.f32 %v2175, %v2232
        %v2249 = vsub.f32 %v2176, %v2233
        %v2250 = vsub.f32 %v2177, %v2234
        %v2251 = vsub.f32 %v2178, %v2235
        %v2252 = vsub.f32 %v2179, %v2236
        %v2253 = vsub.f32 %v2180, %v2237
        %v2254 = vmul.f32 %v2238, %v2238
        %v2255 = vmul.f32 %v2239, %v2239
        %v2256 = vmul.f32 %v2240, %v2240
        %v2257 = vmul.f32 %v2241, %v2241
        %v2258 = vmul.f32 %v2242, %v2242
        %v2259 = vmul.f32 %v2243, %v2243
        %v2260 = vmul.f32 %v2244, %v2244
        %v2261 = vmul.f32 %v2245, %v2245
        %v2262 = vmul.f32 %v2246, %v2246
        %v2263 = vmul.f32 %v2247, %v2247
        %v2264 = vmul.f32 %v2248, %v2248
        %v2265 = vmul.f32 %v2249, %v2249
        %v2266 = vmul.f32 %v2250, %v2250
        %v2267 = vmul.f32 %v2251, %v2251
        %v2268 = vmul.f32 %v2252, %v2252
        %v2269 = vmul.f32 %v2253, %v2253
        %2270 = vadd.xlane.f32.xlu0 %v2254
        %v2271 = vpop.xlane.xlu0 %2270
        %2272 = vadd.xlane.f32.xlu0 %v2255
        %v2273 = vpop.xlane.xlu0 %2272
        %2274 = vadd.xlane.f32.xlu0 %v2256
        %v2275 = vpop.xlane.xlu0 %2274
        %2276 = vadd.xlane.f32.xlu0 %v2257
        %v2277 = vpop.xlane.xlu0 %2276
        %2278 = vadd.xlane.f32.xlu0 %v2258
        %v2279 = vpop.xlane.xlu0 %2278
        %2280 = vadd.xlane.f32.xlu0 %v2259
        %v2281 = vpop.xlane.xlu0 %2280
        %2282 = vadd.xlane.f32.xlu0 %v2260
        %v2283 = vpop.xlane.xlu0 %2282
        %2284 = vadd.xlane.f32.xlu0 %v2261
        %v2285 = vpop.xlane.xlu0 %2284
        %2286 = vadd.xlane.f32.xlu0 %v2262
        %v2287 = vpop.xlane.xlu0 %2286
        %2288 = vadd.xlane.f32.xlu0 %v2263
        %v2289 = vpop.xlane.xlu0 %2288
        %2290 = vadd.xlane.f32.xlu0 %v2264
        %v2291 = vpop.xlane.xlu0 %2290
        %2292 = vadd.xlane.f32.xlu0 %v2265
        %v2293 = vpop.xlane.xlu0 %2292
        %2294 = vadd.xlane.f32.xlu0 %v2266
        %v2295 = vpop.xlane.xlu0 %2294
        %2296 = vadd.xlane.f32.xlu0 %v2267
        %v2297 = vpop.xlane.xlu0 %2296
        %2298 = vadd.xlane.f32.xlu0 %v2268
        %v2299 = vpop.xlane.xlu0 %2298
        %2300 = vadd.xlane.f32.xlu0 %v2269
        %v2301 = vpop.xlane.xlu0 %2300
        %v2302 = vmul.f32 %v2271, %v2221
        %v2303 = vmul.f32 %v2273, %v2221
        %v2304 = vmul.f32 %v2275, %v2221
        %v2305 = vmul.f32 %v2277, %v2221
        %v2306 = vmul.f32 %v2279, %v2221
        %v2307 = vmul.f32 %v2281, %v2221
        %v2308 = vmul.f32 %v2283, %v2221
        %v2309 = vmul.f32 %v2285, %v2221
        %v2310 = vmul.f32 %v2287, %v2221
        %v2311 = vmul.f32 %v2289, %v2221
        %v2312 = vmul.f32 %v2291, %v2221
        %v2313 = vmul.f32 %v2293, %v2221
        %v2314 = vmul.f32 %v2295, %v2221
        %v2315 = vmul.f32 %v2297, %v2221
        %v2316 = vmul.f32 %v2299, %v2221
        %v2317 = vmul.f32 %v2301, %v2221
        %v2318 = vadd.f32 %v2302, 1e-12
        %v2319 = vadd.f32 %v2303, 1e-12
        %v2320 = vadd.f32 %v2304, 1e-12
        %v2321 = vadd.f32 %v2305, 1e-12
        %v2322 = vadd.f32 %v2306, 1e-12
        %v2323 = vadd.f32 %v2307, 1e-12
        %v2324 = vadd.f32 %v2308, 1e-12
        %v2325 = vadd.f32 %v2309, 1e-12
        %v2326 = vadd.f32 %v2310, 1e-12
        %v2327 = vadd.f32 %v2311, 1e-12
        %v2328 = vadd.f32 %v2312, 1e-12
        %v2329 = vadd.f32 %v2313, 1e-12
        %v2330 = vadd.f32 %v2314, 1e-12
        %v2331 = vadd.f32 %v2315, 1e-12
        %v2332 = vadd.f32 %v2316, 1e-12
        %v2333 = vadd.f32 %v2317, 1e-12
        %v2334 = vrsqrt.pop %v2318
        %v2335 = vmul.f32 %v2334, %v2318
        %v2336 = vmul.f32 %v2335, %v2334
        %v2337 = vmul.f32 0.5, %v2336
        %v2338 = vsub.f32 1.5, %v2337
        %v2339 = vmul.f32 %v2334, %v2338
        %vm2340 = vweird.f32 %v2318
        %vm2341 = vweird.f32 %v2334
        %vm2342 = vmor %vm2340, %vm2341
        %v2343 = vsel %vm2342, %v2334, %v2339
        %v2344 = vrsqrt.pop %v2319
        %v2345 = vmul.f32 %v2344, %v2319
        %v2346 = vmul.f32 %v2345, %v2344
        %v2347 = vmul.f32 0.5, %v2346
        %v2348 = vsub.f32 1.5, %v2347
        %v2349 = vmul.f32 %v2344, %v2348
        %vm2350 = vweird.f32 %v2319
        %vm2351 = vweird.f32 %v2344
        %vm2352 = vmor %vm2350, %vm2351
        %v2353 = vsel %vm2352, %v2344, %v2349
        %v2354 = vrsqrt.pop %v2320
        %v2355 = vmul.f32 %v2354, %v2320
        %v2356 = vmul.f32 %v2355, %v2354
        %v2357 = vmul.f32 0.5, %v2356
        %v2358 = vsub.f32 1.5, %v2357
        %v2359 = vmul.f32 %v2354, %v2358
        %vm2360 = vweird.f32 %v2320
        %vm2361 = vweird.f32 %v2354
        %vm2362 = vmor %vm2360, %vm2361
        %v2363 = vsel %vm2362, %v2354, %v2359
        %v2364 = vrsqrt.pop %v2321
        %v2365 = vmul.f32 %v2364, %v2321
        %v2366 = vmul.f32 %v2365, %v2364
        %v2367 = vmul.f32 0.5, %v2366
        %v2368 = vsub.f32 1.5, %v2367
        %v2369 = vmul.f32 %v2364, %v2368
        %vm2370 = vweird.f32 %v2321
        %vm2371 = vweird.f32 %v2364
        %vm2372 = vmor %vm2370, %vm2371
        %v2373 = vsel %vm2372, %v2364, %v2369
        %v2374 = vrsqrt.pop %v2322
        %v2375 = vmul.f32 %v2374, %v2322
        %v2376 = vmul.f32 %v2375, %v2374
        %v2377 = vmul.f32 0.5, %v2376
        %v2378 = vsub.f32 1.5, %v2377
        %v2379 = vmul.f32 %v2374, %v2378
        %vm2380 = vweird.f32 %v2322
        %vm2381 = vweird.f32 %v2374
        %vm2382 = vmor %vm2380, %vm2381
        %v2383 = vsel %vm2382, %v2374, %v2379
        %v2384 = vrsqrt.pop %v2323
        %v2385 = vmul.f32 %v2384, %v2323
        %v2386 = vmul.f32 %v2385, %v2384
        %v2387 = vmul.f32 0.5, %v2386
        %v2388 = vsub.f32 1.5, %v2387
        %v2389 = vmul.f32 %v2384, %v2388
        %vm2390 = vweird.f32 %v2323
        %vm2391 = vweird.f32 %v2384
        %vm2392 = vmor %vm2390, %vm2391
        %v2393 = vsel %vm2392, %v2384, %v2389
        %v2394 = vrsqrt.pop %v2324
        %v2395 = vmul.f32 %v2394, %v2324
        %v2396 = vmul.f32 %v2395, %v2394
        %v2397 = vmul.f32 0.5, %v2396
        %v2398 = vsub.f32 1.5, %v2397
        %v2399 = vmul.f32 %v2394, %v2398
        %vm2400 = vweird.f32 %v2324
        %vm2401 = vweird.f32 %v2394
        %vm2402 = vmor %vm2400, %vm2401
        %v2403 = vsel %vm2402, %v2394, %v2399
        %v2404 = vrsqrt.pop %v2325
        %v2405 = vmul.f32 %v2404, %v2325
        %v2406 = vmul.f32 %v2405, %v2404
        %v2407 = vmul.f32 0.5, %v2406
        %v2408 = vsub.f32 1.5, %v2407
        %v2409 = vmul.f32 %v2404, %v2408
        %vm2410 = vweird.f32 %v2325
        %vm2411 = vweird.f32 %v2404
        %vm2412 = vmor %vm2410, %vm2411
        %v2413 = vsel %vm2412, %v2404, %v2409
        %v2414 = vrsqrt.pop %v2326
        %v2415 = vmul.f32 %v2414, %v2326
        %v2416 = vmul.f32 %v2415, %v2414
        %v2417 = vmul.f32 0.5, %v2416
        %v2418 = vsub.f32 1.5, %v2417
        %v2419 = vmul.f32 %v2414, %v2418
        %vm2420 = vweird.f32 %v2326
        %vm2421 = vweird.f32 %v2414
        %vm2422 = vmor %vm2420, %vm2421
        %v2423 = vsel %vm2422, %v2414, %v2419
        %v2424 = vrsqrt.pop %v2327
        %v2425 = vmul.f32 %v2424, %v2327
        %v2426 = vmul.f32 %v2425, %v2424
        %v2427 = vmul.f32 0.5, %v2426
        %v2428 = vsub.f32 1.5, %v2427
        %v2429 = vmul.f32 %v2424, %v2428
        %vm2430 = vweird.f32 %v2327
        %vm2431 = vweird.f32 %v2424
        %vm2432 = vmor %vm2430, %vm2431
        %v2433 = vsel %vm2432, %v2424, %v2429
        %v2434 = vrsqrt.pop %v2328
        %v2435 = vmul.f32 %v2434, %v2328
        %v2436 = vmul.f32 %v2435, %v2434
        %v2437 = vmul.f32 0.5, %v2436
        %v2438 = vsub.f32 1.5, %v2437
        %v2439 = vmul.f32 %v2434, %v2438
        %vm2440 = vweird.f32 %v2328
        %vm2441 = vweird.f32 %v2434
        %vm2442 = vmor %vm2440, %vm2441
        %v2443 = vsel %vm2442, %v2434, %v2439
        %v2444 = vrsqrt.pop %v2329
        %v2445 = vmul.f32 %v2444, %v2329
        %v2446 = vmul.f32 %v2445, %v2444
        %v2447 = vmul.f32 0.5, %v2446
        %v2448 = vsub.f32 1.5, %v2447
        %v2449 = vmul.f32 %v2444, %v2448
        %vm2450 = vweird.f32 %v2329
        %vm2451 = vweird.f32 %v2444
        %vm2452 = vmor %vm2450, %vm2451
        %v2453 = vsel %vm2452, %v2444, %v2449
        %v2454 = vrsqrt.pop %v2330
        %v2455 = vmul.f32 %v2454, %v2330
        %v2456 = vmul.f32 %v2455, %v2454
        %v2457 = vmul.f32 0.5, %v2456
        %v2458 = vsub.f32 1.5, %v2457
        %v2459 = vmul.f32 %v2454, %v2458
        %vm2460 = vweird.f32 %v2330
        %vm2461 = vweird.f32 %v2454
        %vm2462 = vmor %vm2460, %vm2461
        %v2463 = vsel %vm2462, %v2454, %v2459
        %v2464 = vrsqrt.pop %v2331
        %v2465 = vmul.f32 %v2464, %v2331
        %v2466 = vmul.f32 %v2465, %v2464
        %v2467 = vmul.f32 0.5, %v2466
        %v2468 = vsub.f32 1.5, %v2467
        %v2469 = vmul.f32 %v2464, %v2468
        %vm2470 = vweird.f32 %v2331
        %vm2471 = vweird.f32 %v2464
        %vm2472 = vmor %vm2470, %vm2471
        %v2473 = vsel %vm2472, %v2464, %v2469
        %v2474 = vrsqrt.pop %v2332
        %v2475 = vmul.f32 %v2474, %v2332
        %v2476 = vmul.f32 %v2475, %v2474
        %v2477 = vmul.f32 0.5, %v2476
        %v2478 = vsub.f32 1.5, %v2477
        %v2479 = vmul.f32 %v2474, %v2478
        %vm2480 = vweird.f32 %v2332
        %vm2481 = vweird.f32 %v2474
        %vm2482 = vmor %vm2480, %vm2481
        %v2483 = vsel %vm2482, %v2474, %v2479
        %v2484 = vrsqrt.pop %v2333
        %v2485 = vmul.f32 %v2484, %v2333
        %v2486 = vmul.f32 %v2485, %v2484
        %v2487 = vmul.f32 0.5, %v2486
        %v2488 = vsub.f32 1.5, %v2487
        %v2489 = vmul.f32 %v2484, %v2488
        %vm2490 = vweird.f32 %v2333
        %vm2491 = vweird.f32 %v2484
        %vm2492 = vmor %vm2490, %vm2491
        %v2493 = vsel %vm2492, %v2484, %v2489
        %v2494 = vmul.f32 %v2238, %v2343
        %v2495 = vmul.f32 %v2239, %v2353
        %v2496 = vmul.f32 %v2240, %v2363
        %v2497 = vmul.f32 %v2241, %v2373
        %v2498 = vmul.f32 %v2242, %v2383
        %v2499 = vmul.f32 %v2243, %v2393
        %v2500 = vmul.f32 %v2244, %v2403
        %v2501 = vmul.f32 %v2245, %v2413
        %v2502 = vmul.f32 %v2246, %v2423
        %v2503 = vmul.f32 %v2247, %v2433
        %v2504 = vmul.f32 %v2248, %v2443
        %v2505 = vmul.f32 %v2249, %v2453
        %v2506 = vmul.f32 %v2250, %v2463
        %v2507 = vmul.f32 %v2251, %v2473
        %v2508 = vmul.f32 %v2252, %v2483
        %v2509 = vmul.f32 %v2253, %v2493
        %v2511 = vperm.slane %v2181, 0
        %v2513 = vmul.f32 %v2494, %v2511
        %v2514 = vmul.f32 %v2495, %v2511
        %v2515 = vmul.f32 %v2496, %v2511
        %v2516 = vmul.f32 %v2497, %v2511
        %v2517 = vmul.f32 %v2498, %v2511
        %v2518 = vmul.f32 %v2499, %v2511
        %v2519 = vmul.f32 %v2500, %v2511
        %v2520 = vmul.f32 %v2501, %v2511
        %v2521 = vmul.f32 %v2502, %v2511
        %v2522 = vmul.f32 %v2503, %v2511
        %v2523 = vmul.f32 %v2504, %v2511
        %v2524 = vmul.f32 %v2505, %v2511
        %v2525 = vmul.f32 %v2506, %v2511
        %v2526 = vmul.f32 %v2507, %v2511
        %v2527 = vmul.f32 %v2508, %v2511
        %v2528 = vmul.f32 %v2509, %v2511
        %v2530 = vperm.slane %v2182, 0
        %v2532 = vadd.f32 %v2513, %v2530
        %v2533 = vadd.f32 %v2514, %v2530
        %v2534 = vadd.f32 %v2515, %v2530
        %v2535 = vadd.f32 %v2516, %v2530
        %v2536 = vadd.f32 %v2517, %v2530
        %v2537 = vadd.f32 %v2518, %v2530
        %v2538 = vadd.f32 %v2519, %v2530
        %v2539 = vadd.f32 %v2520, %v2530
        %v2540 = vadd.f32 %v2521, %v2530
        %v2541 = vadd.f32 %v2522, %v2530
        %v2542 = vadd.f32 %v2523, %v2530
        %v2543 = vadd.f32 %v2524, %v2530
        %v2544 = vadd.f32 %v2525, %v2530
        %v2545 = vadd.f32 %v2526, %v2530
        %v2546 = vadd.f32 %v2527, %v2530
        %v2547 = vadd.f32 %v2528, %v2530
        %v2548 = vpack.c.bf16 %v2533, %v2532
        %v2549 = vpack.c.bf16 %v2535, %v2534
        %v2550 = vpack.c.bf16 %v2537, %v2536
        %v2551 = vpack.c.bf16 %v2539, %v2538
        %v2552 = vpack.c.bf16 %v2541, %v2540
        %v2553 = vpack.c.bf16 %v2543, %v2542
        %v2554 = vpack.c.bf16 %v2545, %v2544
        %v2555 = vpack.c.bf16 %v2547, %v2546
        %v2556 = vld [vmem:[#allocation14] sm:$0xff]
        %v2557 = vld [vmem:[#allocation14 + $0x8] sm:$0xff]
        %v2558 = vld [vmem:[#allocation14 + $0x10] sm:$0xff]
        %v2559 = vld [vmem:[#allocation14 + $0x18] sm:$0xff]
        %v2560 = vld [vmem:[#allocation14 + $0x20] sm:$0xff]
        %v2561 = vld [vmem:[#allocation14 + $0x28] sm:$0xff]
        %v2562 = vld [vmem:[#allocation14 + $0x30] sm:$0xff]
        %v2563 = vld [vmem:[#allocation14 + $0x38] sm:$0xff]
        %v2564 = vld [vmem:[#allocation14 + $0x40] sm:$0xff]
        %v2565 = vld [vmem:[#allocation14 + $0x48] sm:$0xff]
        %v2566 = vld [vmem:[#allocation14 + $0x50] sm:$0xff]
        %v2567 = vld [vmem:[#allocation14 + $0x58] sm:$0xff]
        %v2568 = vld [vmem:[#allocation14 + $0x60] sm:$0xff]
        %v2569 = vld [vmem:[#allocation14 + $0x68] sm:$0xff]
        %v2570 = vld [vmem:[#allocation14 + $0x70] sm:$0xff]
        %v2571 = vld [vmem:[#allocation14 + $0x78] sm:$0xff]
        %v2572 = vld [vmem:[#allocation14 + $0x80] sm:$0xff]
        %v2573 = vld [vmem:[#allocation14 + $0x88] sm:$0xff]
        %v2574 = vld [vmem:[#allocation14 + $0x90] sm:$0xff]
        %v2575 = vld [vmem:[#allocation14 + $0x98] sm:$0xff]
        %v2576 = vld [vmem:[#allocation14 + $0xa0] sm:$0xff]
        %v2577 = vld [vmem:[#allocation14 + $0xa8] sm:$0xff]
        %v2578 = vld [vmem:[#allocation14 + $0xb0] sm:$0xff]
        %v2579 = vld [vmem:[#allocation14 + $0xb8] sm:$0xff]
        %v2580 = vld [vmem:[#allocation14 + $0xc0] sm:$0xff]
        %v2581 = vld [vmem:[#allocation14 + $0xc8] sm:$0xff]
        %v2582 = vld [vmem:[#allocation14 + $0xd0] sm:$0xff]
        %v2583 = vld [vmem:[#allocation14 + $0xd8] sm:$0xff]
        %v2584 = vld [vmem:[#allocation14 + $0xe0] sm:$0xff]
        %v2585 = vld [vmem:[#allocation14 + $0xe8] sm:$0xff]
        %v2586 = vld [vmem:[#allocation14 + $0xf0] sm:$0xff]
        %v2587 = vld [vmem:[#allocation14 + $0xf8] sm:$0xff]
        %v2588 = vld [vmem:[%s12] sm:$0xf]
        %v2590 = vperm.slane %v2588, 0
        %v2591 = vperm.slane %v2588, 1
        %v2592 = vperm.slane %v2588, 2
        %v2593 = vperm.slane %v2588, 3
        %v2630 = vunpack.c.l.b16 %v2556
        %v2631 = vunpack.c.h.b16 %v2556
        %v2632 = vunpack.c.l.b16 %v2557
        %v2633 = vunpack.c.h.b16 %v2557
        %v2634 = vunpack.c.l.b16 %v2558
        %v2635 = vunpack.c.h.b16 %v2558
        %v2636 = vunpack.c.l.b16 %v2559
        %v2637 = vunpack.c.h.b16 %v2559
        %v2638 = vunpack.c.l.b16 %v2560
        %v2639 = vunpack.c.h.b16 %v2560
        %v2640 = vunpack.c.l.b16 %v2561
        %v2641 = vunpack.c.h.b16 %v2561
        %v2642 = vunpack.c.l.b16 %v2562
        %v2643 = vunpack.c.h.b16 %v2562
        %v2644 = vunpack.c.l.b16 %v2563
        %v2645 = vunpack.c.h.b16 %v2563
        %v2646 = vunpack.c.l.b16 %v2564
        %v2647 = vunpack.c.h.b16 %v2564
        %v2648 = vunpack.c.l.b16 %v2565
        %v2649 = vunpack.c.h.b16 %v2565
        %v2650 = vunpack.c.l.b16 %v2566
        %v2651 = vunpack.c.h.b16 %v2566
        %v2652 = vunpack.c.l.b16 %v2567
        %v2653 = vunpack.c.h.b16 %v2567
        %v2654 = vunpack.c.l.b16 %v2568
        %v2655 = vunpack.c.h.b16 %v2568
        %v2656 = vunpack.c.l.b16 %v2569
        %v2657 = vunpack.c.h.b16 %v2569
        %v2658 = vunpack.c.l.b16 %v2570
        %v2659 = vunpack.c.h.b16 %v2570
        %v2660 = vunpack.c.l.b16 %v2571
        %v2661 = vunpack.c.h.b16 %v2571
        %v2662 = vunpack.c.l.b16 %v2572
        %v2663 = vunpack.c.h.b16 %v2572
        %v2664 = vunpack.c.l.b16 %v2573
        %v2665 = vunpack.c.h.b16 %v2573
        %v2666 = vunpack.c.l.b16 %v2574
        %v2667 = vunpack.c.h.b16 %v2574
        %v2668 = vunpack.c.l.b16 %v2575
        %v2669 = vunpack.c.h.b16 %v2575
        %v2670 = vunpack.c.l.b16 %v2576
        %v2671 = vunpack.c.h.b16 %v2576
        %v2672 = vunpack.c.l.b16 %v2577
        %v2673 = vunpack.c.h.b16 %v2577
        %v2674 = vunpack.c.l.b16 %v2578
        %v2675 = vunpack.c.h.b16 %v2578
        %v2676 = vunpack.c.l.b16 %v2579
        %v2677 = vunpack.c.h.b16 %v2579
        %v2678 = vunpack.c.l.b16 %v2580
        %v2679 = vunpack.c.h.b16 %v2580
        %v2680 = vunpack.c.l.b16 %v2581
        %v2681 = vunpack.c.h.b16 %v2581
        %v2682 = vunpack.c.l.b16 %v2582
        %v2683 = vunpack.c.h.b16 %v2582
        %v2684 = vunpack.c.l.b16 %v2583
        %v2685 = vunpack.c.h.b16 %v2583
        %v2686 = vunpack.c.l.b16 %v2584
        %v2687 = vunpack.c.h.b16 %v2584
        %v2688 = vunpack.c.l.b16 %v2585
        %v2689 = vunpack.c.h.b16 %v2585
        %v2690 = vunpack.c.l.b16 %v2586
        %v2691 = vunpack.c.h.b16 %v2586
        %v2692 = vunpack.c.l.b16 %v2587
        %v2693 = vunpack.c.h.b16 %v2587
        %v2694 = vpack.c.b16 %v2634, %v2630
        %v2695 = vpack.c.b16 %v2635, %v2631
        %v2696 = vpack.c.b16 %v2636, %v2632
        %v2697 = vpack.c.b16 %v2637, %v2633
        %v2698 = vpack.c.b16 %v2642, %v2638
        %v2699 = vpack.c.b16 %v2643, %v2639
        %v2700 = vpack.c.b16 %v2644, %v2640
        %v2701 = vpack.c.b16 %v2645, %v2641
        %v2702 = vpack.c.b16 %v2650, %v2646
        %v2703 = vpack.c.b16 %v2651, %v2647
        %v2704 = vpack.c.b16 %v2652, %v2648
        %v2705 = vpack.c.b16 %v2653, %v2649
        %v2706 = vpack.c.b16 %v2658, %v2654
        %v2707 = vpack.c.b16 %v2659, %v2655
        %v2708 = vpack.c.b16 %v2660, %v2656
        %v2709 = vpack.c.b16 %v2661, %v2657
        %v2710 = vpack.c.b16 %v2666, %v2662
        %v2711 = vpack.c.b16 %v2667, %v2663
        %v2712 = vpack.c.b16 %v2668, %v2664
        %v2713 = vpack.c.b16 %v2669, %v2665
        %v2714 = vpack.c.b16 %v2674, %v2670
        %v2715 = vpack.c.b16 %v2675, %v2671
        %v2716 = vpack.c.b16 %v2676, %v2672
        %v2717 = vpack.c.b16 %v2677, %v2673
        %v2718 = vpack.c.b16 %v2682, %v2678
        %v2719 = vpack.c.b16 %v2683, %v2679
        %v2720 = vpack.c.b16 %v2684, %v2680
        %v2721 = vpack.c.b16 %v2685, %v2681
        %v2722 = vpack.c.b16 %v2690, %v2686
        %v2723 = vpack.c.b16 %v2691, %v2687
        %v2724 = vpack.c.b16 %v2692, %v2688
        %v2725 = vpack.c.b16 %v2693, %v2689
        %2758 = vmatpush.bf16.msra.mxu0 %v2722
        %2759 = vmatpush.bf16.msra.mxu0 %v2718
        %2760 = vmatpush.bf16.msra.mxu0 %v2714
        %2761 = vmatpush.bf16.msra.mxu0 %v2710
        %2762 = vmatpush.bf16.msra.mxu0 %v2706
        %2763 = vmatpush.bf16.msra.mxu0 %v2702
        %2764 = vmatpush.bf16.msra.mxu0 %v2698
        %2765 = vmatpush.bf16.msra.mxu0 %v2694
        %2766 = vmatmul.bf16.gmra.mxu0 %v2548
        %v2767 = vpop.f32.mrf.mxu0
        %v2768 = vadd.f32 %v2590, %v2767
        %v2769 = vpop.f32.mrf.mxu0
        %v2770 = vadd.f32 %v2590, %v2769
        %2771 = vmatmul.bf16.gmra.mxu0 %v2549
        %v2772 = vpop.f32.mrf.mxu0
        %v2773 = vadd.f32 %v2590, %v2772
        %v2774 = vpop.f32.mrf.mxu0
        %v2775 = vadd.f32 %v2590, %v2774
        %2776 = vmatmul.bf16.gmra.mxu0 %v2550
        %v2777 = vpop.f32.mrf.mxu0
        %v2778 = vadd.f32 %v2590, %v2777
        %v2779 = vpop.f32.mrf.mxu0
        %v2780 = vadd.f32 %v2590, %v2779
        %2781 = vmatmul.bf16.gmra.mxu0 %v2551
        %v2782 = vpop.f32.mrf.mxu0
        %v2783 = vadd.f32 %v2590, %v2782
        %v2784 = vpop.f32.mrf.mxu0
        %v2785 = vadd.f32 %v2590, %v2784
        %2786 = vmatmul.bf16.gmra.mxu0 %v2552
        %v2787 = vpop.f32.mrf.mxu0
        %v2788 = vadd.f32 %v2590, %v2787
        %v2789 = vpop.f32.mrf.mxu0
        %v2790 = vadd.f32 %v2590, %v2789
        %2791 = vmatmul.bf16.gmra.mxu0 %v2553
        %v2792 = vpop.f32.mrf.mxu0
        %v2793 = vadd.f32 %v2590, %v2792
        %v2794 = vpop.f32.mrf.mxu0
        %v2795 = vadd.f32 %v2590, %v2794
        %2796 = vmatmul.bf16.gmra.mxu0 %v2554
        %v2797 = vpop.f32.mrf.mxu0
        %v2798 = vadd.f32 %v2590, %v2797
        %v2799 = vpop.f32.mrf.mxu0
        %v2800 = vadd.f32 %v2590, %v2799
        %2801 = vmatmul.bf16.gmra.mxu0 %v2555
        %v2802 = vpop.f32.mrf.mxu0
        %v2803 = vadd.f32 %v2590, %v2802
        %v2804 = vpop.f32.mrf.mxu0
        %v2805 = vadd.f32 %v2590, %v2804
        %2806 = vdwg.mxu0
        %2807 = vmatpush.bf16.msra.mxu0 %v2723
        %2808 = vmatpush.bf16.msra.mxu0 %v2719
        %2809 = vmatpush.bf16.msra.mxu0 %v2715
        %2810 = vmatpush.bf16.msra.mxu0 %v2711
        %2811 = vmatpush.bf16.msra.mxu0 %v2707
        %2812 = vmatpush.bf16.msra.mxu0 %v2703
        %2813 = vmatpush.bf16.msra.mxu0 %v2699
        %2814 = vmatpush.bf16.msra.mxu0 %v2695
        %2815 = vmatmul.bf16.gmra.mxu0 %v2548
        %v2816 = vpop.f32.mrf.mxu0
        %v2817 = vadd.f32 %v2591, %v2816
        %v2818 = vpop.f32.mrf.mxu0
        %v2819 = vadd.f32 %v2591, %v2818
        %2820 = vmatmul.bf16.gmra.mxu0 %v2549
        %v2821 = vpop.f32.mrf.mxu0
        %v2822 = vadd.f32 %v2591, %v2821
        %v2823 = vpop.f32.mrf.mxu0
        %v2824 = vadd.f32 %v2591, %v2823
        %2825 = vmatmul.bf16.gmra.mxu0 %v2550
        %v2826 = vpop.f32.mrf.mxu0
        %v2827 = vadd.f32 %v2591, %v2826
        %v2828 = vpop.f32.mrf.mxu0
        %v2829 = vadd.f32 %v2591, %v2828
        %2830 = vmatmul.bf16.gmra.mxu0 %v2551
        %v2831 = vpop.f32.mrf.mxu0
        %v2832 = vadd.f32 %v2591, %v2831
        %v2833 = vpop.f32.mrf.mxu0
        %v2834 = vadd.f32 %v2591, %v2833
        %2835 = vmatmul.bf16.gmra.mxu0 %v2552
        %v2836 = vpop.f32.mrf.mxu0
        %v2837 = vadd.f32 %v2591, %v2836
        %v2838 = vpop.f32.mrf.mxu0
        %v2839 = vadd.f32 %v2591, %v2838
        %2840 = vmatmul.bf16.gmra.mxu0 %v2553
        %v2841 = vpop.f32.mrf.mxu0
        %v2842 = vadd.f32 %v2591, %v2841
        %v2843 = vpop.f32.mrf.mxu0
        %v2844 = vadd.f32 %v2591, %v2843
        %2845 = vmatmul.bf16.gmra.mxu0 %v2554
        %v2846 = vpop.f32.mrf.mxu0
        %v2847 = vadd.f32 %v2591, %v2846
        %v2848 = vpop.f32.mrf.mxu0
        %v2849 = vadd.f32 %v2591, %v2848
        %2850 = vmatmul.bf16.gmra.mxu0 %v2555
        %v2851 = vpop.f32.mrf.mxu0
        %v2852 = vadd.f32 %v2591, %v2851
        %v2853 = vpop.f32.mrf.mxu0
        %v2854 = vadd.f32 %v2591, %v2853
        %2855 = vdwg.mxu0
        %2856 = vmatpush.bf16.msra.mxu0 %v2724
        %2857 = vmatpush.bf16.msra.mxu0 %v2720
        %2858 = vmatpush.bf16.msra.mxu0 %v2716
        %2859 = vmatpush.bf16.msra.mxu0 %v2712
        %2860 = vmatpush.bf16.msra.mxu0 %v2708
        %2861 = vmatpush.bf16.msra.mxu0 %v2704
        %2862 = vmatpush.bf16.msra.mxu0 %v2700
        %2863 = vmatpush.bf16.msra.mxu0 %v2696
        %2864 = vmatmul.bf16.gmra.mxu0 %v2548
        %v2865 = vpop.f32.mrf.mxu0
        %v2866 = vadd.f32 %v2592, %v2865
        %v2867 = vpop.f32.mrf.mxu0
        %v2868 = vadd.f32 %v2592, %v2867
        %2869 = vmatmul.bf16.gmra.mxu0 %v2549
        %v2870 = vpop.f32.mrf.mxu0
        %v2871 = vadd.f32 %v2592, %v2870
        %v2872 = vpop.f32.mrf.mxu0
        %v2873 = vadd.f32 %v2592, %v2872
        %2874 = vmatmul.bf16.gmra.mxu0 %v2550
        %v2875 = vpop.f32.mrf.mxu0
        %v2876 = vadd.f32 %v2592, %v2875
        %v2877 = vpop.f32.mrf.mxu0
        %v2878 = vadd.f32 %v2592, %v2877
        %2879 = vmatmul.bf16.gmra.mxu0 %v2551
        %v2880 = vpop.f32.mrf.mxu0
        %v2881 = vadd.f32 %v2592, %v2880
        %v2882 = vpop.f32.mrf.mxu0
        %v2883 = vadd.f32 %v2592, %v2882
        %2884 = vmatmul.bf16.gmra.mxu0 %v2552
        %v2885 = vpop.f32.mrf.mxu0
        %v2886 = vadd.f32 %v2592, %v2885
        %v2887 = vpop.f32.mrf.mxu0
        %v2888 = vadd.f32 %v2592, %v2887
        %2889 = vmatmul.bf16.gmra.mxu0 %v2553
        %v2890 = vpop.f32.mrf.mxu0
        %v2891 = vadd.f32 %v2592, %v2890
        %v2892 = vpop.f32.mrf.mxu0
        %v2893 = vadd.f32 %v2592, %v2892
        %2894 = vmatmul.bf16.gmra.mxu0 %v2554
        %v2895 = vpop.f32.mrf.mxu0
        %v2896 = vadd.f32 %v2592, %v2895
        %v2897 = vpop.f32.mrf.mxu0
        %v2898 = vadd.f32 %v2592, %v2897
        %2899 = vmatmul.bf16.gmra.mxu0 %v2555
        %v2900 = vpop.f32.mrf.mxu0
        %v2901 = vadd.f32 %v2592, %v2900
        %v2902 = vpop.f32.mrf.mxu0
        %v2903 = vadd.f32 %v2592, %v2902
        %2904 = vdwg.mxu0
        %2905 = vmatpush.bf16.msra.mxu0 %v2725
        %2906 = vmatpush.bf16.msra.mxu0 %v2721
        %2907 = vmatpush.bf16.msra.mxu0 %v2717
        %2908 = vmatpush.bf16.msra.mxu0 %v2713
        %2909 = vmatpush.bf16.msra.mxu0 %v2709
        %2910 = vmatpush.bf16.msra.mxu0 %v2705
        %2911 = vmatpush.bf16.msra.mxu0 %v2701
        %2912 = vmatpush.bf16.msra.mxu0 %v2697
        %2913 = vmatmul.bf16.gmra.mxu0 %v2548
        %v2914 = vpop.f32.mrf.mxu0
        %v2915 = vadd.f32 %v2593, %v2914
        %v2916 = vpop.f32.mrf.mxu0
        %v2917 = vadd.f32 %v2593, %v2916
        %2918 = vmatmul.bf16.gmra.mxu0 %v2549
        %v2919 = vpop.f32.mrf.mxu0
        %v2920 = vadd.f32 %v2593, %v2919
        %v2921 = vpop.f32.mrf.mxu0
        %v2922 = vadd.f32 %v2593, %v2921
        %2923 = vmatmul.bf16.gmra.mxu0 %v2550
        %v2924 = vpop.f32.mrf.mxu0
        %v2925 = vadd.f32 %v2593, %v2924
        %v2926 = vpop.f32.mrf.mxu0
        %v2927 = vadd.f32 %v2593, %v2926
        %2928 = vmatmul.bf16.gmra.mxu0 %v2551
        %v2929 = vpop.f32.mrf.mxu0
        %v2930 = vadd.f32 %v2593, %v2929
        %v2931 = vpop.f32.mrf.mxu0
        %v2932 = vadd.f32 %v2593, %v2931
        %2933 = vmatmul.bf16.gmra.mxu0 %v2552
        %v2934 = vpop.f32.mrf.mxu0
        %v2935 = vadd.f32 %v2593, %v2934
        %v2936 = vpop.f32.mrf.mxu0
        %v2937 = vadd.f32 %v2593, %v2936
        %2938 = vmatmul.bf16.gmra.mxu0 %v2553
        %v2939 = vpop.f32.mrf.mxu0
        %v2940 = vadd.f32 %v2593, %v2939
        %v2941 = vpop.f32.mrf.mxu0
        %v2942 = vadd.f32 %v2593, %v2941
        %2943 = vmatmul.bf16.gmra.mxu0 %v2554
        %v2944 = vpop.f32.mrf.mxu0
        %v2945 = vadd.f32 %v2593, %v2944
        %v2946 = vpop.f32.mrf.mxu0
        %v2947 = vadd.f32 %v2593, %v2946
        %2948 = vmatmul.bf16.gmra.mxu0 %v2555
        %v2949 = vpop.f32.mrf.mxu0
        %v2950 = vadd.f32 %v2593, %v2949
        %v2951 = vpop.f32.mrf.mxu0
        %v2952 = vadd.f32 %v2593, %v2951
        %2953 = vdwg.mxu0
        %v2954 = vmul.f32 %v2768, 0.5
        %v2955 = vmul.f32 %v2817, 0.5
        %v2956 = vmul.f32 %v2866, 0.5
        %v2957 = vmul.f32 %v2915, 0.5
        %v2958 = vmul.f32 %v2770, 0.5
        %v2959 = vmul.f32 %v2819, 0.5
        %v2960 = vmul.f32 %v2868, 0.5
        %v2961 = vmul.f32 %v2917, 0.5
        %v2962 = vmul.f32 %v2773, 0.5
        %v2963 = vmul.f32 %v2822, 0.5
        %v2964 = vmul.f32 %v2871, 0.5
        %v2965 = vmul.f32 %v2920, 0.5
        %v2966 = vmul.f32 %v2775, 0.5
        %v2967 = vmul.f32 %v2824, 0.5
        %v2968 = vmul.f32 %v2873, 0.5
        %v2969 = vmul.f32 %v2922, 0.5
        %v2970 = vmul.f32 %v2778, 0.5
        %v2971 = vmul.f32 %v2827, 0.5
        %v2972 = vmul.f32 %v2876, 0.5
        %v2973 = vmul.f32 %v2925, 0.5
        %v2974 = vmul.f32 %v2780, 0.5
        %v2975 = vmul.f32 %v2829, 0.5
        %v2976 = vmul.f32 %v2878, 0.5
        %v2977 = vmul.f32 %v2927, 0.5
        %v2978 = vmul.f32 %v2783, 0.5
        %v2979 = vmul.f32 %v2832, 0.5
        %v2980 = vmul.f32 %v2881, 0.5
        %v2981 = vmul.f32 %v2930, 0.5
        %v2982 = vmul.f32 %v2785, 0.5
        %v2983 = vmul.f32 %v2834, 0.5
        %v2984 = vmul.f32 %v2883, 0.5
        %v2985 = vmul.f32 %v2932, 0.5
        %v2986 = vmul.f32 %v2788, 0.5
        %v2987 = vmul.f32 %v2837, 0.5
        %v2988 = vmul.f32 %v2886, 0.5
        %v2989 = vmul.f32 %v2935, 0.5
        %v2990 = vmul.f32 %v2790, 0.5
        %v2991 = vmul.f32 %v2839, 0.5
        %v2992 = vmul.f32 %v2888, 0.5
        %v2993 = vmul.f32 %v2937, 0.5
        %v2994 = vmul.f32 %v2793, 0.5
        %v2995 = vmul.f32 %v2842, 0.5
        %v2996 = vmul.f32 %v2891, 0.5
        %v2997 = vmul.f32 %v2940, 0.5
        %v2998 = vmul.f32 %v2795, 0.5
        %v2999 = vmul.f32 %v2844, 0.5
        %v3000 = vmul.f32 %v2893, 0.5
        %v3001 = vmul.f32 %v2942, 0.5
        %v3002 = vmul.f32 %v2798, 0.5
        %v3003 = vmul.f32 %v2847, 0.5
        %v3004 = vmul.f32 %v2896, 0.5
        %v3005 = vmul.f32 %v2945, 0.5
        %v3006 = vmul.f32 %v2800, 0.5
        %v3007 = vmul.f32 %v2849, 0.5
        %v3008 = vmul.f32 %v2898, 0.5
        %v3009 = vmul.f32 %v2947, 0.5
        %v3010 = vmul.f32 %v2803, 0.5
        %v3011 = vmul.f32 %v2852, 0.5
        %v3012 = vmul.f32 %v2901, 0.5
        %v3013 = vmul.f32 %v2950, 0.5
        %v3014 = vmul.f32 %v2805, 0.5
        %v3015 = vmul.f32 %v2854, 0.5
        %v3016 = vmul.f32 %v2903, 0.5
        %v3017 = vmul.f32 %v2952, 0.5
        %v3018 = vmul.f32 %v2768, 0.044715
        %v3019 = vmul.f32 %v2817, 0.044715
        %v3020 = vmul.f32 %v2866, 0.044715
        %v3021 = vmul.f32 %v2915, 0.044715
        %v3022 = vmul.f32 %v2770, 0.044715
        %v3023 = vmul.f32 %v2819, 0.044715
        %v3024 = vmul.f32 %v2868, 0.044715
        %v3025 = vmul.f32 %v2917, 0.044715
        %v3026 = vmul.f32 %v2773, 0.044715
        %v3027 = vmul.f32 %v2822, 0.044715
        %v3028 = vmul.f32 %v2871, 0.044715
        %v3029 = vmul.f32 %v2920, 0.044715
        %v3030 = vmul.f32 %v2775, 0.044715
        %v3031 = vmul.f32 %v2824, 0.044715
        %v3032 = vmul.f32 %v2873, 0.044715
        %v3033 = vmul.f32 %v2922, 0.044715
        %v3034 = vmul.f32 %v2778, 0.044715
        %v3035 = vmul.f32 %v2827, 0.044715
        %v3036 = vmul.f32 %v2876, 0.044715
        %v3037 = vmul.f32 %v2925, 0.044715
        %v3038 = vmul.f32 %v2780, 0.044715
        %v3039 = vmul.f32 %v2829, 0.044715
        %v3040 = vmul.f32 %v2878, 0.044715
        %v3041 = vmul.f32 %v2927, 0.044715
        %v3042 = vmul.f32 %v2783, 0.044715
        %v3043 = vmul.f32 %v2832, 0.044715
        %v3044 = vmul.f32 %v2881, 0.044715
        %v3045 = vmul.f32 %v2930, 0.044715
        %v3046 = vmul.f32 %v2785, 0.044715
        %v3047 = vmul.f32 %v2834, 0.044715
        %v3048 = vmul.f32 %v2883, 0.044715
        %v3049 = vmul.f32 %v2932, 0.044715
        %v3050 = vmul.f32 %v2788, 0.044715
        %v3051 = vmul.f32 %v2837, 0.044715
        %v3052 = vmul.f32 %v2886, 0.044715
        %v3053 = vmul.f32 %v2935, 0.044715
        %v3054 = vmul.f32 %v2790, 0.044715
        %v3055 = vmul.f32 %v2839, 0.044715
        %v3056 = vmul.f32 %v2888, 0.044715
        %v3057 = vmul.f32 %v2937, 0.044715
        %v3058 = vmul.f32 %v2793, 0.044715
        %v3059 = vmul.f32 %v2842, 0.044715
        %v3060 = vmul.f32 %v2891, 0.044715
        %v3061 = vmul.f32 %v2940, 0.044715
        %v3062 = vmul.f32 %v2795, 0.044715
        %v3063 = vmul.f32 %v2844, 0.044715
        %v3064 = vmul.f32 %v2893, 0.044715
        %v3065 = vmul.f32 %v2942, 0.044715
        %v3066 = vmul.f32 %v2798, 0.044715
        %v3067 = vmul.f32 %v2847, 0.044715
        %v3068 = vmul.f32 %v2896, 0.044715
        %v3069 = vmul.f32 %v2945, 0.044715
        %v3070 = vmul.f32 %v2800, 0.044715
        %v3071 = vmul.f32 %v2849, 0.044715
        %v3072 = vmul.f32 %v2898, 0.044715
        %v3073 = vmul.f32 %v2947, 0.044715
        %v3074 = vmul.f32 %v2803, 0.044715
        %v3075 = vmul.f32 %v2852, 0.044715
        %v3076 = vmul.f32 %v2901, 0.044715
        %v3077 = vmul.f32 %v2950, 0.044715
        %v3078 = vmul.f32 %v2805, 0.044715
        %v3079 = vmul.f32 %v2854, 0.044715
        %v3080 = vmul.f32 %v2903, 0.044715
        %v3081 = vmul.f32 %v2952, 0.044715
        %v3082 = vmul.f32 %v3018, %v2768
        %v3083 = vmul.f32 %v3019, %v2817
        %v3084 = vmul.f32 %v3020, %v2866
        %v3085 = vmul.f32 %v3021, %v2915
        %v3086 = vmul.f32 %v3022, %v2770
        %v3087 = vmul.f32 %v3023, %v2819
        %v3088 = vmul.f32 %v3024, %v2868
        %v3089 = vmul.f32 %v3025, %v2917
        %v3090 = vmul.f32 %v3026, %v2773
        %v3091 = vmul.f32 %v3027, %v2822
        %v3092 = vmul.f32 %v3028, %v2871
        %v3093 = vmul.f32 %v3029, %v2920
        %v3094 = vmul.f32 %v3030, %v2775
        %v3095 = vmul.f32 %v3031, %v2824
        %v3096 = vmul.f32 %v3032, %v2873
        %v3097 = vmul.f32 %v3033, %v2922
        %v3098 = vmul.f32 %v3034, %v2778
        %v3099 = vmul.f32 %v3035, %v2827
        %v3100 = vmul.f32 %v3036, %v2876
        %v3101 = vmul.f32 %v3037, %v2925
        %v3102 = vmul.f32 %v3038, %v2780
        %v3103 = vmul.f32 %v3039, %v2829
        %v3104 = vmul.f32 %v3040, %v2878
        %v3105 = vmul.f32 %v3041, %v2927
        %v3106 = vmul.f32 %v3042, %v2783
        %v3107 = vmul.f32 %v3043, %v2832
        %v3108 = vmul.f32 %v3044, %v2881
        %v3109 = vmul.f32 %v3045, %v2930
        %v3110 = vmul.f32 %v3046, %v2785
        %v3111 = vmul.f32 %v3047, %v2834
        %v3112 = vmul.f32 %v3048, %v2883
        %v3113 = vmul.f32 %v3049, %v2932
        %v3114 = vmul.f32 %v3050, %v2788
        %v3115 = vmul.f32 %v3051, %v2837
        %v3116 = vmul.f32 %v3052, %v2886
        %v3117 = vmul.f32 %v3053, %v2935
        %v3118 = vmul.f32 %v3054, %v2790
        %v3119 = vmul.f32 %v3055, %v2839
        %v3120 = vmul.f32 %v3056, %v2888
        %v3121 = vmul.f32 %v3057, %v2937
        %v3122 = vmul.f32 %v3058, %v2793
        %v3123 = vmul.f32 %v3059, %v2842
        %v3124 = vmul.f32 %v3060, %v2891
        %v3125 = vmul.f32 %v3061, %v2940
        %v3126 = vmul.f32 %v3062, %v2795
        %v3127 = vmul.f32 %v3063, %v2844
        %v3128 = vmul.f32 %v3064, %v2893
        %v3129 = vmul.f32 %v3065, %v2942
        %v3130 = vmul.f32 %v3066, %v2798
        %v3131 = vmul.f32 %v3067, %v2847
        %v3132 = vmul.f32 %v3068, %v2896
        %v3133 = vmul.f32 %v3069, %v2945
        %v3134 = vmul.f32 %v3070, %v2800
        %v3135 = vmul.f32 %v3071, %v2849
        %v3136 = vmul.f32 %v3072, %v2898
        %v3137 = vmul.f32 %v3073, %v2947
        %v3138 = vmul.f32 %v3074, %v2803
        %v3139 = vmul.f32 %v3075, %v2852
        %v3140 = vmul.f32 %v3076, %v2901
        %v3141 = vmul.f32 %v3077, %v2950
        %v3142 = vmul.f32 %v3078, %v2805
        %v3143 = vmul.f32 %v3079, %v2854
        %v3144 = vmul.f32 %v3080, %v2903
        %v3145 = vmul.f32 %v3081, %v2952
        %v3146 = vmul.f32 %v3082, %v2768
        %v3147 = vmul.f32 %v3083, %v2817
        %v3148 = vmul.f32 %v3084, %v2866
        %v3149 = vmul.f32 %v3085, %v2915
        %v3150 = vmul.f32 %v3086, %v2770
        %v3151 = vmul.f32 %v3087, %v2819
        %v3152 = vmul.f32 %v3088, %v2868
        %v3153 = vmul.f32 %v3089, %v2917
        %v3154 = vmul.f32 %v3090, %v2773
        %v3155 = vmul.f32 %v3091, %v2822
        %v3156 = vmul.f32 %v3092, %v2871
        %v3157 = vmul.f32 %v3093, %v2920
        %v3158 = vmul.f32 %v3094, %v2775
        %v3159 = vmul.f32 %v3095, %v2824
        %v3160 = vmul.f32 %v3096, %v2873
        %v3161 = vmul.f32 %v3097, %v2922
        %v3162 = vmul.f32 %v3098, %v2778
        %v3163 = vmul.f32 %v3099, %v2827
        %v3164 = vmul.f32 %v3100, %v2876
        %v3165 = vmul.f32 %v3101, %v2925
        %v3166 = vmul.f32 %v3102, %v2780
        %v3167 = vmul.f32 %v3103, %v2829
        %v3168 = vmul.f32 %v3104, %v2878
        %v3169 = vmul.f32 %v3105, %v2927
        %v3170 = vmul.f32 %v3106, %v2783
        %v3171 = vmul.f32 %v3107, %v2832
        %v3172 = vmul.f32 %v3108, %v2881
        %v3173 = vmul.f32 %v3109, %v2930
        %v3174 = vmul.f32 %v3110, %v2785
        %v3175 = vmul.f32 %v3111, %v2834
        %v3176 = vmul.f32 %v3112, %v2883
        %v3177 = vmul.f32 %v3113, %v2932
        %v3178 = vmul.f32 %v3114, %v2788
        %v3179 = vmul.f32 %v3115, %v2837
        %v3180 = vmul.f32 %v3116, %v2886
        %v3181 = vmul.f32 %v3117, %v2935
        %v3182 = vmul.f32 %v3118, %v2790
        %v3183 = vmul.f32 %v3119, %v2839
        %v3184 = vmul.f32 %v3120, %v2888
        %v3185 = vmul.f32 %v3121, %v2937
        %v3186 = vmul.f32 %v3122, %v2793
        %v3187 = vmul.f32 %v3123, %v2842
        %v3188 = vmul.f32 %v3124, %v2891
        %v3189 = vmul.f32 %v3125, %v2940
        %v3190 = vmul.f32 %v3126, %v2795
        %v3191 = vmul.f32 %v3127, %v2844
        %v3192 = vmul.f32 %v3128, %v2893
        %v3193 = vmul.f32 %v3129, %v2942
        %v3194 = vmul.f32 %v3130, %v2798
        %v3195 = vmul.f32 %v3131, %v2847
        %v3196 = vmul.f32 %v3132, %v2896
        %v3197 = vmul.f32 %v3133, %v2945
        %v3198 = vmul.f32 %v3134, %v2800
        %v3199 = vmul.f32 %v3135, %v2849
        %v3200 = vmul.f32 %v3136, %v2898
        %v3201 = vmul.f32 %v3137, %v2947
        %v3202 = vmul.f32 %v3138, %v2803
        %v3203 = vmul.f32 %v3139, %v2852
        %v3204 = vmul.f32 %v3140, %v2901
        %v3205 = vmul.f32 %v3141, %v2950
        %v3206 = vmul.f32 %v3142, %v2805
        %v3207 = vmul.f32 %v3143, %v2854
        %v3208 = vmul.f32 %v3144, %v2903
        %v3209 = vmul.f32 %v3145, %v2952
        %v3210 = vadd.f32 %v2768, %v3146
        %v3211 = vadd.f32 %v2817, %v3147
        %v3212 = vadd.f32 %v2866, %v3148
        %v3213 = vadd.f32 %v2915, %v3149
        %v3214 = vadd.f32 %v2770, %v3150
        %v3215 = vadd.f32 %v2819, %v3151
        %v3216 = vadd.f32 %v2868, %v3152
        %v3217 = vadd.f32 %v2917, %v3153
        %v3218 = vadd.f32 %v2773, %v3154
        %v3219 = vadd.f32 %v2822, %v3155
        %v3220 = vadd.f32 %v2871, %v3156
        %v3221 = vadd.f32 %v2920, %v3157
        %v3222 = vadd.f32 %v2775, %v3158
        %v3223 = vadd.f32 %v2824, %v3159
        %v3224 = vadd.f32 %v2873, %v3160
        %v3225 = vadd.f32 %v2922, %v3161
        %v3226 = vadd.f32 %v2778, %v3162
        %v3227 = vadd.f32 %v2827, %v3163
        %v3228 = vadd.f32 %v2876, %v3164
        %v3229 = vadd.f32 %v2925, %v3165
        %v3230 = vadd.f32 %v2780, %v3166
        %v3231 = vadd.f32 %v2829, %v3167
        %v3232 = vadd.f32 %v2878, %v3168
        %v3233 = vadd.f32 %v2927, %v3169
        %v3234 = vadd.f32 %v2783, %v3170
        %v3235 = vadd.f32 %v2832, %v3171
        %v3236 = vadd.f32 %v2881, %v3172
        %v3237 = vadd.f32 %v2930, %v3173
        %v3238 = vadd.f32 %v2785, %v3174
        %v3239 = vadd.f32 %v2834, %v3175
        %v3240 = vadd.f32 %v2883, %v3176
        %v3241 = vadd.f32 %v2932, %v3177
        %v3242 = vadd.f32 %v2788, %v3178
        %v3243 = vadd.f32 %v2837, %v3179
        %v3244 = vadd.f32 %v2886, %v3180
        %v3245 = vadd.f32 %v2935, %v3181
        %v3246 = vadd.f32 %v2790, %v3182
        %v3247 = vadd.f32 %v2839, %v3183
        %v3248 = vadd.f32 %v2888, %v3184
        %v3249 = vadd.f32 %v2937, %v3185
        %v3250 = vadd.f32 %v2793, %v3186
        %v3251 = vadd.f32 %v2842, %v3187
        %v3252 = vadd.f32 %v2891, %v3188
        %v3253 = vadd.f32 %v2940, %v3189
        %v3254 = vadd.f32 %v2795, %v3190
        %v3255 = vadd.f32 %v2844, %v3191
        %v3256 = vadd.f32 %v2893, %v3192
        %v3257 = vadd.f32 %v2942, %v3193
        %v3258 = vadd.f32 %v2798, %v3194
        %v3259 = vadd.f32 %v2847, %v3195
        %v3260 = vadd.f32 %v2896, %v3196
        %v3261 = vadd.f32 %v2945, %v3197
        %v3262 = vadd.f32 %v2800, %v3198
        %v3263 = vadd.f32 %v2849, %v3199
        %v3264 = vadd.f32 %v2898, %v3200
        %v3265 = vadd.f32 %v2947, %v3201
        %v3266 = vadd.f32 %v2803, %v3202
        %v3267 = vadd.f32 %v2852, %v3203
        %v3268 = vadd.f32 %v2901, %v3204
        %v3269 = vadd.f32 %v2950, %v3205
        %v3270 = vadd.f32 %v2805, %v3206
        %v3271 = vadd.f32 %v2854, %v3207
        %v3272 = vadd.f32 %v2903, %v3208
        %v3273 = vadd.f32 %v2952, %v3209
        %v3274 = vmul.f32 %v3210, 0.7978846
        %v3275 = vmul.f32 %v3211, 0.7978846
        %v3276 = vmul.f32 %v3212, 0.7978846
        %v3277 = vmul.f32 %v3213, 0.7978846
        %v3278 = vmul.f32 %v3214, 0.7978846
        %v3279 = vmul.f32 %v3215, 0.7978846
        %v3280 = vmul.f32 %v3216, 0.7978846
        %v3281 = vmul.f32 %v3217, 0.7978846
        %v3282 = vmul.f32 %v3218, 0.7978846
        %v3283 = vmul.f32 %v3219, 0.7978846
        %v3284 = vmul.f32 %v3220, 0.7978846
        %v3285 = vmul.f32 %v3221, 0.7978846
        %v3286 = vmul.f32 %v3222, 0.7978846
        %v3287 = vmul.f32 %v3223, 0.7978846
        %v3288 = vmul.f32 %v3224, 0.7978846
        %v3289 = vmul.f32 %v3225, 0.7978846
        %v3290 = vmul.f32 %v3226, 0.7978846
        %v3291 = vmul.f32 %v3227, 0.7978846
        %v3292 = vmul.f32 %v3228, 0.7978846
        %v3293 = vmul.f32 %v3229, 0.7978846
        %v3294 = vmul.f32 %v3230, 0.7978846
        %v3295 = vmul.f32 %v3231, 0.7978846
        %v3296 = vmul.f32 %v3232, 0.7978846
        %v3297 = vmul.f32 %v3233, 0.7978846
        %v3298 = vmul.f32 %v3234, 0.7978846
        %v3299 = vmul.f32 %v3235, 0.7978846
        %v3300 = vmul.f32 %v3236, 0.7978846
        %v3301 = vmul.f32 %v3237, 0.7978846
        %v3302 = vmul.f32 %v3238, 0.7978846
        %v3303 = vmul.f32 %v3239, 0.7978846
        %v3304 = vmul.f32 %v3240, 0.7978846
        %v3305 = vmul.f32 %v3241, 0.7978846
        %v3306 = vmul.f32 %v3242, 0.7978846
        %v3307 = vmul.f32 %v3243, 0.7978846
        %v3308 = vmul.f32 %v3244, 0.7978846
        %v3309 = vmul.f32 %v3245, 0.7978846
        %v3310 = vmul.f32 %v3246, 0.7978846
        %v3311 = vmul.f32 %v3247, 0.7978846
        %v3312 = vmul.f32 %v3248, 0.7978846
        %v3313 = vmul.f32 %v3249, 0.7978846
        %v3314 = vmul.f32 %v3250, 0.7978846
        %v3315 = vmul.f32 %v3251, 0.7978846
        %v3316 = vmul.f32 %v3252, 0.7978846
        %v3317 = vmul.f32 %v3253, 0.7978846
        %v3318 = vmul.f32 %v3254, 0.7978846
        %v3319 = vmul.f32 %v3255, 0.7978846
        %v3320 = vmul.f32 %v3256, 0.7978846
        %v3321 = vmul.f32 %v3257, 0.7978846
        %v3322 = vmul.f32 %v3258, 0.7978846
        %v3323 = vmul.f32 %v3259, 0.7978846
        %v3324 = vmul.f32 %v3260, 0.7978846
        %v3325 = vmul.f32 %v3261, 0.7978846
        %v3326 = vmul.f32 %v3262, 0.7978846
        %v3327 = vmul.f32 %v3263, 0.7978846
        %v3328 = vmul.f32 %v3264, 0.7978846
        %v3329 = vmul.f32 %v3265, 0.7978846
        %v3330 = vmul.f32 %v3266, 0.7978846
        %v3331 = vmul.f32 %v3267, 0.7978846
        %v3332 = vmul.f32 %v3268, 0.7978846
        %v3333 = vmul.f32 %v3269, 0.7978846
        %v3334 = vmul.f32 %v3270, 0.7978846
        %v3335 = vmul.f32 %v3271, 0.7978846
        %v3336 = vmul.f32 %v3272, 0.7978846
        %v3337 = vmul.f32 %v3273, 0.7978846
        %v3338 = vtanh.pop %v3274
        %v3339 = vtanh.pop %v3275
        %v3340 = vtanh.pop %v3276
        %v3341 = vtanh.pop %v3277
        %v3342 = vtanh.pop %v3278
        %v3343 = vtanh.pop %v3279
        %v3344 = vtanh.pop %v3280
        %v3345 = vtanh.pop %v3281
        %v3346 = vtanh.pop %v3282
        %v3347 = vtanh.pop %v3283
        %v3348 = vtanh.pop %v3284
        %v3349 = vtanh.pop %v3285
        %v3350 = vtanh.pop %v3286
        %v3351 = vtanh.pop %v3287
        %v3352 = vtanh.pop %v3288
        %v3353 = vtanh.pop %v3289
        %v3354 = vtanh.pop %v3290
        %v3355 = vtanh.pop %v3291
        %v3356 = vtanh.pop %v3292
        %v3357 = vtanh.pop %v3293
        %v3358 = vtanh.pop %v3294
        %v3359 = vtanh.pop %v3295
        %v3360 = vtanh.pop %v3296
        %v3361 = vtanh.pop %v3297
        %v3362 = vtanh.pop %v3298
        %v3363 = vtanh.pop %v3299
        %v3364 = vtanh.pop %v3300
        %v3365 = vtanh.pop %v3301
        %v3366 = vtanh.pop %v3302
        %v3367 = vtanh.pop %v3303
        %v3368 = vtanh.pop %v3304
        %v3369 = vtanh.pop %v3305
        %v3370 = vtanh.pop %v3306
        %v3371 = vtanh.pop %v3307
        %v3372 = vtanh.pop %v3308
        %v3373 = vtanh.pop %v3309
        %v3374 = vtanh.pop %v3310
        %v3375 = vtanh.pop %v3311
        %v3376 = vtanh.pop %v3312
        %v3377 = vtanh.pop %v3313
        %v3378 = vtanh.pop %v3314
        %v3379 = vtanh.pop %v3315
        %v3380 = vtanh.pop %v3316
        %v3381 = vtanh.pop %v3317
        %v3382 = vtanh.pop %v3318
        %v3383 = vtanh.pop %v3319
        %v3384 = vtanh.pop %v3320
        %v3385 = vtanh.pop %v3321
        %v3386 = vtanh.pop %v3322
        %v3387 = vtanh.pop %v3323
        %v3388 = vtanh.pop %v3324
        %v3389 = vtanh.pop %v3325
        %v3390 = vtanh.pop %v3326
        %v3391 = vtanh.pop %v3327
        %v3392 = vtanh.pop %v3328
        %v3393 = vtanh.pop %v3329
        %v3394 = vtanh.pop %v3330
        %v3395 = vtanh.pop %v3331
        %v3396 = vtanh.pop %v3332
        %v3397 = vtanh.pop %v3333
        %v3398 = vtanh.pop %v3334
        %v3399 = vtanh.pop %v3335
        %v3400 = vtanh.pop %v3336
        %v3401 = vtanh.pop %v3337
        %v3402 = vadd.f32 %v3338, 1.0
        %v3403 = vadd.f32 %v3339, 1.0
        %v3404 = vadd.f32 %v3340, 1.0
        %v3405 = vadd.f32 %v3341, 1.0
        %v3406 = vadd.f32 %v3342, 1.0
        %v3407 = vadd.f32 %v3343, 1.0
        %v3408 = vadd.f32 %v3344, 1.0
        %v3409 = vadd.f32 %v3345, 1.0
        %v3410 = vadd.f32 %v3346, 1.0
        %v3411 = vadd.f32 %v3347, 1.0
        %v3412 = vadd.f32 %v3348, 1.0
        %v3413 = vadd.f32 %v3349, 1.0
        %v3414 = vadd.f32 %v3350, 1.0
        %v3415 = vadd.f32 %v3351, 1.0
        %v3416 = vadd.f32 %v3352, 1.0
        %v3417 = vadd.f32 %v3353, 1.0
        %v3418 = vadd.f32 %v3354, 1.0
        %v3419 = vadd.f32 %v3355, 1.0
        %v3420 = vadd.f32 %v3356, 1.0
        %v3421 = vadd.f32 %v3357, 1.0
        %v3422 = vadd.f32 %v3358, 1.0
        %v3423 = vadd.f32 %v3359, 1.0
        %v3424 = vadd.f32 %v3360, 1.0
        %v3425 = vadd.f32 %v3361, 1.0
        %v3426 = vadd.f32 %v3362, 1.0
        %v3427 = vadd.f32 %v3363, 1.0
        %v3428 = vadd.f32 %v3364, 1.0
        %v3429 = vadd.f32 %v3365, 1.0
        %v3430 = vadd.f32 %v3366, 1.0
        %v3431 = vadd.f32 %v3367, 1.0
        %v3432 = vadd.f32 %v3368, 1.0
        %v3433 = vadd.f32 %v3369, 1.0
        %v3434 = vadd.f32 %v3370, 1.0
        %v3435 = vadd.f32 %v3371, 1.0
        %v3436 = vadd.f32 %v3372, 1.0
        %v3437 = vadd.f32 %v3373, 1.0
        %v3438 = vadd.f32 %v3374, 1.0
        %v3439 = vadd.f32 %v3375, 1.0
        %v3440 = vadd.f32 %v3376, 1.0
        %v3441 = vadd.f32 %v3377, 1.0
        %v3442 = vadd.f32 %v3378, 1.0
        %v3443 = vadd.f32 %v3379, 1.0
        %v3444 = vadd.f32 %v3380, 1.0
        %v3445 = vadd.f32 %v3381, 1.0
        %v3446 = vadd.f32 %v3382, 1.0
        %v3447 = vadd.f32 %v3383, 1.0
        %v3448 = vadd.f32 %v3384, 1.0
        %v3449 = vadd.f32 %v3385, 1.0
        %v3450 = vadd.f32 %v3386, 1.0
        %v3451 = vadd.f32 %v3387, 1.0
        %v3452 = vadd.f32 %v3388, 1.0
        %v3453 = vadd.f32 %v3389, 1.0
        %v3454 = vadd.f32 %v3390, 1.0
        %v3455 = vadd.f32 %v3391, 1.0
        %v3456 = vadd.f32 %v3392, 1.0
        %v3457 = vadd.f32 %v3393, 1.0
        %v3458 = vadd.f32 %v3394, 1.0
        %v3459 = vadd.f32 %v3395, 1.0
        %v3460 = vadd.f32 %v3396, 1.0
        %v3461 = vadd.f32 %v3397, 1.0
        %v3462 = vadd.f32 %v3398, 1.0
        %v3463 = vadd.f32 %v3399, 1.0
        %v3464 = vadd.f32 %v3400, 1.0
        %v3465 = vadd.f32 %v3401, 1.0
        %v3466 = vmul.f32 %v2954, %v3402
        %v3467 = vmul.f32 %v2955, %v3403
        %v3468 = vmul.f32 %v2956, %v3404
        %v3469 = vmul.f32 %v2957, %v3405
        %v3470 = vmul.f32 %v2958, %v3406
        %v3471 = vmul.f32 %v2959, %v3407
        %v3472 = vmul.f32 %v2960, %v3408
        %v3473 = vmul.f32 %v2961, %v3409
        %v3474 = vmul.f32 %v2962, %v3410
        %v3475 = vmul.f32 %v2963, %v3411
        %v3476 = vmul.f32 %v2964, %v3412
        %v3477 = vmul.f32 %v2965, %v3413
        %v3478 = vmul.f32 %v2966, %v3414
        %v3479 = vmul.f32 %v2967, %v3415
        %v3480 = vmul.f32 %v2968, %v3416
        %v3481 = vmul.f32 %v2969, %v3417
        %v3482 = vmul.f32 %v2970, %v3418
        %v3483 = vmul.f32 %v2971, %v3419
        %v3484 = vmul.f32 %v2972, %v3420
        %v3485 = vmul.f32 %v2973, %v3421
        %v3486 = vmul.f32 %v2974, %v3422
        %v3487 = vmul.f32 %v2975, %v3423
        %v3488 = vmul.f32 %v2976, %v3424
        %v3489 = vmul.f32 %v2977, %v3425
        %v3490 = vmul.f32 %v2978, %v3426
        %v3491 = vmul.f32 %v2979, %v3427
        %v3492 = vmul.f32 %v2980, %v3428
        %v3493 = vmul.f32 %v2981, %v3429
        %v3494 = vmul.f32 %v2982, %v3430
        %v3495 = vmul.f32 %v2983, %v3431
        %v3496 = vmul.f32 %v2984, %v3432
        %v3497 = vmul.f32 %v2985, %v3433
        %v3498 = vmul.f32 %v2986, %v3434
        %v3499 = vmul.f32 %v2987, %v3435
        %v3500 = vmul.f32 %v2988, %v3436
        %v3501 = vmul.f32 %v2989, %v3437
        %v3502 = vmul.f32 %v2990, %v3438
        %v3503 = vmul.f32 %v2991, %v3439
        %v3504 = vmul.f32 %v2992, %v3440
        %v3505 = vmul.f32 %v2993, %v3441
        %v3506 = vmul.f32 %v2994, %v3442
        %v3507 = vmul.f32 %v2995, %v3443
        %v3508 = vmul.f32 %v2996, %v3444
        %v3509 = vmul.f32 %v2997, %v3445
        %v3510 = vmul.f32 %v2998, %v3446
        %v3511 = vmul.f32 %v2999, %v3447
        %v3512 = vmul.f32 %v3000, %v3448
        %v3513 = vmul.f32 %v3001, %v3449
        %v3514 = vmul.f32 %v3002, %v3450
        %v3515 = vmul.f32 %v3003, %v3451
        %v3516 = vmul.f32 %v3004, %v3452
        %v3517 = vmul.f32 %v3005, %v3453
        %v3518 = vmul.f32 %v3006, %v3454
        %v3519 = vmul.f32 %v3007, %v3455
        %v3520 = vmul.f32 %v3008, %v3456
        %v3521 = vmul.f32 %v3009, %v3457
        %v3522 = vmul.f32 %v3010, %v3458
        %v3523 = vmul.f32 %v3011, %v3459
        %v3524 = vmul.f32 %v3012, %v3460
        %v3525 = vmul.f32 %v3013, %v3461
        %v3526 = vmul.f32 %v3014, %v3462
        %v3527 = vmul.f32 %v3015, %v3463
        %v3528 = vmul.f32 %v3016, %v3464
        %v3529 = vmul.f32 %v3017, %v3465
        %v3530 = vpack.c.bf16 %v3470, %v3466
        %v3531 = vpack.c.bf16 %v3471, %v3467
        %v3532 = vpack.c.bf16 %v3472, %v3468
        %v3533 = vpack.c.bf16 %v3473, %v3469
        %v3534 = vpack.c.bf16 %v3478, %v3474
        %v3535 = vpack.c.bf16 %v3479, %v3475
        %v3536 = vpack.c.bf16 %v3480, %v3476
        %v3537 = vpack.c.bf16 %v3481, %v3477
        %v3538 = vpack.c.bf16 %v3486, %v3482
        %v3539 = vpack.c.bf16 %v3487, %v3483
        %v3540 = vpack.c.bf16 %v3488, %v3484
        %v3541 = vpack.c.bf16 %v3489, %v3485
        %v3542 = vpack.c.bf16 %v3494, %v3490
        %v3543 = vpack.c.bf16 %v3495, %v3491
        %v3544 = vpack.c.bf16 %v3496, %v3492
        %v3545 = vpack.c.bf16 %v3497, %v3493
        %v3546 = vpack.c.bf16 %v3502, %v3498
        %v3547 = vpack.c.bf16 %v3503, %v3499
        %v3548 = vpack.c.bf16 %v3504, %v3500
        %v3549 = vpack.c.bf16 %v3505, %v3501
        %v3550 = vpack.c.bf16 %v3510, %v3506
        %v3551 = vpack.c.bf16 %v3511, %v3507
        %v3552 = vpack.c.bf16 %v3512, %v3508
        %v3553 = vpack.c.bf16 %v3513, %v3509
        %v3554 = vpack.c.bf16 %v3518, %v3514
        %v3555 = vpack.c.bf16 %v3519, %v3515
        %v3556 = vpack.c.bf16 %v3520, %v3516
        %v3557 = vpack.c.bf16 %v3521, %v3517
        %v3558 = vpack.c.bf16 %v3526, %v3522
        %v3559 = vpack.c.bf16 %v3527, %v3523
        %v3560 = vpack.c.bf16 %v3528, %v3524
        %v3561 = vpack.c.bf16 %v3529, %v3525
        %v3562 = vld [vmem:[#allocation16] sm:$0xf]
        %v3563 = vld [vmem:[#allocation16 + $0x4] sm:$0xf]
        %v3564 = vld [vmem:[#allocation16 + $0x8] sm:$0xf]
        %v3565 = vld [vmem:[#allocation16 + $0xc] sm:$0xf]
        %v3566 = vld [vmem:[#allocation16 + $0x10] sm:$0xf]
        %v3567 = vld [vmem:[#allocation16 + $0x14] sm:$0xf]
        %v3568 = vld [vmem:[#allocation16 + $0x18] sm:$0xf]
        %v3569 = vld [vmem:[#allocation16 + $0x1c] sm:$0xf]
        %v3570 = vld [vmem:[#allocation16 + $0x20] sm:$0xf]
        %v3571 = vld [vmem:[#allocation16 + $0x24] sm:$0xf]
        %v3572 = vld [vmem:[#allocation16 + $0x28] sm:$0xf]
        %v3573 = vld [vmem:[#allocation16 + $0x2c] sm:$0xf]
        %v3574 = vld [vmem:[#allocation16 + $0x30] sm:$0xf]
        %v3575 = vld [vmem:[#allocation16 + $0x34] sm:$0xf]
        %v3576 = vld [vmem:[#allocation16 + $0x38] sm:$0xf]
        %v3577 = vld [vmem:[#allocation16 + $0x3c] sm:$0xf]
        %v3578 = vld [vmem:[#allocation16 + $0x40] sm:$0xf]
        %v3579 = vld [vmem:[#allocation16 + $0x44] sm:$0xf]
        %v3580 = vld [vmem:[#allocation16 + $0x48] sm:$0xf]
        %v3581 = vld [vmem:[#allocation16 + $0x4c] sm:$0xf]
        %v3582 = vld [vmem:[#allocation16 + $0x50] sm:$0xf]
        %v3583 = vld [vmem:[#allocation16 + $0x54] sm:$0xf]
        %v3584 = vld [vmem:[#allocation16 + $0x58] sm:$0xf]
        %v3585 = vld [vmem:[#allocation16 + $0x5c] sm:$0xf]
        %v3586 = vld [vmem:[#allocation16 + $0x60] sm:$0xf]
        %v3587 = vld [vmem:[#allocation16 + $0x64] sm:$0xf]
        %v3588 = vld [vmem:[#allocation16 + $0x68] sm:$0xf]
        %v3589 = vld [vmem:[#allocation16 + $0x6c] sm:$0xf]
        %v3590 = vld [vmem:[#allocation16 + $0x70] sm:$0xf]
        %v3591 = vld [vmem:[#allocation16 + $0x74] sm:$0xf]
        %v3592 = vld [vmem:[#allocation16 + $0x78] sm:$0xf]
        %v3593 = vld [vmem:[#allocation16 + $0x7c] sm:$0xf]
        %v3594 = vld [vmem:[#allocation16 + $0x80] sm:$0xf]
        %v3595 = vld [vmem:[#allocation16 + $0x84] sm:$0xf]
        %v3596 = vld [vmem:[#allocation16 + $0x88] sm:$0xf]
        %v3597 = vld [vmem:[#allocation16 + $0x8c] sm:$0xf]
        %v3598 = vld [vmem:[#allocation16 + $0x90] sm:$0xf]
        %v3599 = vld [vmem:[#allocation16 + $0x94] sm:$0xf]
        %v3600 = vld [vmem:[#allocation16 + $0x98] sm:$0xf]
        %v3601 = vld [vmem:[#allocation16 + $0x9c] sm:$0xf]
        %v3602 = vld [vmem:[#allocation16 + $0xa0] sm:$0xf]
        %v3603 = vld [vmem:[#allocation16 + $0xa4] sm:$0xf]
        %v3604 = vld [vmem:[#allocation16 + $0xa8] sm:$0xf]
        %v3605 = vld [vmem:[#allocation16 + $0xac] sm:$0xf]
        %v3606 = vld [vmem:[#allocation16 + $0xb0] sm:$0xf]
        %v3607 = vld [vmem:[#allocation16 + $0xb4] sm:$0xf]
        %v3608 = vld [vmem:[#allocation16 + $0xb8] sm:$0xf]
        %v3609 = vld [vmem:[#allocation16 + $0xbc] sm:$0xf]
        %v3610 = vld [vmem:[#allocation16 + $0xc0] sm:$0xf]
        %v3611 = vld [vmem:[#allocation16 + $0xc4] sm:$0xf]
        %v3612 = vld [vmem:[#allocation16 + $0xc8] sm:$0xf]
        %v3613 = vld [vmem:[#allocation16 + $0xcc] sm:$0xf]
        %v3614 = vld [vmem:[#allocation16 + $0xd0] sm:$0xf]
        %v3615 = vld [vmem:[#allocation16 + $0xd4] sm:$0xf]
        %v3616 = vld [vmem:[#allocation16 + $0xd8] sm:$0xf]
        %v3617 = vld [vmem:[#allocation16 + $0xdc] sm:$0xf]
        %v3618 = vld [vmem:[#allocation16 + $0xe0] sm:$0xf]
        %v3619 = vld [vmem:[#allocation16 + $0xe4] sm:$0xf]
        %v3620 = vld [vmem:[#allocation16 + $0xe8] sm:$0xf]
        %v3621 = vld [vmem:[#allocation16 + $0xec] sm:$0xf]
        %v3622 = vld [vmem:[#allocation16 + $0xf0] sm:$0xf]
        %v3623 = vld [vmem:[#allocation16 + $0xf4] sm:$0xf]
        %v3624 = vld [vmem:[#allocation16 + $0xf8] sm:$0xf]
        %v3625 = vld [vmem:[#allocation16 + $0xfc] sm:$0xf]
        %v3626 = vld [vmem:[%s14] sm:$0x1]
        %v3628 = vperm.slane %v3626, 0
        %v3694 = vunpack.c.l.b16 %v3562
        %v3695 = vunpack.c.l.b16 %v3563
        %v3696 = vunpack.c.l.b16 %v3564
        %v3697 = vunpack.c.l.b16 %v3565
        %v3698 = vunpack.c.l.b16 %v3566
        %v3699 = vunpack.c.l.b16 %v3567
        %v3700 = vunpack.c.l.b16 %v3568
        %v3701 = vunpack.c.l.b16 %v3569
        %v3702 = vunpack.c.l.b16 %v3570
        %v3703 = vunpack.c.l.b16 %v3571
        %v3704 = vunpack.c.l.b16 %v3572
        %v3705 = vunpack.c.l.b16 %v3573
        %v3706 = vunpack.c.l.b16 %v3574
        %v3707 = vunpack.c.l.b16 %v3575
        %v3708 = vunpack.c.l.b16 %v3576
        %v3709 = vunpack.c.l.b16 %v3577
        %v3710 = vunpack.c.l.b16 %v3578
        %v3711 = vunpack.c.l.b16 %v3579
        %v3712 = vunpack.c.l.b16 %v3580
        %v3713 = vunpack.c.l.b16 %v3581
        %v3714 = vunpack.c.l.b16 %v3582
        %v3715 = vunpack.c.l.b16 %v3583
        %v3716 = vunpack.c.l.b16 %v3584
        %v3717 = vunpack.c.l.b16 %v3585
        %v3718 = vunpack.c.l.b16 %v3586
        %v3719 = vunpack.c.l.b16 %v3587
        %v3720 = vunpack.c.l.b16 %v3588
        %v3721 = vunpack.c.l.b16 %v3589
        %v3722 = vunpack.c.l.b16 %v3590
        %v3723 = vunpack.c.l.b16 %v3591
        %v3724 = vunpack.c.l.b16 %v3592
        %v3725 = vunpack.c.l.b16 %v3593
        %v3726 = vunpack.c.l.b16 %v3594
        %v3727 = vunpack.c.l.b16 %v3595
        %v3728 = vunpack.c.l.b16 %v3596
        %v3729 = vunpack.c.l.b16 %v3597
        %v3730 = vunpack.c.l.b16 %v3598
        %v3731 = vunpack.c.l.b16 %v3599
        %v3732 = vunpack.c.l.b16 %v3600
        %v3733 = vunpack.c.l.b16 %v3601
        %v3734 = vunpack.c.l.b16 %v3602
        %v3735 = vunpack.c.l.b16 %v3603
        %v3736 = vunpack.c.l.b16 %v3604
        %v3737 = vunpack.c.l.b16 %v3605
        %v3738 = vunpack.c.l.b16 %v3606
        %v3739 = vunpack.c.l.b16 %v3607
        %v3740 = vunpack.c.l.b16 %v3608
        %v3741 = vunpack.c.l.b16 %v3609
        %v3742 = vunpack.c.l.b16 %v3610
        %v3743 = vunpack.c.l.b16 %v3611
        %v3744 = vunpack.c.l.b16 %v3612
        %v3745 = vunpack.c.l.b16 %v3613
        %v3746 = vunpack.c.l.b16 %v3614
        %v3747 = vunpack.c.l.b16 %v3615
        %v3748 = vunpack.c.l.b16 %v3616
        %v3749 = vunpack.c.l.b16 %v3617
        %v3750 = vunpack.c.l.b16 %v3618
        %v3751 = vunpack.c.l.b16 %v3619
        %v3752 = vunpack.c.l.b16 %v3620
        %v3753 = vunpack.c.l.b16 %v3621
        %v3754 = vunpack.c.l.b16 %v3622
        %v3755 = vunpack.c.l.b16 %v3623
        %v3756 = vunpack.c.l.b16 %v3624
        %v3757 = vunpack.c.l.b16 %v3625
        %v3758 = vpack.c.b16 %v3695, %v3694
        %v3759 = vpack.c.b16 %v3697, %v3696
        %v3760 = vpack.c.b16 %v3699, %v3698
        %v3761 = vpack.c.b16 %v3701, %v3700
        %v3762 = vpack.c.b16 %v3703, %v3702
        %v3763 = vpack.c.b16 %v3705, %v3704
        %v3764 = vpack.c.b16 %v3707, %v3706
        %v3765 = vpack.c.b16 %v3709, %v3708
        %v3766 = vpack.c.b16 %v3711, %v3710
        %v3767 = vpack.c.b16 %v3713, %v3712
        %v3768 = vpack.c.b16 %v3715, %v3714
        %v3769 = vpack.c.b16 %v3717, %v3716
        %v3770 = vpack.c.b16 %v3719, %v3718
        %v3771 = vpack.c.b16 %v3721, %v3720
        %v3772 = vpack.c.b16 %v3723, %v3722
        %v3773 = vpack.c.b16 %v3725, %v3724
        %v3774 = vpack.c.b16 %v3727, %v3726
        %v3775 = vpack.c.b16 %v3729, %v3728
        %v3776 = vpack.c.b16 %v3731, %v3730
        %v3777 = vpack.c.b16 %v3733, %v3732
        %v3778 = vpack.c.b16 %v3735, %v3734
        %v3779 = vpack.c.b16 %v3737, %v3736
        %v3780 = vpack.c.b16 %v3739, %v3738
        %v3781 = vpack.c.b16 %v3741, %v3740
        %v3782 = vpack.c.b16 %v3743, %v3742
        %v3783 = vpack.c.b16 %v3745, %v3744
        %v3784 = vpack.c.b16 %v3747, %v3746
        %v3785 = vpack.c.b16 %v3749, %v3748
        %v3786 = vpack.c.b16 %v3751, %v3750
        %v3787 = vpack.c.b16 %v3753, %v3752
        %v3788 = vpack.c.b16 %v3755, %v3754
        %v3789 = vpack.c.b16 %v3757, %v3756
        %3822 = vmatpush.bf16.msra.mxu0 %v3765
        %3823 = vmatpush.bf16.msra.mxu0 %v3764
        %3824 = vmatpush.bf16.msra.mxu0 %v3763
        %3825 = vmatpush.bf16.msra.mxu0 %v3762
        %3826 = vmatpush.bf16.msra.mxu0 %v3761
        %3827 = vmatpush.bf16.msra.mxu0 %v3760
        %3828 = vmatpush.bf16.msra.mxu0 %v3759
        %3829 = vmatpush.bf16.msra.mxu0 %v3758
        %3830 = vmatmul.bf16.gmra.mxu0 %v3530
        %v3831 = vpop.f32.mrf.mxu0
        %v3832 = vadd.f32 %v3628, %v3831
        %v3833 = vpop.f32.mrf.mxu0
        %v3834 = vadd.f32 %v3628, %v3833
        %3835 = vmatmul.bf16.gmra.mxu0 %v3534
        %v3836 = vpop.f32.mrf.mxu0
        %v3837 = vadd.f32 %v3628, %v3836
        %v3838 = vpop.f32.mrf.mxu0
        %v3839 = vadd.f32 %v3628, %v3838
        %3840 = vmatmul.bf16.gmra.mxu0 %v3538
        %v3841 = vpop.f32.mrf.mxu0
        %v3842 = vadd.f32 %v3628, %v3841
        %v3843 = vpop.f32.mrf.mxu0
        %v3844 = vadd.f32 %v3628, %v3843
        %3845 = vmatmul.bf16.gmra.mxu0 %v3542
        %v3846 = vpop.f32.mrf.mxu0
        %v3847 = vadd.f32 %v3628, %v3846
        %v3848 = vpop.f32.mrf.mxu0
        %v3849 = vadd.f32 %v3628, %v3848
        %3850 = vmatmul.bf16.gmra.mxu0 %v3546
        %v3851 = vpop.f32.mrf.mxu0
        %v3852 = vadd.f32 %v3628, %v3851
        %v3853 = vpop.f32.mrf.mxu0
        %v3854 = vadd.f32 %v3628, %v3853
        %3855 = vmatmul.bf16.gmra.mxu0 %v3550
        %v3856 = vpop.f32.mrf.mxu0
        %v3857 = vadd.f32 %v3628, %v3856
        %v3858 = vpop.f32.mrf.mxu0
        %v3859 = vadd.f32 %v3628, %v3858
        %3860 = vmatmul.bf16.gmra.mxu0 %v3554
        %v3861 = vpop.f32.mrf.mxu0
        %v3862 = vadd.f32 %v3628, %v3861
        %v3863 = vpop.f32.mrf.mxu0
        %v3864 = vadd.f32 %v3628, %v3863
        %3865 = vmatmul.bf16.gmra.mxu0 %v3558
        %v3866 = vpop.f32.mrf.mxu0
        %v3867 = vadd.f32 %v3628, %v3866
        %v3868 = vpop.f32.mrf.mxu0
        %v3869 = vadd.f32 %v3628, %v3868
        %3870 = vdwg.mxu0
        %3871 = vmatpush.bf16.msra.mxu0 %v3773
        %3872 = vmatpush.bf16.msra.mxu0 %v3772
        %3873 = vmatpush.bf16.msra.mxu0 %v3771
        %3874 = vmatpush.bf16.msra.mxu0 %v3770
        %3875 = vmatpush.bf16.msra.mxu0 %v3769
        %3876 = vmatpush.bf16.msra.mxu0 %v3768
        %3877 = vmatpush.bf16.msra.mxu0 %v3767
        %3878 = vmatpush.bf16.msra.mxu0 %v3766
        %3879 = vmatmul.bf16.gmra.mxu0 %v3531
        %v3880 = vpop.f32.mrf.mxu0
        %v3881 = vadd.f32 %v3832, %v3880
        %v3882 = vpop.f32.mrf.mxu0
        %v3883 = vadd.f32 %v3834, %v3882
        %3884 = vmatmul.bf16.gmra.mxu0 %v3535
        %v3885 = vpop.f32.mrf.mxu0
        %v3886 = vadd.f32 %v3837, %v3885
        %v3887 = vpop.f32.mrf.mxu0
        %v3888 = vadd.f32 %v3839, %v3887
        %3889 = vmatmul.bf16.gmra.mxu0 %v3539
        %v3890 = vpop.f32.mrf.mxu0
        %v3891 = vadd.f32 %v3842, %v3890
        %v3892 = vpop.f32.mrf.mxu0
        %v3893 = vadd.f32 %v3844, %v3892
        %3894 = vmatmul.bf16.gmra.mxu0 %v3543
        %v3895 = vpop.f32.mrf.mxu0
        %v3896 = vadd.f32 %v3847, %v3895
        %v3897 = vpop.f32.mrf.mxu0
        %v3898 = vadd.f32 %v3849, %v3897
        %3899 = vmatmul.bf16.gmra.mxu0 %v3547
        %v3900 = vpop.f32.mrf.mxu0
        %v3901 = vadd.f32 %v3852, %v3900
        %v3902 = vpop.f32.mrf.mxu0
        %v3903 = vadd.f32 %v3854, %v3902
        %3904 = vmatmul.bf16.gmra.mxu0 %v3551
        %v3905 = vpop.f32.mrf.mxu0
        %v3906 = vadd.f32 %v3857, %v3905
        %v3907 = vpop.f32.mrf.mxu0
        %v3908 = vadd.f32 %v3859, %v3907
        %3909 = vmatmul.bf16.gmra.mxu0 %v3555
        %v3910 = vpop.f32.mrf.mxu0
        %v3911 = vadd.f32 %v3862, %v3910
        %v3912 = vpop.f32.mrf.mxu0
        %v3913 = vadd.f32 %v3864, %v3912
        %3914 = vmatmul.bf16.gmra.mxu0 %v3559
        %v3915 = vpop.f32.mrf.mxu0
        %v3916 = vadd.f32 %v3867, %v3915
        %v3917 = vpop.f32.mrf.mxu0
        %v3918 = vadd.f32 %v3869, %v3917
        %3919 = vdwg.mxu0
        %3920 = vmatpush.bf16.msra.mxu0 %v3781
        %3921 = vmatpush.bf16.msra.mxu0 %v3780
        %3922 = vmatpush.bf16.msra.mxu0 %v3779
        %3923 = vmatpush.bf16.msra.mxu0 %v3778
        %3924 = vmatpush.bf16.msra.mxu0 %v3777
        %3925 = vmatpush.bf16.msra.mxu0 %v3776
        %3926 = vmatpush.bf16.msra.mxu0 %v3775
        %3927 = vmatpush.bf16.msra.mxu0 %v3774
        %3928 = vmatmul.bf16.gmra.mxu0 %v3532
        %v3929 = vpop.f32.mrf.mxu0
        %v3930 = vadd.f32 %v3881, %v3929
        %v3931 = vpop.f32.mrf.mxu0
        %v3932 = vadd.f32 %v3883, %v3931
        %3933 = vmatmul.bf16.gmra.mxu0 %v3536
        %v3934 = vpop.f32.mrf.mxu0
        %v3935 = vadd.f32 %v3886, %v3934
        %v3936 = vpop.f32.mrf.mxu0
        %v3937 = vadd.f32 %v3888, %v3936
        %3938 = vmatmul.bf16.gmra.mxu0 %v3540
        %v3939 = vpop.f32.mrf.mxu0
        %v3940 = vadd.f32 %v3891, %v3939
        %v3941 = vpop.f32.mrf.mxu0
        %v3942 = vadd.f32 %v3893, %v3941
        %3943 = vmatmul.bf16.gmra.mxu0 %v3544
        %v3944 = vpop.f32.mrf.mxu0
        %v3945 = vadd.f32 %v3896, %v3944
        %v3946 = vpop.f32.mrf.mxu0
        %v3947 = vadd.f32 %v3898, %v3946
        %3948 = vmatmul.bf16.gmra.mxu0 %v3548
        %v3949 = vpop.f32.mrf.mxu0
        %v3950 = vadd.f32 %v3901, %v3949
        %v3951 = vpop.f32.mrf.mxu0
        %v3952 = vadd.f32 %v3903, %v3951
        %3953 = vmatmul.bf16.gmra.mxu0 %v3552
        %v3954 = vpop.f32.mrf.mxu0
        %v3955 = vadd.f32 %v3906, %v3954
        %v3956 = vpop.f32.mrf.mxu0
        %v3957 = vadd.f32 %v3908, %v3956
        %3958 = vmatmul.bf16.gmra.mxu0 %v3556
        %v3959 = vpop.f32.mrf.mxu0
        %v3960 = vadd.f32 %v3911, %v3959
        %v3961 = vpop.f32.mrf.mxu0
        %v3962 = vadd.f32 %v3913, %v3961
        %3963 = vmatmul.bf16.gmra.mxu0 %v3560
        %v3964 = vpop.f32.mrf.mxu0
        %v3965 = vadd.f32 %v3916, %v3964
        %v3966 = vpop.f32.mrf.mxu0
        %v3967 = vadd.f32 %v3918, %v3966
        %3968 = vdwg.mxu0
        %3969 = vmatpush.bf16.msra.mxu0 %v3789
        %3970 = vmatpush.bf16.msra.mxu0 %v3788
        %3971 = vmatpush.bf16.msra.mxu0 %v3787
        %3972 = vmatpush.bf16.msra.mxu0 %v3786
        %3973 = vmatpush.bf16.msra.mxu0 %v3785
        %3974 = vmatpush.bf16.msra.mxu0 %v3784
        %3975 = vmatpush.bf16.msra.mxu0 %v3783
        %3976 = vmatpush.bf16.msra.mxu0 %v3782
        %3977 = vmatmul.bf16.gmra.mxu0 %v3533
        %v3978 = vpop.f32.mrf.mxu0
        %v3979 = vadd.f32 %v3930, %v3978
        %v3980 = vpop.f32.mrf.mxu0
        %v3981 = vadd.f32 %v3932, %v3980
        %3982 = vmatmul.bf16.gmra.mxu0 %v3537
        %v3983 = vpop.f32.mrf.mxu0
        %v3984 = vadd.f32 %v3935, %v3983
        %v3985 = vpop.f32.mrf.mxu0
        %v3986 = vadd.f32 %v3937, %v3985
        %3987 = vmatmul.bf16.gmra.mxu0 %v3541
        %v3988 = vpop.f32.mrf.mxu0
        %v3989 = vadd.f32 %v3940, %v3988
        %v3990 = vpop.f32.mrf.mxu0
        %v3991 = vadd.f32 %v3942, %v3990
        %3992 = vmatmul.bf16.gmra.mxu0 %v3545
        %v3993 = vpop.f32.mrf.mxu0
        %v3994 = vadd.f32 %v3945, %v3993
        %v3995 = vpop.f32.mrf.mxu0
        %v3996 = vadd.f32 %v3947, %v3995
        %3997 = vmatmul.bf16.gmra.mxu0 %v3549
        %v3998 = vpop.f32.mrf.mxu0
        %v3999 = vadd.f32 %v3950, %v3998
        %v4000 = vpop.f32.mrf.mxu0
        %v4001 = vadd.f32 %v3952, %v4000
        %4002 = vmatmul.bf16.gmra.mxu0 %v3553
        %v4003 = vpop.f32.mrf.mxu0
        %v4004 = vadd.f32 %v3955, %v4003
        %v4005 = vpop.f32.mrf.mxu0
        %v4006 = vadd.f32 %v3957, %v4005
        %4007 = vmatmul.bf16.gmra.mxu0 %v3557
        %v4008 = vpop.f32.mrf.mxu0
        %v4009 = vadd.f32 %v3960, %v4008
        %v4010 = vpop.f32.mrf.mxu0
        %v4011 = vadd.f32 %v3962, %v4010
        %4012 = vmatmul.bf16.gmra.mxu0 %v3561
        %v4013 = vpop.f32.mrf.mxu0
        %v4014 = vadd.f32 %v3965, %v4013
        %v4015 = vpop.f32.mrf.mxu0
        %v4016 = vadd.f32 %v3967, %v4015
        %4017 = vdwg.mxu0
        %v4018 = vadd.f32 %v2532, %v3979
        %v4019 = vadd.f32 %v2533, %v3981
        %v4020 = vadd.f32 %v2534, %v3984
        %v4021 = vadd.f32 %v2535, %v3986
        %v4022 = vadd.f32 %v2536, %v3989
        %v4023 = vadd.f32 %v2537, %v3991
        %v4024 = vadd.f32 %v2538, %v3994
        %v4025 = vadd.f32 %v2539, %v3996
        %v4026 = vadd.f32 %v2540, %v3999
        %v4027 = vadd.f32 %v2541, %v4001
        %v4028 = vadd.f32 %v2542, %v4004
        %v4029 = vadd.f32 %v2543, %v4006
        %v4030 = vadd.f32 %v2544, %v4009
        %v4031 = vadd.f32 %v2545, %v4011
        %v4032 = vadd.f32 %v2546, %v4014
        %v4033 = vadd.f32 %v2547, %v4016
        %v4034 = vld [vmem:[%s15] sm:$0x1]
        %v4035 = vld [vmem:[%s16] sm:$0x1]
        %4036 = vadd.xlane.f32.xlu0 %v4018
        %v4037 = vpop.xlane.xlu0 %4036
        %4038 = vadd.xlane.f32.xlu0 %v4019
        %v4039 = vpop.xlane.xlu0 %4038
        %4040 = vadd.xlane.f32.xlu0 %v4020
        %v4041 = vpop.xlane.xlu0 %4040
        %4042 = vadd.xlane.f32.xlu0 %v4021
        %v4043 = vpop.xlane.xlu0 %4042
        %4044 = vadd.xlane.f32.xlu0 %v4022
        %v4045 = vpop.xlane.xlu0 %4044
        %4046 = vadd.xlane.f32.xlu0 %v4023
        %v4047 = vpop.xlane.xlu0 %4046
        %4048 = vadd.xlane.f32.xlu0 %v4024
        %v4049 = vpop.xlane.xlu0 %4048
        %4050 = vadd.xlane.f32.xlu0 %v4025
        %v4051 = vpop.xlane.xlu0 %4050
        %4052 = vadd.xlane.f32.xlu0 %v4026
        %v4053 = vpop.xlane.xlu0 %4052
        %4054 = vadd.xlane.f32.xlu0 %v4027
        %v4055 = vpop.xlane.xlu0 %4054
        %4056 = vadd.xlane.f32.xlu0 %v4028
        %v4057 = vpop.xlane.xlu0 %4056
        %4058 = vadd.xlane.f32.xlu0 %v4029
        %v4059 = vpop.xlane.xlu0 %4058
        %4060 = vadd.xlane.f32.xlu0 %v4030
        %v4061 = vpop.xlane.xlu0 %4060
        %4062 = vadd.xlane.f32.xlu0 %v4031
        %v4063 = vpop.xlane.xlu0 %4062
        %4064 = vadd.xlane.f32.xlu0 %v4032
        %v4065 = vpop.xlane.xlu0 %4064
        %4066 = vadd.xlane.f32.xlu0 %v4033
        %v4067 = vpop.xlane.xlu0 %4066
        %v4068 = vmul.f32 %v4037, %v2221
        %v4069 = vmul.f32 %v4039, %v2221
        %v4070 = vmul.f32 %v4041, %v2221
        %v4071 = vmul.f32 %v4043, %v2221
        %v4072 = vmul.f32 %v4045, %v2221
        %v4073 = vmul.f32 %v4047, %v2221
        %v4074 = vmul.f32 %v4049, %v2221
        %v4075 = vmul.f32 %v4051, %v2221
        %v4076 = vmul.f32 %v4053, %v2221
        %v4077 = vmul.f32 %v4055, %v2221
        %v4078 = vmul.f32 %v4057, %v2221
        %v4079 = vmul.f32 %v4059, %v2221
        %v4080 = vmul.f32 %v4061, %v2221
        %v4081 = vmul.f32 %v4063, %v2221
        %v4082 = vmul.f32 %v4065, %v2221
        %v4083 = vmul.f32 %v4067, %v2221
        %v4084 = vsub.f32 %v4018, %v4068
        %v4085 = vsub.f32 %v4019, %v4069
        %v4086 = vsub.f32 %v4020, %v4070
        %v4087 = vsub.f32 %v4021, %v4071
        %v4088 = vsub.f32 %v4022, %v4072
        %v4089 = vsub.f32 %v4023, %v4073
        %v4090 = vsub.f32 %v4024, %v4074
        %v4091 = vsub.f32 %v4025, %v4075
        %v4092 = vsub.f32 %v4026, %v4076
        %v4093 = vsub.f32 %v4027, %v4077
        %v4094 = vsub.f32 %v4028, %v4078
        %v4095 = vsub.f32 %v4029, %v4079
        %v4096 = vsub.f32 %v4030, %v4080
        %v4097 = vsub.f32 %v4031, %v4081
        %v4098 = vsub.f32 %v4032, %v4082
        %v4099 = vsub.f32 %v4033, %v4083
        %v4100 = vmul.f32 %v4084, %v4084
        %v4101 = vmul.f32 %v4085, %v4085
        %v4102 = vmul.f32 %v4086, %v4086
        %v4103 = vmul.f32 %v4087, %v4087
        %v4104 = vmul.f32 %v4088, %v4088
        %v4105 = vmul.f32 %v4089, %v4089
        %v4106 = vmul.f32 %v4090, %v4090
        %v4107 = vmul.f32 %v4091, %v4091
        %v4108 = vmul.f32 %v4092, %v4092
        %v4109 = vmul.f32 %v4093, %v4093
        %v4110 = vmul.f32 %v4094, %v4094
        %v4111 = vmul.f32 %v4095, %v4095
        %v4112 = vmul.f32 %v4096, %v4096
        %v4113 = vmul.f32 %v4097, %v4097
        %v4114 = vmul.f32 %v4098, %v4098
        %v4115 = vmul.f32 %v4099, %v4099
        %4116 = vadd.xlane.f32.xlu0 %v4100
        %v4117 = vpop.xlane.xlu0 %4116
        %4118 = vadd.xlane.f32.xlu0 %v4101
        %v4119 = vpop.xlane.xlu0 %4118
        %4120 = vadd.xlane.f32.xlu0 %v4102
        %v4121 = vpop.xlane.xlu0 %4120
        %4122 = vadd.xlane.f32.xlu0 %v4103
        %v4123 = vpop.xlane.xlu0 %4122
        %4124 = vadd.xlane.f32.xlu0 %v4104
        %v4125 = vpop.xlane.xlu0 %4124
        %4126 = vadd.xlane.f32.xlu0 %v4105
        %v4127 = vpop.xlane.xlu0 %4126
        %4128 = vadd.xlane.f32.xlu0 %v4106
        %v4129 = vpop.xlane.xlu0 %4128
        %4130 = vadd.xlane.f32.xlu0 %v4107
        %v4131 = vpop.xlane.xlu0 %4130
        %4132 = vadd.xlane.f32.xlu0 %v4108
        %v4133 = vpop.xlane.xlu0 %4132
        %4134 = vadd.xlane.f32.xlu0 %v4109
        %v4135 = vpop.xlane.xlu0 %4134
        %4136 = vadd.xlane.f32.xlu0 %v4110
        %v4137 = vpop.xlane.xlu0 %4136
        %4138 = vadd.xlane.f32.xlu0 %v4111
        %v4139 = vpop.xlane.xlu0 %4138
        %4140 = vadd.xlane.f32.xlu0 %v4112
        %v4141 = vpop.xlane.xlu0 %4140
        %4142 = vadd.xlane.f32.xlu0 %v4113
        %v4143 = vpop.xlane.xlu0 %4142
        %4144 = vadd.xlane.f32.xlu0 %v4114
        %v4145 = vpop.xlane.xlu0 %4144
        %4146 = vadd.xlane.f32.xlu0 %v4115
        %v4147 = vpop.xlane.xlu0 %4146
        %v4148 = vmul.f32 %v4117, %v2221
        %v4149 = vmul.f32 %v4119, %v2221
        %v4150 = vmul.f32 %v4121, %v2221
        %v4151 = vmul.f32 %v4123, %v2221
        %v4152 = vmul.f32 %v4125, %v2221
        %v4153 = vmul.f32 %v4127, %v2221
        %v4154 = vmul.f32 %v4129, %v2221
        %v4155 = vmul.f32 %v4131, %v2221
        %v4156 = vmul.f32 %v4133, %v2221
        %v4157 = vmul.f32 %v4135, %v2221
        %v4158 = vmul.f32 %v4137, %v2221
        %v4159 = vmul.f32 %v4139, %v2221
        %v4160 = vmul.f32 %v4141, %v2221
        %v4161 = vmul.f32 %v4143, %v2221
        %v4162 = vmul.f32 %v4145, %v2221
        %v4163 = vmul.f32 %v4147, %v2221
        %v4164 = vadd.f32 %v4148, 1e-12
        %v4165 = vadd.f32 %v4149, 1e-12
        %v4166 = vadd.f32 %v4150, 1e-12
        %v4167 = vadd.f32 %v4151, 1e-12
        %v4168 = vadd.f32 %v4152, 1e-12
        %v4169 = vadd.f32 %v4153, 1e-12
        %v4170 = vadd.f32 %v4154, 1e-12
        %v4171 = vadd.f32 %v4155, 1e-12
        %v4172 = vadd.f32 %v4156, 1e-12
        %v4173 = vadd.f32 %v4157, 1e-12
        %v4174 = vadd.f32 %v4158, 1e-12
        %v4175 = vadd.f32 %v4159, 1e-12
        %v4176 = vadd.f32 %v4160, 1e-12
        %v4177 = vadd.f32 %v4161, 1e-12
        %v4178 = vadd.f32 %v4162, 1e-12
        %v4179 = vadd.f32 %v4163, 1e-12
        %v4180 = vrsqrt.pop %v4164
        %v4181 = vmul.f32 %v4180, %v4164
        %v4182 = vmul.f32 %v4181, %v4180
        %v4183 = vmul.f32 0.5, %v4182
        %v4184 = vsub.f32 1.5, %v4183
        %v4185 = vmul.f32 %v4180, %v4184
        %vm4186 = vweird.f32 %v4164
        %vm4187 = vweird.f32 %v4180
        %vm4188 = vmor %vm4186, %vm4187
        %v4189 = vsel %vm4188, %v4180, %v4185
        %v4190 = vrsqrt.pop %v4165
        %v4191 = vmul.f32 %v4190, %v4165
        %v4192 = vmul.f32 %v4191, %v4190
        %v4193 = vmul.f32 0.5, %v4192
        %v4194 = vsub.f32 1.5, %v4193
        %v4195 = vmul.f32 %v4190, %v4194
        %vm4196 = vweird.f32 %v4165
        %vm4197 = vweird.f32 %v4190
        %vm4198 = vmor %vm4196, %vm4197
        %v4199 = vsel %vm4198, %v4190, %v4195
        %v4200 = vrsqrt.pop %v4166
        %v4201 = vmul.f32 %v4200, %v4166
        %v4202 = vmul.f32 %v4201, %v4200
        %v4203 = vmul.f32 0.5, %v4202
        %v4204 = vsub.f32 1.5, %v4203
        %v4205 = vmul.f32 %v4200, %v4204
        %vm4206 = vweird.f32 %v4166
        %vm4207 = vweird.f32 %v4200
        %vm4208 = vmor %vm4206, %vm4207
        %v4209 = vsel %vm4208, %v4200, %v4205
        %v4210 = vrsqrt.pop %v4167
        %v4211 = vmul.f32 %v4210, %v4167
        %v4212 = vmul.f32 %v4211, %v4210
        %v4213 = vmul.f32 0.5, %v4212
        %v4214 = vsub.f32 1.5, %v4213
        %v4215 = vmul.f32 %v4210, %v4214
        %vm4216 = vweird.f32 %v4167
        %vm4217 = vweird.f32 %v4210
        %vm4218 = vmor %vm4216, %vm4217
        %v4219 = vsel %vm4218, %v4210, %v4215
        %v4220 = vrsqrt.pop %v4168
        %v4221 = vmul.f32 %v4220, %v4168
        %v4222 = vmul.f32 %v4221, %v4220
        %v4223 = vmul.f32 0.5, %v4222
        %v4224 = vsub.f32 1.5, %v4223
        %v4225 = vmul.f32 %v4220, %v4224
        %vm4226 = vweird.f32 %v4168
        %vm4227 = vweird.f32 %v4220
        %vm4228 = vmor %vm4226, %vm4227
        %v4229 = vsel %vm4228, %v4220, %v4225
        %v4230 = vrsqrt.pop %v4169
        %v4231 = vmul.f32 %v4230, %v4169
        %v4232 = vmul.f32 %v4231, %v4230
        %v4233 = vmul.f32 0.5, %v4232
        %v4234 = vsub.f32 1.5, %v4233
        %v4235 = vmul.f32 %v4230, %v4234
        %vm4236 = vweird.f32 %v4169
        %vm4237 = vweird.f32 %v4230
        %vm4238 = vmor %vm4236, %vm4237
        %v4239 = vsel %vm4238, %v4230, %v4235
        %v4240 = vrsqrt.pop %v4170
        %v4241 = vmul.f32 %v4240, %v4170
        %v4242 = vmul.f32 %v4241, %v4240
        %v4243 = vmul.f32 0.5, %v4242
        %v4244 = vsub.f32 1.5, %v4243
        %v4245 = vmul.f32 %v4240, %v4244
        %vm4246 = vweird.f32 %v4170
        %vm4247 = vweird.f32 %v4240
        %vm4248 = vmor %vm4246, %vm4247
        %v4249 = vsel %vm4248, %v4240, %v4245
        %v4250 = vrsqrt.pop %v4171
        %v4251 = vmul.f32 %v4250, %v4171
        %v4252 = vmul.f32 %v4251, %v4250
        %v4253 = vmul.f32 0.5, %v4252
        %v4254 = vsub.f32 1.5, %v4253
        %v4255 = vmul.f32 %v4250, %v4254
        %vm4256 = vweird.f32 %v4171
        %vm4257 = vweird.f32 %v4250
        %vm4258 = vmor %vm4256, %vm4257
        %v4259 = vsel %vm4258, %v4250, %v4255
        %v4260 = vrsqrt.pop %v4172
        %v4261 = vmul.f32 %v4260, %v4172
        %v4262 = vmul.f32 %v4261, %v4260
        %v4263 = vmul.f32 0.5, %v4262
        %v4264 = vsub.f32 1.5, %v4263
        %v4265 = vmul.f32 %v4260, %v4264
        %vm4266 = vweird.f32 %v4172
        %vm4267 = vweird.f32 %v4260
        %vm4268 = vmor %vm4266, %vm4267
        %v4269 = vsel %vm4268, %v4260, %v4265
        %v4270 = vrsqrt.pop %v4173
        %v4271 = vmul.f32 %v4270, %v4173
        %v4272 = vmul.f32 %v4271, %v4270
        %v4273 = vmul.f32 0.5, %v4272
        %v4274 = vsub.f32 1.5, %v4273
        %v4275 = vmul.f32 %v4270, %v4274
        %vm4276 = vweird.f32 %v4173
        %vm4277 = vweird.f32 %v4270
        %vm4278 = vmor %vm4276, %vm4277
        %v4279 = vsel %vm4278, %v4270, %v4275
        %v4280 = vrsqrt.pop %v4174
        %v4281 = vmul.f32 %v4280, %v4174
        %v4282 = vmul.f32 %v4281, %v4280
        %v4283 = vmul.f32 0.5, %v4282
        %v4284 = vsub.f32 1.5, %v4283
        %v4285 = vmul.f32 %v4280, %v4284
        %vm4286 = vweird.f32 %v4174
        %vm4287 = vweird.f32 %v4280
        %vm4288 = vmor %vm4286, %vm4287
        %v4289 = vsel %vm4288, %v4280, %v4285
        %v4290 = vrsqrt.pop %v4175
        %v4291 = vmul.f32 %v4290, %v4175
        %v4292 = vmul.f32 %v4291, %v4290
        %v4293 = vmul.f32 0.5, %v4292
        %v4294 = vsub.f32 1.5, %v4293
        %v4295 = vmul.f32 %v4290, %v4294
        %vm4296 = vweird.f32 %v4175
        %vm4297 = vweird.f32 %v4290
        %vm4298 = vmor %vm4296, %vm4297
        %v4299 = vsel %vm4298, %v4290, %v4295
        %v4300 = vrsqrt.pop %v4176
        %v4301 = vmul.f32 %v4300, %v4176
        %v4302 = vmul.f32 %v4301, %v4300
        %v4303 = vmul.f32 0.5, %v4302
        %v4304 = vsub.f32 1.5, %v4303
        %v4305 = vmul.f32 %v4300, %v4304
        %vm4306 = vweird.f32 %v4176
        %vm4307 = vweird.f32 %v4300
        %vm4308 = vmor %vm4306, %vm4307
        %v4309 = vsel %vm4308, %v4300, %v4305
        %v4310 = vrsqrt.pop %v4177
        %v4311 = vmul.f32 %v4310, %v4177
        %v4312 = vmul.f32 %v4311, %v4310
        %v4313 = vmul.f32 0.5, %v4312
        %v4314 = vsub.f32 1.5, %v4313
        %v4315 = vmul.f32 %v4310, %v4314
        %vm4316 = vweird.f32 %v4177
        %vm4317 = vweird.f32 %v4310
        %vm4318 = vmor %vm4316, %vm4317
        %v4319 = vsel %vm4318, %v4310, %v4315
        %v4320 = vrsqrt.pop %v4178
        %v4321 = vmul.f32 %v4320, %v4178
        %v4322 = vmul.f32 %v4321, %v4320
        %v4323 = vmul.f32 0.5, %v4322
        %v4324 = vsub.f32 1.5, %v4323
        %v4325 = vmul.f32 %v4320, %v4324
        %vm4326 = vweird.f32 %v4178
        %vm4327 = vweird.f32 %v4320
        %vm4328 = vmor %vm4326, %vm4327
        %v4329 = vsel %vm4328, %v4320, %v4325
        %v4330 = vrsqrt.pop %v4179
        %v4331 = vmul.f32 %v4330, %v4179
        %v4332 = vmul.f32 %v4331, %v4330
        %v4333 = vmul.f32 0.5, %v4332
        %v4334 = vsub.f32 1.5, %v4333
        %v4335 = vmul.f32 %v4330, %v4334
        %vm4336 = vweird.f32 %v4179
        %vm4337 = vweird.f32 %v4330
        %vm4338 = vmor %vm4336, %vm4337
        %v4339 = vsel %vm4338, %v4330, %v4335
        %v4340 = vmul.f32 %v4084, %v4189
        %v4341 = vmul.f32 %v4085, %v4199
        %v4342 = vmul.f32 %v4086, %v4209
        %v4343 = vmul.f32 %v4087, %v4219
        %v4344 = vmul.f32 %v4088, %v4229
        %v4345 = vmul.f32 %v4089, %v4239
        %v4346 = vmul.f32 %v4090, %v4249
        %v4347 = vmul.f32 %v4091, %v4259
        %v4348 = vmul.f32 %v4092, %v4269
        %v4349 = vmul.f32 %v4093, %v4279
        %v4350 = vmul.f32 %v4094, %v4289
        %v4351 = vmul.f32 %v4095, %v4299
        %v4352 = vmul.f32 %v4096, %v4309
        %v4353 = vmul.f32 %v4097, %v4319
        %v4354 = vmul.f32 %v4098, %v4329
        %v4355 = vmul.f32 %v4099, %v4339
        %v4357 = vperm.slane %v4034, 0
        %v4359 = vmul.f32 %v4340, %v4357
        %v4360 = vmul.f32 %v4341, %v4357
        %v4361 = vmul.f32 %v4342, %v4357
        %v4362 = vmul.f32 %v4343, %v4357
        %v4363 = vmul.f32 %v4344, %v4357
        %v4364 = vmul.f32 %v4345, %v4357
        %v4365 = vmul.f32 %v4346, %v4357
        %v4366 = vmul.f32 %v4347, %v4357
        %v4367 = vmul.f32 %v4348, %v4357
        %v4368 = vmul.f32 %v4349, %v4357
        %v4369 = vmul.f32 %v4350, %v4357
        %v4370 = vmul.f32 %v4351, %v4357
        %v4371 = vmul.f32 %v4352, %v4357
        %v4372 = vmul.f32 %v4353, %v4357
        %v4373 = vmul.f32 %v4354, %v4357
        %v4374 = vmul.f32 %v4355, %v4357
        %v4376 = vperm.slane %v4035, 0
        %v4378 = vadd.f32 %v4359, %v4376
        %v4379 = vadd.f32 %v4360, %v4376
        %v4380 = vadd.f32 %v4361, %v4376
        %v4381 = vadd.f32 %v4362, %v4376
        %v4382 = vadd.f32 %v4363, %v4376
        %v4383 = vadd.f32 %v4364, %v4376
        %v4384 = vadd.f32 %v4365, %v4376
        %v4385 = vadd.f32 %v4366, %v4376
        %v4386 = vadd.f32 %v4367, %v4376
        %v4387 = vadd.f32 %v4368, %v4376
        %v4388 = vadd.f32 %v4369, %v4376
        %v4389 = vadd.f32 %v4370, %v4376
        %v4390 = vadd.f32 %v4371, %v4376
        %v4391 = vadd.f32 %v4372, %v4376
        %v4392 = vadd.f32 %v4373, %v4376
        %v4393 = vadd.f32 %v4374, %v4376
        %4394 = vst [vmem:[%s757] sm:$0xff] %v4378
        %4395 = vst [vmem:[%s757 + $0x8] sm:$0xff] %v4379
        %4396 = vst [vmem:[%s757 + $0x10] sm:$0xff] %v4380
        %4397 = vst [vmem:[%s757 + $0x18] sm:$0xff] %v4381
        %4398 = vst [vmem:[%s757 + $0x20] sm:$0xff] %v4382
        %4399 = vst [vmem:[%s757 + $0x28] sm:$0xff] %v4383
        %4400 = vst [vmem:[%s757 + $0x30] sm:$0xff] %v4384
        %4401 = vst [vmem:[%s757 + $0x38] sm:$0xff] %v4385
        %4402 = vst [vmem:[%s757 + $0x40] sm:$0xff] %v4386
        %4403 = vst [vmem:[%s757 + $0x48] sm:$0xff] %v4387
        %4404 = vst [vmem:[%s757 + $0x50] sm:$0xff] %v4388
        %4405 = vst [vmem:[%s757 + $0x58] sm:$0xff] %v4389
        %4406 = vst [vmem:[%s757 + $0x60] sm:$0xff] %v4390
        %4407 = vst [vmem:[%s757 + $0x68] sm:$0xff] %v4391
        %4408 = vst [vmem:[%s757 + $0x70] sm:$0xff] %v4392
        %4409 = vst [vmem:[%s757 + $0x78] sm:$0xff] %v4393
        %s4410 = sand.u32 %s436, 1
        %s4411 = scalar_lea.sflag [#allocation4], %s4410
        %s4412 = sand.u32 %s436, 1
        %s4413 = smul.addr %s4412, 128
        %s4414 = scalar_lea.vmem [#allocation17], %s4413
        // Predicated region
        $region125: #{tpu_custom_call.1} parent=87 // pred_check
          %p4415 = pneg %p446
        $region126: #{tpu_custom_call.1} parent=87 // pred_check_branch
          %4417 = sbr.rel (%p4415) target = $region128
        $region127: #{tpu_custom_call.1} parent=87 // pred_region
          %s4418 = smul.u32 16, %s45
          %4420 = vsyncadd %s4411, 0
          %s4421 = smul.addr %s44, 16
          %s4422 = sadd.s32 %s4418, %s4421
          %s4423 = smul.addr %s4422, 8
          %s4424 = scalar_lea.hbm %s17, %s4423
          %s4425 = sshll.u32 %s4414, 4
          %s4426 = int_to_ptr.vmem [resolvable:$true] %s4425
          %s4427 = sshll.u32 %s4424, 4
          %s4428 = int_to_ptr.hbm [resolvable:$true] %s4427
          %4433 = dma.vmem_to_hbm [thread:$0]  %s4426, 2048, %s4428, %s4411, 128, 128, 8
        $region128: #{tpu_custom_call.1} parent=87 // pred_fallthru
          _
      $region88: #{tpu_custom_call.1} parent=5 // pred_fallthru
        _
      %p4434 = scmp.le.s32.totalorder 2, %s35
      // Predicated region
      $region129: #{tpu_custom_call.1} parent=5 // pred_check
        %p4435 = pneg %p4434
      $region130: #{tpu_custom_call.1} parent=5 // pred_check_branch
        %4437 = sbr.rel (%p4435) target = $region132
      $region131: #{tpu_custom_call.1} parent=5 // pred_region
        %s4438 = ssub.s32 %s35, 2
        // Predicated region
        $region133: #{tpu_custom_call.1} parent=131 // pred_check
          %p4439 = pneg %p452
        $region134: #{tpu_custom_call.1} parent=131 // pred_check_branch
          %4441 = sbr.rel (%p4439) target = $region136
        $region135: #{tpu_custom_call.1} parent=131 // pred_region
          %s4442 = sand.u32 %s437, 1
          %s4443 = scalar_lea.sflag [#allocation4], %s4442
          %s4444 = sand.u32 %s437, 1
          %s4445 = smul.addr %s4444, 128
          %s4446 = scalar_lea.vmem [#allocation17], %s4445
          %4448 = dma.done %s4443, 2048
        $region136: #{tpu_custom_call.1} parent=131 // pred_fallthru
          _
      $region132: #{tpu_custom_call.1} parent=5 // pred_fallthru
        _
    $region6: #{tpu_custom_call.1} parent=1 // loop_footer
      %s39 = sadd.s32 1, %s35
    $region7: #{tpu_custom_call.1} parent=1 // loop_footer_branch
      %34 = sbr.rel target = $region3
    $region8: #{tpu_custom_call.1} parent=1 // loop_exit
      _
    %4449 = vsyncpa [#allocation3], 1
    %s4450 = scalar_lea.sflag [#allocation3], 1
    %4451 = vsyncpa %s4450, 1
    %4452 = vsyncpa [#allocation6], 1
    %s4453 = scalar_lea.sflag [#allocation6], 1
    %4454 = vsyncpa %s4453, 1
    %4455 = vsyncpa [#allocation9], 1
    %4456 = vsyncpa [#allocation12], 1
    %4457 = vsyncpa [#allocation15], 1
    %4458 = vsyncpa [#allocation4], 1
    %s4459 = scalar_lea.sflag [#allocation4], 1
    %4460 = vsyncpa %s4459, 1

</llo_original>
